<compile_context>
chip_gen: v7x
topology: tpu7x:2x2x1
jax: 0.10.0
libtpu: 0.0.40
codegen_flags: <defaults>
</compile_context>

<pallas_src>
import jax
import jax.numpy as jnp
from jax import lax
from jax.experimental import pallas as pl
from jax.experimental.pallas import tpu as pltpu

LANE = 128


def bigru_kernel(ids_ref, len_ref, proj_ref, whhf_ref, whhb_ref,
                 bhn_ref, wfc_ref, bfc_ref, out_ref):
    TB = ids_ref.shape[0]
    B = len_ref.shape[0]
    T = TB // B
    Vp = proj_ref.shape[0]

    # ---- fused embedding gather + input projection (+ folded b_ih, b_hh_r, b_hh_z) ----
    # one one-hot (T*B, Vp) matmul against the precomputed, gate-padded vocab table.
    oh = (ids_ref[...] == lax.broadcasted_iota(jnp.int32, (TB, Vp), 1)).astype(jnp.float32)
    gi = jnp.dot(oh, proj_ref[...], preferred_element_type=jnp.float32)   # (T*B, 6*LANE)

    whh_f = whhf_ref[...]                       # (LANE, 3*LANE), zero-padded
    whh_b = whhb_ref[...]
    bhn_f = bhn_ref[:, 0:LANE]                  # (B, LANE) n-gate recurrent bias only
    bhn_b = bhn_ref[:, LANE:2 * LANE]
    lens = len_ref[...]                         # (B, LANE) int32, pre-broadcast

    def gru_step(h, x_r, x_z, x_n, whh, bhn):
        # single fused (B,LANE)@(LANE,3*LANE) recurrent dot; gate reads are aligned
        # 128-lane blocks of the result (free views).
        gh = jnp.dot(h, whh, preferred_element_type=jnp.float32)          # (B, 3*LANE)
        r = jax.nn.sigmoid(x_r + gh[:, 0:LANE])
        z = jax.nn.sigmoid(x_z + gh[:, LANE:2 * LANE])
        n = jnp.tanh(x_n + r * (gh[:, 2 * LANE:3 * LANE] + bhn))
        return (1.0 - z) * n + z * h

    h_f = jnp.zeros((B, LANE), jnp.float32)
    h_b = jnp.zeros((B, LANE), jnp.float32)

    # Fused forward/backward recurrence, fully unrolled (T static, small): the two
    # independent hidden-state chains hide each other's MXU/EUP latency.
    for i in range(T):
        tf = i
        tb = T - 1 - i
        rf = slice(tf * B, (tf + 1) * B)        # static, sublane-aligned (B multiple of 8)
        rb = slice(tb * B, (tb + 1) * B)

        hf_new = gru_step(h_f,
                          gi[rf, 0:LANE], gi[rf, LANE:2 * LANE], gi[rf, 2 * LANE:3 * LANE],
                          whh_f, bhn_f)
        hb_new = gru_step(h_b,
                          gi[rb, 3 * LANE:4 * LANE], gi[rb, 4 * LANE:5 * LANE],
                          gi[rb, 5 * LANE:6 * LANE],
                          whh_b, bhn_b)

        h_f = jnp.where(lens > tf, hf_new, h_f)   # fwd: freeze once t >= len
        h_b = jnp.where(lens > tb, hb_new, h_b)   # bwd: stays 0 until t == len-1

    # dropout (eval mode) = identity, then ReLU, then Linear(2H, 8) as a split matmul
    # (avoids an in-kernel concatenate of [h_f, h_b]); output is lane-dense (B, 128).
    h_f = jnp.maximum(h_f, 0.0)
    h_b = jnp.maximum(h_b, 0.0)
    wfc = wfc_ref[...]
    out_ref[...] = (jnp.dot(h_f, wfc[0:LANE, :], preferred_element_type=jnp.float32)
                    + jnp.dot(h_b, wfc[LANE:2 * LANE, :], preferred_element_type=jnp.float32)
                    + bfc_ref[...])


def bigru_forward(input_seqs, input_lengths, params):
    B, T = input_seqs.shape
    V, E = params["embedding"].shape
    H = params["w_hh_f"].shape[0]
    assert H <= LANE and E <= LANE

    # pad batch to a sublane multiple (8); padded rows get length 0 and are sliced off
    B_pad = max(8, ((B + 7) // 8) * 8)
    ids = input_seqs.astype(jnp.int32)
    lengths = input_lengths.astype(jnp.int32)
    if B_pad != B:
        ids = jnp.pad(ids, ((0, B_pad - B), (0, 0)))
        lengths = jnp.pad(lengths, (0, B_pad - B))

    # row t*B_pad + b of the flattened id column corresponds to (time t, batch b)
    ids_tb = jnp.transpose(ids, (1, 0)).reshape(T * B_pad, 1)
    len_pad = jnp.broadcast_to(lengths.reshape(B_pad, 1), (B_pad, LANE)).astype(jnp.int32)

    V_pad = ((V + LANE - 1) // LANE) * LANE

    def gate_pad_cols(x3h):
        # (R, 3H) -> (R, 3*LANE); gate g occupies cols [g*LANE : g*LANE+H], rest zero
        R = x3h.shape[0]
        out = jnp.zeros((R, 3 * LANE), jnp.float32)
        for g in range(3):
            out = out.at[:, g * LANE:g * LANE + H].set(x3h[:, g * H:(g + 1) * H])
        return out

    def make_proj(w_ih, b_ih, b_hh):
        # weight-only vocab projection table, computed ONCE outside the kernel;
        # b_ih fully folded, plus the foldable recurrent biases b_hh_r / b_hh_z.
        proj = params["embedding"].astype(jnp.float32) @ w_ih + b_ih          # (V, 3H)
        fold = jnp.concatenate([b_hh[:, 0:H], b_hh[:, H:2 * H],
                                jnp.zeros((1, H), jnp.float32)], axis=1)      # (1, 3H)
        proj = gate_pad_cols(proj + fold)                                     # (V, 3*LANE)
        return jnp.pad(proj, ((0, V_pad - V), (0, 0)))                        # (V_pad, 3*LANE)

    proj = jnp.concatenate(
        [make_proj(params["w_ih_f"], params["b_ih_f"], params["b_hh_f"]),
         make_proj(params["w_ih_b"], params["b_ih_b"], params["b_hh_b"])], axis=1)  # (V_pad, 6*LANE)

    def make_whh(w_hh):
        # (H, 3H) -> (LANE, 3*LANE) gate-padded, zero rows H:LANE
        return jnp.pad(gate_pad_cols(w_hh), ((0, LANE - H), (0, 0)))

    whh_f = make_whh(params["w_hh_f"])
    whh_b = make_whh(params["w_hh_b"])

    def make_bhn(b_hh):
        # only the n-gate recurrent bias stays un-folded (must sit inside r * (.))
        bn = jnp.zeros((1, LANE), jnp.float32).at[:, 0:H].set(b_hh[:, 2 * H:3 * H])
        return jnp.broadcast_to(bn, (B_pad, LANE))

    bhn = jnp.concatenate([make_bhn(params["b_hh_f"]), make_bhn(params["b_hh_b"])], axis=1)

    # FC weights padded to lane tiles: fwd half -> rows 0:H, bwd half -> rows LANE:LANE+H
    wfc = jnp.zeros((2 * LANE, LANE), jnp.float32)
    wfc = wfc.at[0:H, 0:8].set(params["w_fc"][0:H])
    wfc = wfc.at[LANE:LANE + H, 0:8].set(params["w_fc"][H:2 * H])
    bfc = jnp.zeros((1, LANE), jnp.float32).at[:, 0:8].set(params["b_fc"])
    bfc = jnp.broadcast_to(bfc, (B_pad, LANE))

    vmem = pl.BlockSpec(memory_space=pltpu.MemorySpace.VMEM)
    out = pl.pallas_call(
        bigru_kernel,
        out_shape=jax.ShapeDtypeStruct((B_pad, LANE), jnp.float32),
        in_specs=[vmem] * 8,
        out_specs=vmem,
    )(ids_tb, len_pad, proj, whh_f, whh_b, bhn, wfc, bfc)
    return out[:B, :8]


def bigru_reference(input_seqs, input_lengths, params):
    """Pure-JAX reference of the same forward pass (for verification)."""
    embeds = jnp.take(params["embedding"], input_seqs, axis=0)          # (B, T, E)
    B, T, _ = embeds.shape
    H = params["w_hh_f"].shape[0]
    lengths = input_lengths.astype(jnp.int32)

    def step(x_t, h, w_ih, w_hh, b_ih, b_hh):
        gi = x_t @ w_ih + b_ih
        gh = h @ w_hh + b_hh
        r = jax.nn.sigmoid(gi[:, 0:H] + gh[:, 0:H])
        z = jax.nn.sigmoid(gi[:, H:2 * H] + gh[:, H:2 * H])
        n = jnp.tanh(gi[:, 2 * H:] + r * gh[:, 2 * H:])
        return (1.0 - z) * n + z * h

    h_f = jnp.zeros((B, H), jnp.float32)
    for t in range(T):
        h_new = step(embeds[:, t], h_f, params["w_ih_f"], params["w_hh_f"],
                     params["b_ih_f"], params["b_hh_f"])
        h_f = jnp.where((lengths > t)[:, None], h_new, h_f)

    h_b = jnp.zeros((B, H), jnp.float32)
    for t in range(T - 1, -1, -1):
        h_new = step(embeds[:, t], h_b, params["w_ih_b"], params["w_hh_b"],
                     params["b_ih_b"], params["b_hh_b"])
        h_b = jnp.where((lengths > t)[:, None], h_new, h_b)

    hidden = jnp.maximum(jnp.concatenate([h_f, h_b], axis=-1), 0.0)
    return hidden @ params["w_fc"] + params["b_fc"]


def init_params(key, vocab_size, embedding_dim, hidden_size):
    E, H = embedding_dim, hidden_size
    ks = jax.random.split(key, 12)
    s = 1.0 / jnp.sqrt(jnp.float32(H))

    def u(k, shape):
        return jax.random.uniform(k, shape, jnp.float32, -s, s)

    return {
        "embedding": jax.random.normal(ks[0], (vocab_size, E), jnp.float32),
        "w_ih_f": u(ks[1], (E, 3 * H)), "w_hh_f": u(ks[2], (H, 3 * H)),
        "b_ih_f": u(ks[3], (1, 3 * H)), "b_hh_f": u(ks[4], (1, 3 * H)),
        "w_ih_b": u(ks[5], (E, 3 * H)), "w_hh_b": u(ks[6], (H, 3 * H)),
        "b_ih_b": u(ks[7], (1, 3 * H)), "b_hh_b": u(ks[8], (1, 3 * H)),
        "w_fc": u(ks[9], (2 * H, 8)), "b_fc": u(ks[10], (1, 8)),
    }


if __name__ == "__main__":
    vocab_size, embedding_dim, hidden_size = 50, 32, 32
    B, T = 2, 8

    key = jax.random.PRNGKey(0)
    pkey, dkey = jax.random.split(key)
    params = init_params(pkey, vocab_size, embedding_dim, hidden_size)

    input_seqs = jax.random.randint(dkey, (B, T), 0, vocab_size, dtype=jnp.int32)
    input_lengths = jnp.array([8, 5], dtype=jnp.int32)   # padded-sequence lengths

    out = bigru_forward(input_seqs, input_lengths, params)
    out = jax.block_until_ready(out)

    ref = bigru_reference(input_seqs, input_lengths, params)
    assert out.shape == (B, 8)
    assert jnp.allclose(out, ref, rtol=1e-4, atol=1e-4), (out, ref)
    print("KERNEL_OK")
</pallas_src>

<mosaic_0001>
module attributes {stable_mosaic.version = 11 : i64} {
  func.func @bigru_kernel(%arg0: memref<64x1xi32, #tpu.memory_space<vmem>>, %arg1: memref<8x128xi32, #tpu.memory_space<vmem>>, %arg2: memref<128x768xf32, #tpu.memory_space<vmem>>, %arg3: memref<128x384xf32, #tpu.memory_space<vmem>>, %arg4: memref<128x384xf32, #tpu.memory_space<vmem>>, %arg5: memref<8x256xf32, #tpu.memory_space<vmem>>, %arg6: memref<256x128xf32, #tpu.memory_space<vmem>>, %arg7: memref<8x128xf32, #tpu.memory_space<vmem>>, %arg8: memref<8x128xf32, #tpu.memory_space<vmem>>) attributes {dimension_semantics = [], scalar_prefetch = 0 : i64, scratch_operands = 0 : i64, tpu.core_type = #tpu.core_type<tc>} {
    %c0 = arith.constant 0 : index
    %c0_0 = arith.constant 0 : index
    %0 = vector.load %arg0[%c0, %c0_0] : memref<64x1xi32, #tpu.memory_space<vmem>>, vector<64x1xi32>
    %1 = tpu.iota {dimensions = array<i32: 1>} : vector<64x128xi32>
    %2 = vector.broadcast %0 : vector<64x1xi32> to vector<64x128xi32>
    %3 = arith.cmpi eq, %2, %1 : vector<64x128xi32>
    %4 = arith.extui %3 : vector<64x128xi1> to vector<64x128xi32>
    %5 = arith.sitofp %4 : vector<64x128xi32> to vector<64x128xf32>
    %c0_1 = arith.constant 0 : index
    %c0_2 = arith.constant 0 : index
    %6 = vector.load %arg2[%c0_1, %c0_2] : memref<128x768xf32, #tpu.memory_space<vmem>>, vector<128x768xf32>
    %cst = arith.constant dense<0.000000e+00> : vector<64x768xf32>
    %7 = tpu.matmul %5, %6, %cst {dimension_numbers = #tpu.dot_dimension_numbers<[1], [0], [0], [1], [0, 0, 1, 1], [], []>} : vector<64x128xf32>, vector<128x768xf32>, vector<64x768xf32> -> vector<64x768xf32>
    %c0_3 = arith.constant 0 : index
    %c0_4 = arith.constant 0 : index
    %8 = vector.load %arg3[%c0_3, %c0_4] : memref<128x384xf32, #tpu.memory_space<vmem>>, vector<128x384xf32>
    %c0_5 = arith.constant 0 : index
    %c0_6 = arith.constant 0 : index
    %9 = vector.load %arg4[%c0_5, %c0_6] : memref<128x384xf32, #tpu.memory_space<vmem>>, vector<128x384xf32>
    %c0_7 = arith.constant 0 : index
    %c0_8 = arith.constant 0 : index
    %10 = vector.load %arg5[%c0_7, %c0_8] : memref<8x256xf32, #tpu.memory_space<vmem>>, vector<8x128xf32>
    %c0_9 = arith.constant 0 : index
    %c128 = arith.constant 128 : index
    %11 = vector.load %arg5[%c0_9, %c128] : memref<8x256xf32, #tpu.memory_space<vmem>>, vector<8x128xf32>
    %c0_10 = arith.constant 0 : index
    %c0_11 = arith.constant 0 : index
    %12 = vector.load %arg1[%c0_10, %c0_11] : memref<8x128xi32, #tpu.memory_space<vmem>>, vector<8x128xi32>
    %cst_12 = arith.constant 0.000000e+00 : f32
    %13 = vector.broadcast %cst_12 : f32 to vector<8x128xf32>
    %cst_13 = arith.constant 0.000000e+00 : f32
    %14 = vector.broadcast %cst_13 : f32 to vector<8x128xf32>
    %15 = vector.extract_strided_slice %7 {offsets = [0, 0], sizes = [8, 128], strides = [1, 1]} : vector<64x768xf32> to vector<8x128xf32>
    %16 = vector.extract_strided_slice %7 {offsets = [0, 128], sizes = [8, 128], strides = [1, 1]} : vector<64x768xf32> to vector<8x128xf32>
    %17 = vector.extract_strided_slice %7 {offsets = [0, 256], sizes = [8, 128], strides = [1, 1]} : vector<64x768xf32> to vector<8x128xf32>
    %cst_14 = arith.constant dense<0.000000e+00> : vector<8x384xf32>
    %18 = tpu.matmul %13, %8, %cst_14 {dimension_numbers = #tpu.dot_dimension_numbers<[1], [0], [0], [1], [0, 0, 1, 1], [], []>} : vector<8x128xf32>, vector<128x384xf32>, vector<8x384xf32> -> vector<8x384xf32>
    %19 = vector.extract_strided_slice %18 {offsets = [0, 0], sizes = [8, 128], strides = [1, 1]} : vector<8x384xf32> to vector<8x128xf32>
    %20 = arith.addf %15, %19 : vector<8x128xf32>
    %21 = arith.negf %20 : vector<8x128xf32>
    %22 = math.exp %21 : vector<8x128xf32>
    %cst_15 = arith.constant 1.000000e+00 : f32
    %23 = vector.broadcast %cst_15 : f32 to vector<8x128xf32>
    %24 = arith.addf %23, %22 : vector<8x128xf32>
    %25 = arith.divf %23, %24 : vector<8x128xf32>
    %26 = vector.extract_strided_slice %18 {offsets = [0, 128], sizes = [8, 128], strides = [1, 1]} : vector<8x384xf32> to vector<8x128xf32>
    %27 = arith.addf %16, %26 : vector<8x128xf32>
    %28 = arith.negf %27 : vector<8x128xf32>
    %29 = math.exp %28 : vector<8x128xf32>
    %cst_16 = arith.constant 1.000000e+00 : f32
    %30 = vector.broadcast %cst_16 : f32 to vector<8x128xf32>
    %31 = arith.addf %30, %29 : vector<8x128xf32>
    %32 = arith.divf %30, %31 : vector<8x128xf32>
    %33 = vector.extract_strided_slice %18 {offsets = [0, 256], sizes = [8, 128], strides = [1, 1]} : vector<8x384xf32> to vector<8x128xf32>
    %34 = arith.addf %33, %10 : vector<8x128xf32>
    %35 = arith.mulf %25, %34 : vector<8x128xf32>
    %36 = arith.addf %17, %35 : vector<8x128xf32>
    %37 = math.tanh %36 : vector<8x128xf32>
    %cst_17 = arith.constant 1.000000e+00 : f32
    %38 = vector.broadcast %cst_17 : f32 to vector<8x128xf32>
    %39 = arith.subf %38, %32 : vector<8x128xf32>
    %40 = arith.mulf %39, %37 : vector<8x128xf32>
    %41 = arith.mulf %32, %13 : vector<8x128xf32>
    %42 = arith.addf %40, %41 : vector<8x128xf32>
    %43 = vector.extract_strided_slice %7 {offsets = [56, 384], sizes = [8, 128], strides = [1, 1]} : vector<64x768xf32> to vector<8x128xf32>
    %44 = vector.extract_strided_slice %7 {offsets = [56, 512], sizes = [8, 128], strides = [1, 1]} : vector<64x768xf32> to vector<8x128xf32>
    %45 = vector.extract_strided_slice %7 {offsets = [56, 640], sizes = [8, 128], strides = [1, 1]} : vector<64x768xf32> to vector<8x128xf32>
    %cst_18 = arith.constant dense<0.000000e+00> : vector<8x384xf32>
    %46 = tpu.matmul %14, %9, %cst_18 {dimension_numbers = #tpu.dot_dimension_numbers<[1], [0], [0], [1], [0, 0, 1, 1], [], []>} : vector<8x128xf32>, vector<128x384xf32>, vector<8x384xf32> -> vector<8x384xf32>
    %47 = vector.extract_strided_slice %46 {offsets = [0, 0], sizes = [8, 128], strides = [1, 1]} : vector<8x384xf32> to vector<8x128xf32>
    %48 = arith.addf %43, %47 : vector<8x128xf32>
    %49 = arith.negf %48 : vector<8x128xf32>
    %50 = math.exp %49 : vector<8x128xf32>
    %cst_19 = arith.constant 1.000000e+00 : f32
    %51 = vector.broadcast %cst_19 : f32 to vector<8x128xf32>
    %52 = arith.addf %51, %50 : vector<8x128xf32>
    %53 = arith.divf %51, %52 : vector<8x128xf32>
    %54 = vector.extract_strided_slice %46 {offsets = [0, 128], sizes = [8, 128], strides = [1, 1]} : vector<8x384xf32> to vector<8x128xf32>
    %55 = arith.addf %44, %54 : vector<8x128xf32>
    %56 = arith.negf %55 : vector<8x128xf32>
    %57 = math.exp %56 : vector<8x128xf32>
    %cst_20 = arith.constant 1.000000e+00 : f32
    %58 = vector.broadcast %cst_20 : f32 to vector<8x128xf32>
    %59 = arith.addf %58, %57 : vector<8x128xf32>
    %60 = arith.divf %58, %59 : vector<8x128xf32>
    %61 = vector.extract_strided_slice %46 {offsets = [0, 256], sizes = [8, 128], strides = [1, 1]} : vector<8x384xf32> to vector<8x128xf32>
    %62 = arith.addf %61, %11 : vector<8x128xf32>
    %63 = arith.mulf %53, %62 : vector<8x128xf32>
    %64 = arith.addf %45, %63 : vector<8x128xf32>
    %65 = math.tanh %64 : vector<8x128xf32>
    %cst_21 = arith.constant 1.000000e+00 : f32
    %66 = vector.broadcast %cst_21 : f32 to vector<8x128xf32>
    %67 = arith.subf %66, %60 : vector<8x128xf32>
    %68 = arith.mulf %67, %65 : vector<8x128xf32>
    %69 = arith.mulf %60, %14 : vector<8x128xf32>
    %70 = arith.addf %68, %69 : vector<8x128xf32>
    %c0_i32 = arith.constant 0 : i32
    %71 = vector.broadcast %c0_i32 : i32 to vector<8x128xi32>
    %72 = arith.cmpi sgt, %12, %71 : vector<8x128xi32>
    %73 = arith.select %72, %42, %13 : vector<8x128xi1>, vector<8x128xf32>
    %c7_i32 = arith.constant 7 : i32
    %74 = vector.broadcast %c7_i32 : i32 to vector<8x128xi32>
    %75 = arith.cmpi sgt, %12, %74 : vector<8x128xi32>
    %76 = arith.select %75, %70, %14 : vector<8x128xi1>, vector<8x128xf32>
    %77 = vector.extract_strided_slice %7 {offsets = [8, 0], sizes = [8, 128], strides = [1, 1]} : vector<64x768xf32> to vector<8x128xf32>
    %78 = vector.extract_strided_slice %7 {offsets = [8, 128], sizes = [8, 128], strides = [1, 1]} : vector<64x768xf32> to vector<8x128xf32>
    %79 = vector.extract_strided_slice %7 {offsets = [8, 256], sizes = [8, 128], strides = [1, 1]} : vector<64x768xf32> to vector<8x128xf32>
    %cst_22 = arith.constant dense<0.000000e+00> : vector<8x384xf32>
    %80 = tpu.matmul %73, %8, %cst_22 {dimension_numbers = #tpu.dot_dimension_numbers<[1], [0], [0], [1], [0, 0, 1, 1], [], []>} : vector<8x128xf32>, vector<128x384xf32>, vector<8x384xf32> -> vector<8x384xf32>
    %81 = vector.extract_strided_slice %80 {offsets = [0, 0], sizes = [8, 128], strides = [1, 1]} : vector<8x384xf32> to vector<8x128xf32>
    %82 = arith.addf %77, %81 : vector<8x128xf32>
    %83 = arith.negf %82 : vector<8x128xf32>
    %84 = math.exp %83 : vector<8x128xf32>
    %cst_23 = arith.constant 1.000000e+00 : f32
    %85 = vector.broadcast %cst_23 : f32 to vector<8x128xf32>
    %86 = arith.addf %85, %84 : vector<8x128xf32>
    %87 = arith.divf %85, %86 : vector<8x128xf32>
    %88 = vector.extract_strided_slice %80 {offsets = [0, 128], sizes = [8, 128], strides = [1, 1]} : vector<8x384xf32> to vector<8x128xf32>
    %89 = arith.addf %78, %88 : vector<8x128xf32>
    %90 = arith.negf %89 : vector<8x128xf32>
    %91 = math.exp %90 : vector<8x128xf32>
    %cst_24 = arith.constant 1.000000e+00 : f32
    %92 = vector.broadcast %cst_24 : f32 to vector<8x128xf32>
    %93 = arith.addf %92, %91 : vector<8x128xf32>
    %94 = arith.divf %92, %93 : vector<8x128xf32>
    %95 = vector.extract_strided_slice %80 {offsets = [0, 256], sizes = [8, 128], strides = [1, 1]} : vector<8x384xf32> to vector<8x128xf32>
    %96 = arith.addf %95, %10 : vector<8x128xf32>
    %97 = arith.mulf %87, %96 : vector<8x128xf32>
    %98 = arith.addf %79, %97 : vector<8x128xf32>
    %99 = math.tanh %98 : vector<8x128xf32>
    %cst_25 = arith.constant 1.000000e+00 : f32
    %100 = vector.broadcast %cst_25 : f32 to vector<8x128xf32>
    %101 = arith.subf %100, %94 : vector<8x128xf32>
    %102 = arith.mulf %101, %99 : vector<8x128xf32>
    %103 = arith.mulf %94, %73 : vector<8x128xf32>
    %104 = arith.addf %102, %103 : vector<8x128xf32>
    %105 = vector.extract_strided_slice %7 {offsets = [48, 384], sizes = [8, 128], strides = [1, 1]} : vector<64x768xf32> to vector<8x128xf32>
    %106 = vector.extract_strided_slice %7 {offsets = [48, 512], sizes = [8, 128], strides = [1, 1]} : vector<64x768xf32> to vector<8x128xf32>
    %107 = vector.extract_strided_slice %7 {offsets = [48, 640], sizes = [8, 128], strides = [1, 1]} : vector<64x768xf32> to vector<8x128xf32>
    %cst_26 = arith.constant dense<0.000000e+00> : vector<8x384xf32>
    %108 = tpu.matmul %76, %9, %cst_26 {dimension_numbers = #tpu.dot_dimension_numbers<[1], [0], [0], [1], [0, 0, 1, 1], [], []>} : vector<8x128xf32>, vector<128x384xf32>, vector<8x384xf32> -> vector<8x384xf32>
    %109 = vector.extract_strided_slice %108 {offsets = [0, 0], sizes = [8, 128], strides = [1, 1]} : vector<8x384xf32> to vector<8x128xf32>
    %110 = arith.addf %105, %109 : vector<8x128xf32>
    %111 = arith.negf %110 : vector<8x128xf32>
    %112 = math.exp %111 : vector<8x128xf32>
    %cst_27 = arith.constant 1.000000e+00 : f32
    %113 = vector.broadcast %cst_27 : f32 to vector<8x128xf32>
    %114 = arith.addf %113, %112 : vector<8x128xf32>
    %115 = arith.divf %113, %114 : vector<8x128xf32>
    %116 = vector.extract_strided_slice %108 {offsets = [0, 128], sizes = [8, 128], strides = [1, 1]} : vector<8x384xf32> to vector<8x128xf32>
    %117 = arith.addf %106, %116 : vector<8x128xf32>
    %118 = arith.negf %117 : vector<8x128xf32>
    %119 = math.exp %118 : vector<8x128xf32>
    %cst_28 = arith.constant 1.000000e+00 : f32
    %120 = vector.broadcast %cst_28 : f32 to vector<8x128xf32>
    %121 = arith.addf %120, %119 : vector<8x128xf32>
    %122 = arith.divf %120, %121 : vector<8x128xf32>
    %123 = vector.extract_strided_slice %108 {offsets = [0, 256], sizes = [8, 128], strides = [1, 1]} : vector<8x384xf32> to vector<8x128xf32>
    %124 = arith.addf %123, %11 : vector<8x128xf32>
    %125 = arith.mulf %115, %124 : vector<8x128xf32>
    %126 = arith.addf %107, %125 : vector<8x128xf32>
    %127 = math.tanh %126 : vector<8x128xf32>
    %cst_29 = arith.constant 1.000000e+00 : f32
    %128 = vector.broadcast %cst_29 : f32 to vector<8x128xf32>
    %129 = arith.subf %128, %122 : vector<8x128xf32>
    %130 = arith.mulf %129, %127 : vector<8x128xf32>
    %131 = arith.mulf %122, %76 : vector<8x128xf32>
    %132 = arith.addf %130, %131 : vector<8x128xf32>
    %c1_i32 = arith.constant 1 : i32
    %133 = vector.broadcast %c1_i32 : i32 to vector<8x128xi32>
    %134 = arith.cmpi sgt, %12, %133 : vector<8x128xi32>
    %135 = arith.select %134, %104, %73 : vector<8x128xi1>, vector<8x128xf32>
    %c6_i32 = arith.constant 6 : i32
    %136 = vector.broadcast %c6_i32 : i32 to vector<8x128xi32>
    %137 = arith.cmpi sgt, %12, %136 : vector<8x128xi32>
    %138 = arith.select %137, %132, %76 : vector<8x128xi1>, vector<8x128xf32>
    %139 = vector.extract_strided_slice %7 {offsets = [16, 0], sizes = [8, 128], strides = [1, 1]} : vector<64x768xf32> to vector<8x128xf32>
    %140 = vector.extract_strided_slice %7 {offsets = [16, 128], sizes = [8, 128], strides = [1, 1]} : vector<64x768xf32> to vector<8x128xf32>
    %141 = vector.extract_strided_slice %7 {offsets = [16, 256], sizes = [8, 128], strides = [1, 1]} : vector<64x768xf32> to vector<8x128xf32>
    %cst_30 = arith.constant dense<0.000000e+00> : vector<8x384xf32>
    %142 = tpu.matmul %135, %8, %cst_30 {dimension_numbers = #tpu.dot_dimension_numbers<[1], [0], [0], [1], [0, 0, 1, 1], [], []>} : vector<8x128xf32>, vector<128x384xf32>, vector<8x384xf32> -> vector<8x384xf32>
    %143 = vector.extract_strided_slice %142 {offsets = [0, 0], sizes = [8, 128], strides = [1, 1]} : vector<8x384xf32> to vector<8x128xf32>
    %144 = arith.addf %139, %143 : vector<8x128xf32>
    %145 = arith.negf %144 : vector<8x128xf32>
    %146 = math.exp %145 : vector<8x128xf32>
    %cst_31 = arith.constant 1.000000e+00 : f32
    %147 = vector.broadcast %cst_31 : f32 to vector<8x128xf32>
    %148 = arith.addf %147, %146 : vector<8x128xf32>
    %149 = arith.divf %147, %148 : vector<8x128xf32>
    %150 = vector.extract_strided_slice %142 {offsets = [0, 128], sizes = [8, 128], strides = [1, 1]} : vector<8x384xf32> to vector<8x128xf32>
    %151 = arith.addf %140, %150 : vector<8x128xf32>
    %152 = arith.negf %151 : vector<8x128xf32>
    %153 = math.exp %152 : vector<8x128xf32>
    %cst_32 = arith.constant 1.000000e+00 : f32
    %154 = vector.broadcast %cst_32 : f32 to vector<8x128xf32>
    %155 = arith.addf %154, %153 : vector<8x128xf32>
    %156 = arith.divf %154, %155 : vector<8x128xf32>
    %157 = vector.extract_strided_slice %142 {offsets = [0, 256], sizes = [8, 128], strides = [1, 1]} : vector<8x384xf32> to vector<8x128xf32>
    %158 = arith.addf %157, %10 : vector<8x128xf32>
    %159 = arith.mulf %149, %158 : vector<8x128xf32>
    %160 = arith.addf %141, %159 : vector<8x128xf32>
    %161 = math.tanh %160 : vector<8x128xf32>
    %cst_33 = arith.constant 1.000000e+00 : f32
    %162 = vector.broadcast %cst_33 : f32 to vector<8x128xf32>
    %163 = arith.subf %162, %156 : vector<8x128xf32>
    %164 = arith.mulf %163, %161 : vector<8x128xf32>
    %165 = arith.mulf %156, %135 : vector<8x128xf32>
    %166 = arith.addf %164, %165 : vector<8x128xf32>
    %167 = vector.extract_strided_slice %7 {offsets = [40, 384], sizes = [8, 128], strides = [1, 1]} : vector<64x768xf32> to vector<8x128xf32>
    %168 = vector.extract_strided_slice %7 {offsets = [40, 512], sizes = [8, 128], strides = [1, 1]} : vector<64x768xf32> to vector<8x128xf32>
    %169 = vector.extract_strided_slice %7 {offsets = [40, 640], sizes = [8, 128], strides = [1, 1]} : vector<64x768xf32> to vector<8x128xf32>
    %cst_34 = arith.constant dense<0.000000e+00> : vector<8x384xf32>
    %170 = tpu.matmul %138, %9, %cst_34 {dimension_numbers = #tpu.dot_dimension_numbers<[1], [0], [0], [1], [0, 0, 1, 1], [], []>} : vector<8x128xf32>, vector<128x384xf32>, vector<8x384xf32> -> vector<8x384xf32>
    %171 = vector.extract_strided_slice %170 {offsets = [0, 0], sizes = [8, 128], strides = [1, 1]} : vector<8x384xf32> to vector<8x128xf32>
    %172 = arith.addf %167, %171 : vector<8x128xf32>
    %173 = arith.negf %172 : vector<8x128xf32>
    %174 = math.exp %173 : vector<8x128xf32>
    %cst_35 = arith.constant 1.000000e+00 : f32
    %175 = vector.broadcast %cst_35 : f32 to vector<8x128xf32>
    %176 = arith.addf %175, %174 : vector<8x128xf32>
    %177 = arith.divf %175, %176 : vector<8x128xf32>
    %178 = vector.extract_strided_slice %170 {offsets = [0, 128], sizes = [8, 128], strides = [1, 1]} : vector<8x384xf32> to vector<8x128xf32>
    %179 = arith.addf %168, %178 : vector<8x128xf32>
    %180 = arith.negf %179 : vector<8x128xf32>
    %181 = math.exp %180 : vector<8x128xf32>
    %cst_36 = arith.constant 1.000000e+00 : f32
    %182 = vector.broadcast %cst_36 : f32 to vector<8x128xf32>
    %183 = arith.addf %182, %181 : vector<8x128xf32>
    %184 = arith.divf %182, %183 : vector<8x128xf32>
    %185 = vector.extract_strided_slice %170 {offsets = [0, 256], sizes = [8, 128], strides = [1, 1]} : vector<8x384xf32> to vector<8x128xf32>
    %186 = arith.addf %185, %11 : vector<8x128xf32>
    %187 = arith.mulf %177, %186 : vector<8x128xf32>
    %188 = arith.addf %169, %187 : vector<8x128xf32>
    %189 = math.tanh %188 : vector<8x128xf32>
    %cst_37 = arith.constant 1.000000e+00 : f32
    %190 = vector.broadcast %cst_37 : f32 to vector<8x128xf32>
    %191 = arith.subf %190, %184 : vector<8x128xf32>
    %192 = arith.mulf %191, %189 : vector<8x128xf32>
    %193 = arith.mulf %184, %138 : vector<8x128xf32>
    %194 = arith.addf %192, %193 : vector<8x128xf32>
    %c2_i32 = arith.constant 2 : i32
    %195 = vector.broadcast %c2_i32 : i32 to vector<8x128xi32>
    %196 = arith.cmpi sgt, %12, %195 : vector<8x128xi32>
    %197 = arith.select %196, %166, %135 : vector<8x128xi1>, vector<8x128xf32>
    %c5_i32 = arith.constant 5 : i32
    %198 = vector.broadcast %c5_i32 : i32 to vector<8x128xi32>
    %199 = arith.cmpi sgt, %12, %198 : vector<8x128xi32>
    %200 = arith.select %199, %194, %138 : vector<8x128xi1>, vector<8x128xf32>
    %201 = vector.extract_strided_slice %7 {offsets = [24, 0], sizes = [8, 128], strides = [1, 1]} : vector<64x768xf32> to vector<8x128xf32>
    %202 = vector.extract_strided_slice %7 {offsets = [24, 128], sizes = [8, 128], strides = [1, 1]} : vector<64x768xf32> to vector<8x128xf32>
    %203 = vector.extract_strided_slice %7 {offsets = [24, 256], sizes = [8, 128], strides = [1, 1]} : vector<64x768xf32> to vector<8x128xf32>
    %cst_38 = arith.constant dense<0.000000e+00> : vector<8x384xf32>
    %204 = tpu.matmul %197, %8, %cst_38 {dimension_numbers = #tpu.dot_dimension_numbers<[1], [0], [0], [1], [0, 0, 1, 1], [], []>} : vector<8x128xf32>, vector<128x384xf32>, vector<8x384xf32> -> vector<8x384xf32>
    %205 = vector.extract_strided_slice %204 {offsets = [0, 0], sizes = [8, 128], strides = [1, 1]} : vector<8x384xf32> to vector<8x128xf32>
    %206 = arith.addf %201, %205 : vector<8x128xf32>
    %207 = arith.negf %206 : vector<8x128xf32>
    %208 = math.exp %207 : vector<8x128xf32>
    %cst_39 = arith.constant 1.000000e+00 : f32
    %209 = vector.broadcast %cst_39 : f32 to vector<8x128xf32>
    %210 = arith.addf %209, %208 : vector<8x128xf32>
    %211 = arith.divf %209, %210 : vector<8x128xf32>
    %212 = vector.extract_strided_slice %204 {offsets = [0, 128], sizes = [8, 128], strides = [1, 1]} : vector<8x384xf32> to vector<8x128xf32>
    %213 = arith.addf %202, %212 : vector<8x128xf32>
    %214 = arith.negf %213 : vector<8x128xf32>
    %215 = math.exp %214 : vector<8x128xf32>
    %cst_40 = arith.constant 1.000000e+00 : f32
    %216 = vector.broadcast %cst_40 : f32 to vector<8x128xf32>
    %217 = arith.addf %216, %215 : vector<8x128xf32>
    %218 = arith.divf %216, %217 : vector<8x128xf32>
    %219 = vector.extract_strided_slice %204 {offsets = [0, 256], sizes = [8, 128], strides = [1, 1]} : vector<8x384xf32> to vector<8x128xf32>
    %220 = arith.addf %219, %10 : vector<8x128xf32>
    %221 = arith.mulf %211, %220 : vector<8x128xf32>
    %222 = arith.addf %203, %221 : vector<8x128xf32>
    %223 = math.tanh %222 : vector<8x128xf32>
    %cst_41 = arith.constant 1.000000e+00 : f32
    %224 = vector.broadcast %cst_41 : f32 to vector<8x128xf32>
    %225 = arith.subf %224, %218 : vector<8x128xf32>
    %226 = arith.mulf %225, %223 : vector<8x128xf32>
    %227 = arith.mulf %218, %197 : vector<8x128xf32>
    %228 = arith.addf %226, %227 : vector<8x128xf32>
    %229 = vector.extract_strided_slice %7 {offsets = [32, 384], sizes = [8, 128], strides = [1, 1]} : vector<64x768xf32> to vector<8x128xf32>
    %230 = vector.extract_strided_slice %7 {offsets = [32, 512], sizes = [8, 128], strides = [1, 1]} : vector<64x768xf32> to vector<8x128xf32>
    %231 = vector.extract_strided_slice %7 {offsets = [32, 640], sizes = [8, 128], strides = [1, 1]} : vector<64x768xf32> to vector<8x128xf32>
    %cst_42 = arith.constant dense<0.000000e+00> : vector<8x384xf32>
    %232 = tpu.matmul %200, %9, %cst_42 {dimension_numbers = #tpu.dot_dimension_numbers<[1], [0], [0], [1], [0, 0, 1, 1], [], []>} : vector<8x128xf32>, vector<128x384xf32>, vector<8x384xf32> -> vector<8x384xf32>
    %233 = vector.extract_strided_slice %232 {offsets = [0, 0], sizes = [8, 128], strides = [1, 1]} : vector<8x384xf32> to vector<8x128xf32>
    %234 = arith.addf %229, %233 : vector<8x128xf32>
    %235 = arith.negf %234 : vector<8x128xf32>
    %236 = math.exp %235 : vector<8x128xf32>
    %cst_43 = arith.constant 1.000000e+00 : f32
    %237 = vector.broadcast %cst_43 : f32 to vector<8x128xf32>
    %238 = arith.addf %237, %236 : vector<8x128xf32>
    %239 = arith.divf %237, %238 : vector<8x128xf32>
    %240 = vector.extract_strided_slice %232 {offsets = [0, 128], sizes = [8, 128], strides = [1, 1]} : vector<8x384xf32> to vector<8x128xf32>
    %241 = arith.addf %230, %240 : vector<8x128xf32>
    %242 = arith.negf %241 : vector<8x128xf32>
    %243 = math.exp %242 : vector<8x128xf32>
    %cst_44 = arith.constant 1.000000e+00 : f32
    %244 = vector.broadcast %cst_44 : f32 to vector<8x128xf32>
    %245 = arith.addf %244, %243 : vector<8x128xf32>
    %246 = arith.divf %244, %245 : vector<8x128xf32>
    %247 = vector.extract_strided_slice %232 {offsets = [0, 256], sizes = [8, 128], strides = [1, 1]} : vector<8x384xf32> to vector<8x128xf32>
    %248 = arith.addf %247, %11 : vector<8x128xf32>
    %249 = arith.mulf %239, %248 : vector<8x128xf32>
    %250 = arith.addf %231, %249 : vector<8x128xf32>
    %251 = math.tanh %250 : vector<8x128xf32>
    %cst_45 = arith.constant 1.000000e+00 : f32
    %252 = vector.broadcast %cst_45 : f32 to vector<8x128xf32>
    %253 = arith.subf %252, %246 : vector<8x128xf32>
    %254 = arith.mulf %253, %251 : vector<8x128xf32>
    %255 = arith.mulf %246, %200 : vector<8x128xf32>
    %256 = arith.addf %254, %255 : vector<8x128xf32>
    %c3_i32 = arith.constant 3 : i32
    %257 = vector.broadcast %c3_i32 : i32 to vector<8x128xi32>
    %258 = arith.cmpi sgt, %12, %257 : vector<8x128xi32>
    %259 = arith.select %258, %228, %197 : vector<8x128xi1>, vector<8x128xf32>
    %c4_i32 = arith.constant 4 : i32
    %260 = vector.broadcast %c4_i32 : i32 to vector<8x128xi32>
    %261 = arith.cmpi sgt, %12, %260 : vector<8x128xi32>
    %262 = arith.select %261, %256, %200 : vector<8x128xi1>, vector<8x128xf32>
    %263 = vector.extract_strided_slice %7 {offsets = [32, 0], sizes = [8, 128], strides = [1, 1]} : vector<64x768xf32> to vector<8x128xf32>
    %264 = vector.extract_strided_slice %7 {offsets = [32, 128], sizes = [8, 128], strides = [1, 1]} : vector<64x768xf32> to vector<8x128xf32>
    %265 = vector.extract_strided_slice %7 {offsets = [32, 256], sizes = [8, 128], strides = [1, 1]} : vector<64x768xf32> to vector<8x128xf32>
    %cst_46 = arith.constant dense<0.000000e+00> : vector<8x384xf32>
    %266 = tpu.matmul %259, %8, %cst_46 {dimension_numbers = #tpu.dot_dimension_numbers<[1], [0], [0], [1], [0, 0, 1, 1], [], []>} : vector<8x128xf32>, vector<128x384xf32>, vector<8x384xf32> -> vector<8x384xf32>
    %267 = vector.extract_strided_slice %266 {offsets = [0, 0], sizes = [8, 128], strides = [1, 1]} : vector<8x384xf32> to vector<8x128xf32>
    %268 = arith.addf %263, %267 : vector<8x128xf32>
    %269 = arith.negf %268 : vector<8x128xf32>
    %270 = math.exp %269 : vector<8x128xf32>
    %cst_47 = arith.constant 1.000000e+00 : f32
    %271 = vector.broadcast %cst_47 : f32 to vector<8x128xf32>
    %272 = arith.addf %271, %270 : vector<8x128xf32>
    %273 = arith.divf %271, %272 : vector<8x128xf32>
    %274 = vector.extract_strided_slice %266 {offsets = [0, 128], sizes = [8, 128], strides = [1, 1]} : vector<8x384xf32> to vector<8x128xf32>
    %275 = arith.addf %264, %274 : vector<8x128xf32>
    %276 = arith.negf %275 : vector<8x128xf32>
    %277 = math.exp %276 : vector<8x128xf32>
    %cst_48 = arith.constant 1.000000e+00 : f32
    %278 = vector.broadcast %cst_48 : f32 to vector<8x128xf32>
    %279 = arith.addf %278, %277 : vector<8x128xf32>
    %280 = arith.divf %278, %279 : vector<8x128xf32>
    %281 = vector.extract_strided_slice %266 {offsets = [0, 256], sizes = [8, 128], strides = [1, 1]} : vector<8x384xf32> to vector<8x128xf32>
    %282 = arith.addf %281, %10 : vector<8x128xf32>
    %283 = arith.mulf %273, %282 : vector<8x128xf32>
    %284 = arith.addf %265, %283 : vector<8x128xf32>
    %285 = math.tanh %284 : vector<8x128xf32>
    %cst_49 = arith.constant 1.000000e+00 : f32
    %286 = vector.broadcast %cst_49 : f32 to vector<8x128xf32>
    %287 = arith.subf %286, %280 : vector<8x128xf32>
    %288 = arith.mulf %287, %285 : vector<8x128xf32>
    %289 = arith.mulf %280, %259 : vector<8x128xf32>
    %290 = arith.addf %288, %289 : vector<8x128xf32>
    %291 = vector.extract_strided_slice %7 {offsets = [24, 384], sizes = [8, 128], strides = [1, 1]} : vector<64x768xf32> to vector<8x128xf32>
    %292 = vector.extract_strided_slice %7 {offsets = [24, 512], sizes = [8, 128], strides = [1, 1]} : vector<64x768xf32> to vector<8x128xf32>
    %293 = vector.extract_strided_slice %7 {offsets = [24, 640], sizes = [8, 128], strides = [1, 1]} : vector<64x768xf32> to vector<8x128xf32>
    %cst_50 = arith.constant dense<0.000000e+00> : vector<8x384xf32>
    %294 = tpu.matmul %262, %9, %cst_50 {dimension_numbers = #tpu.dot_dimension_numbers<[1], [0], [0], [1], [0, 0, 1, 1], [], []>} : vector<8x128xf32>, vector<128x384xf32>, vector<8x384xf32> -> vector<8x384xf32>
    %295 = vector.extract_strided_slice %294 {offsets = [0, 0], sizes = [8, 128], strides = [1, 1]} : vector<8x384xf32> to vector<8x128xf32>
    %296 = arith.addf %291, %295 : vector<8x128xf32>
    %297 = arith.negf %296 : vector<8x128xf32>
    %298 = math.exp %297 : vector<8x128xf32>
    %cst_51 = arith.constant 1.000000e+00 : f32
    %299 = vector.broadcast %cst_51 : f32 to vector<8x128xf32>
    %300 = arith.addf %299, %298 : vector<8x128xf32>
    %301 = arith.divf %299, %300 : vector<8x128xf32>
    %302 = vector.extract_strided_slice %294 {offsets = [0, 128], sizes = [8, 128], strides = [1, 1]} : vector<8x384xf32> to vector<8x128xf32>
    %303 = arith.addf %292, %302 : vector<8x128xf32>
    %304 = arith.negf %303 : vector<8x128xf32>
    %305 = math.exp %304 : vector<8x128xf32>
    %cst_52 = arith.constant 1.000000e+00 : f32
    %306 = vector.broadcast %cst_52 : f32 to vector<8x128xf32>
    %307 = arith.addf %306, %305 : vector<8x128xf32>
    %308 = arith.divf %306, %307 : vector<8x128xf32>
    %309 = vector.extract_strided_slice %294 {offsets = [0, 256], sizes = [8, 128], strides = [1, 1]} : vector<8x384xf32> to vector<8x128xf32>
    %310 = arith.addf %309, %11 : vector<8x128xf32>
    %311 = arith.mulf %301, %310 : vector<8x128xf32>
    %312 = arith.addf %293, %311 : vector<8x128xf32>
    %313 = math.tanh %312 : vector<8x128xf32>
    %cst_53 = arith.constant 1.000000e+00 : f32
    %314 = vector.broadcast %cst_53 : f32 to vector<8x128xf32>
    %315 = arith.subf %314, %308 : vector<8x128xf32>
    %316 = arith.mulf %315, %313 : vector<8x128xf32>
    %317 = arith.mulf %308, %262 : vector<8x128xf32>
    %318 = arith.addf %316, %317 : vector<8x128xf32>
    %c4_i32_54 = arith.constant 4 : i32
    %319 = vector.broadcast %c4_i32_54 : i32 to vector<8x128xi32>
    %320 = arith.cmpi sgt, %12, %319 : vector<8x128xi32>
    %321 = arith.select %320, %290, %259 : vector<8x128xi1>, vector<8x128xf32>
    %c3_i32_55 = arith.constant 3 : i32
    %322 = vector.broadcast %c3_i32_55 : i32 to vector<8x128xi32>
    %323 = arith.cmpi sgt, %12, %322 : vector<8x128xi32>
    %324 = arith.select %323, %318, %262 : vector<8x128xi1>, vector<8x128xf32>
    %325 = vector.extract_strided_slice %7 {offsets = [40, 0], sizes = [8, 128], strides = [1, 1]} : vector<64x768xf32> to vector<8x128xf32>
    %326 = vector.extract_strided_slice %7 {offsets = [40, 128], sizes = [8, 128], strides = [1, 1]} : vector<64x768xf32> to vector<8x128xf32>
    %327 = vector.extract_strided_slice %7 {offsets = [40, 256], sizes = [8, 128], strides = [1, 1]} : vector<64x768xf32> to vector<8x128xf32>
    %cst_56 = arith.constant dense<0.000000e+00> : vector<8x384xf32>
    %328 = tpu.matmul %321, %8, %cst_56 {dimension_numbers = #tpu.dot_dimension_numbers<[1], [0], [0], [1], [0, 0, 1, 1], [], []>} : vector<8x128xf32>, vector<128x384xf32>, vector<8x384xf32> -> vector<8x384xf32>
    %329 = vector.extract_strided_slice %328 {offsets = [0, 0], sizes = [8, 128], strides = [1, 1]} : vector<8x384xf32> to vector<8x128xf32>
    %330 = arith.addf %325, %329 : vector<8x128xf32>
    %331 = arith.negf %330 : vector<8x128xf32>
    %332 = math.exp %331 : vector<8x128xf32>
    %cst_57 = arith.constant 1.000000e+00 : f32
    %333 = vector.broadcast %cst_57 : f32 to vector<8x128xf32>
    %334 = arith.addf %333, %332 : vector<8x128xf32>
    %335 = arith.divf %333, %334 : vector<8x128xf32>
    %336 = vector.extract_strided_slice %328 {offsets = [0, 128], sizes = [8, 128], strides = [1, 1]} : vector<8x384xf32> to vector<8x128xf32>
    %337 = arith.addf %326, %336 : vector<8x128xf32>
    %338 = arith.negf %337 : vector<8x128xf32>
    %339 = math.exp %338 : vector<8x128xf32>
    %cst_58 = arith.constant 1.000000e+00 : f32
    %340 = vector.broadcast %cst_58 : f32 to vector<8x128xf32>
    %341 = arith.addf %340, %339 : vector<8x128xf32>
    %342 = arith.divf %340, %341 : vector<8x128xf32>
    %343 = vector.extract_strided_slice %328 {offsets = [0, 256], sizes = [8, 128], strides = [1, 1]} : vector<8x384xf32> to vector<8x128xf32>
    %344 = arith.addf %343, %10 : vector<8x128xf32>
    %345 = arith.mulf %335, %344 : vector<8x128xf32>
    %346 = arith.addf %327, %345 : vector<8x128xf32>
    %347 = math.tanh %346 : vector<8x128xf32>
    %cst_59 = arith.constant 1.000000e+00 : f32
    %348 = vector.broadcast %cst_59 : f32 to vector<8x128xf32>
    %349 = arith.subf %348, %342 : vector<8x128xf32>
    %350 = arith.mulf %349, %347 : vector<8x128xf32>
    %351 = arith.mulf %342, %321 : vector<8x128xf32>
    %352 = arith.addf %350, %351 : vector<8x128xf32>
    %353 = vector.extract_strided_slice %7 {offsets = [16, 384], sizes = [8, 128], strides = [1, 1]} : vector<64x768xf32> to vector<8x128xf32>
    %354 = vector.extract_strided_slice %7 {offsets = [16, 512], sizes = [8, 128], strides = [1, 1]} : vector<64x768xf32> to vector<8x128xf32>
    %355 = vector.extract_strided_slice %7 {offsets = [16, 640], sizes = [8, 128], strides = [1, 1]} : vector<64x768xf32> to vector<8x128xf32>
    %cst_60 = arith.constant dense<0.000000e+00> : vector<8x384xf32>
    %356 = tpu.matmul %324, %9, %cst_60 {dimension_numbers = #tpu.dot_dimension_numbers<[1], [0], [0], [1], [0, 0, 1, 1], [], []>} : vector<8x128xf32>, vector<128x384xf32>, vector<8x384xf32> -> vector<8x384xf32>
    %357 = vector.extract_strided_slice %356 {offsets = [0, 0], sizes = [8, 128], strides = [1, 1]} : vector<8x384xf32> to vector<8x128xf32>
    %358 = arith.addf %353, %357 : vector<8x128xf32>
    %359 = arith.negf %358 : vector<8x128xf32>
    %360 = math.exp %359 : vector<8x128xf32>
    %cst_61 = arith.constant 1.000000e+00 : f32
    %361 = vector.broadcast %cst_61 : f32 to vector<8x128xf32>
    %362 = arith.addf %361, %360 : vector<8x128xf32>
    %363 = arith.divf %361, %362 : vector<8x128xf32>
    %364 = vector.extract_strided_slice %356 {offsets = [0, 128], sizes = [8, 128], strides = [1, 1]} : vector<8x384xf32> to vector<8x128xf32>
    %365 = arith.addf %354, %364 : vector<8x128xf32>
    %366 = arith.negf %365 : vector<8x128xf32>
    %367 = math.exp %366 : vector<8x128xf32>
    %cst_62 = arith.constant 1.000000e+00 : f32
    %368 = vector.broadcast %cst_62 : f32 to vector<8x128xf32>
    %369 = arith.addf %368, %367 : vector<8x128xf32>
    %370 = arith.divf %368, %369 : vector<8x128xf32>
    %371 = vector.extract_strided_slice %356 {offsets = [0, 256], sizes = [8, 128], strides = [1, 1]} : vector<8x384xf32> to vector<8x128xf32>
    %372 = arith.addf %371, %11 : vector<8x128xf32>
    %373 = arith.mulf %363, %372 : vector<8x128xf32>
    %374 = arith.addf %355, %373 : vector<8x128xf32>
    %375 = math.tanh %374 : vector<8x128xf32>
    %cst_63 = arith.constant 1.000000e+00 : f32
    %376 = vector.broadcast %cst_63 : f32 to vector<8x128xf32>
    %377 = arith.subf %376, %370 : vector<8x128xf32>
    %378 = arith.mulf %377, %375 : vector<8x128xf32>
    %379 = arith.mulf %370, %324 : vector<8x128xf32>
    %380 = arith.addf %378, %379 : vector<8x128xf32>
    %c5_i32_64 = arith.constant 5 : i32
    %381 = vector.broadcast %c5_i32_64 : i32 to vector<8x128xi32>
    %382 = arith.cmpi sgt, %12, %381 : vector<8x128xi32>
    %383 = arith.select %382, %352, %321 : vector<8x128xi1>, vector<8x128xf32>
    %c2_i32_65 = arith.constant 2 : i32
    %384 = vector.broadcast %c2_i32_65 : i32 to vector<8x128xi32>
    %385 = arith.cmpi sgt, %12, %384 : vector<8x128xi32>
    %386 = arith.select %385, %380, %324 : vector<8x128xi1>, vector<8x128xf32>
    %387 = vector.extract_strided_slice %7 {offsets = [48, 0], sizes = [8, 128], strides = [1, 1]} : vector<64x768xf32> to vector<8x128xf32>
    %388 = vector.extract_strided_slice %7 {offsets = [48, 128], sizes = [8, 128], strides = [1, 1]} : vector<64x768xf32> to vector<8x128xf32>
    %389 = vector.extract_strided_slice %7 {offsets = [48, 256], sizes = [8, 128], strides = [1, 1]} : vector<64x768xf32> to vector<8x128xf32>
    %cst_66 = arith.constant dense<0.000000e+00> : vector<8x384xf32>
    %390 = tpu.matmul %383, %8, %cst_66 {dimension_numbers = #tpu.dot_dimension_numbers<[1], [0], [0], [1], [0, 0, 1, 1], [], []>} : vector<8x128xf32>, vector<128x384xf32>, vector<8x384xf32> -> vector<8x384xf32>
    %391 = vector.extract_strided_slice %390 {offsets = [0, 0], sizes = [8, 128], strides = [1, 1]} : vector<8x384xf32> to vector<8x128xf32>
    %392 = arith.addf %387, %391 : vector<8x128xf32>
    %393 = arith.negf %392 : vector<8x128xf32>
    %394 = math.exp %393 : vector<8x128xf32>
    %cst_67 = arith.constant 1.000000e+00 : f32
    %395 = vector.broadcast %cst_67 : f32 to vector<8x128xf32>
    %396 = arith.addf %395, %394 : vector<8x128xf32>
    %397 = arith.divf %395, %396 : vector<8x128xf32>
    %398 = vector.extract_strided_slice %390 {offsets = [0, 128], sizes = [8, 128], strides = [1, 1]} : vector<8x384xf32> to vector<8x128xf32>
    %399 = arith.addf %388, %398 : vector<8x128xf32>
    %400 = arith.negf %399 : vector<8x128xf32>
    %401 = math.exp %400 : vector<8x128xf32>
    %cst_68 = arith.constant 1.000000e+00 : f32
    %402 = vector.broadcast %cst_68 : f32 to vector<8x128xf32>
    %403 = arith.addf %402, %401 : vector<8x128xf32>
    %404 = arith.divf %402, %403 : vector<8x128xf32>
    %405 = vector.extract_strided_slice %390 {offsets = [0, 256], sizes = [8, 128], strides = [1, 1]} : vector<8x384xf32> to vector<8x128xf32>
    %406 = arith.addf %405, %10 : vector<8x128xf32>
    %407 = arith.mulf %397, %406 : vector<8x128xf32>
    %408 = arith.addf %389, %407 : vector<8x128xf32>
    %409 = math.tanh %408 : vector<8x128xf32>
    %cst_69 = arith.constant 1.000000e+00 : f32
    %410 = vector.broadcast %cst_69 : f32 to vector<8x128xf32>
    %411 = arith.subf %410, %404 : vector<8x128xf32>
    %412 = arith.mulf %411, %409 : vector<8x128xf32>
    %413 = arith.mulf %404, %383 : vector<8x128xf32>
    %414 = arith.addf %412, %413 : vector<8x128xf32>
    %415 = vector.extract_strided_slice %7 {offsets = [8, 384], sizes = [8, 128], strides = [1, 1]} : vector<64x768xf32> to vector<8x128xf32>
    %416 = vector.extract_strided_slice %7 {offsets = [8, 512], sizes = [8, 128], strides = [1, 1]} : vector<64x768xf32> to vector<8x128xf32>
    %417 = vector.extract_strided_slice %7 {offsets = [8, 640], sizes = [8, 128], strides = [1, 1]} : vector<64x768xf32> to vector<8x128xf32>
    %cst_70 = arith.constant dense<0.000000e+00> : vector<8x384xf32>
    %418 = tpu.matmul %386, %9, %cst_70 {dimension_numbers = #tpu.dot_dimension_numbers<[1], [0], [0], [1], [0, 0, 1, 1], [], []>} : vector<8x128xf32>, vector<128x384xf32>, vector<8x384xf32> -> vector<8x384xf32>
    %419 = vector.extract_strided_slice %418 {offsets = [0, 0], sizes = [8, 128], strides = [1, 1]} : vector<8x384xf32> to vector<8x128xf32>
    %420 = arith.addf %415, %419 : vector<8x128xf32>
    %421 = arith.negf %420 : vector<8x128xf32>
    %422 = math.exp %421 : vector<8x128xf32>
    %cst_71 = arith.constant 1.000000e+00 : f32
    %423 = vector.broadcast %cst_71 : f32 to vector<8x128xf32>
    %424 = arith.addf %423, %422 : vector<8x128xf32>
    %425 = arith.divf %423, %424 : vector<8x128xf32>
    %426 = vector.extract_strided_slice %418 {offsets = [0, 128], sizes = [8, 128], strides = [1, 1]} : vector<8x384xf32> to vector<8x128xf32>
    %427 = arith.addf %416, %426 : vector<8x128xf32>
    %428 = arith.negf %427 : vector<8x128xf32>
    %429 = math.exp %428 : vector<8x128xf32>
    %cst_72 = arith.constant 1.000000e+00 : f32
    %430 = vector.broadcast %cst_72 : f32 to vector<8x128xf32>
    %431 = arith.addf %430, %429 : vector<8x128xf32>
    %432 = arith.divf %430, %431 : vector<8x128xf32>
    %433 = vector.extract_strided_slice %418 {offsets = [0, 256], sizes = [8, 128], strides = [1, 1]} : vector<8x384xf32> to vector<8x128xf32>
    %434 = arith.addf %433, %11 : vector<8x128xf32>
    %435 = arith.mulf %425, %434 : vector<8x128xf32>
    %436 = arith.addf %417, %435 : vector<8x128xf32>
    %437 = math.tanh %436 : vector<8x128xf32>
    %cst_73 = arith.constant 1.000000e+00 : f32
    %438 = vector.broadcast %cst_73 : f32 to vector<8x128xf32>
    %439 = arith.subf %438, %432 : vector<8x128xf32>
    %440 = arith.mulf %439, %437 : vector<8x128xf32>
    %441 = arith.mulf %432, %386 : vector<8x128xf32>
    %442 = arith.addf %440, %441 : vector<8x128xf32>
    %c6_i32_74 = arith.constant 6 : i32
    %443 = vector.broadcast %c6_i32_74 : i32 to vector<8x128xi32>
    %444 = arith.cmpi sgt, %12, %443 : vector<8x128xi32>
    %445 = arith.select %444, %414, %383 : vector<8x128xi1>, vector<8x128xf32>
    %c1_i32_75 = arith.constant 1 : i32
    %446 = vector.broadcast %c1_i32_75 : i32 to vector<8x128xi32>
    %447 = arith.cmpi sgt, %12, %446 : vector<8x128xi32>
    %448 = arith.select %447, %442, %386 : vector<8x128xi1>, vector<8x128xf32>
    %449 = vector.extract_strided_slice %7 {offsets = [56, 0], sizes = [8, 128], strides = [1, 1]} : vector<64x768xf32> to vector<8x128xf32>
    %450 = vector.extract_strided_slice %7 {offsets = [56, 128], sizes = [8, 128], strides = [1, 1]} : vector<64x768xf32> to vector<8x128xf32>
    %451 = vector.extract_strided_slice %7 {offsets = [56, 256], sizes = [8, 128], strides = [1, 1]} : vector<64x768xf32> to vector<8x128xf32>
    %cst_76 = arith.constant dense<0.000000e+00> : vector<8x384xf32>
    %452 = tpu.matmul %445, %8, %cst_76 {dimension_numbers = #tpu.dot_dimension_numbers<[1], [0], [0], [1], [0, 0, 1, 1], [], []>} : vector<8x128xf32>, vector<128x384xf32>, vector<8x384xf32> -> vector<8x384xf32>
    %453 = vector.extract_strided_slice %452 {offsets = [0, 0], sizes = [8, 128], strides = [1, 1]} : vector<8x384xf32> to vector<8x128xf32>
    %454 = arith.addf %449, %453 : vector<8x128xf32>
    %455 = arith.negf %454 : vector<8x128xf32>
    %456 = math.exp %455 : vector<8x128xf32>
    %cst_77 = arith.constant 1.000000e+00 : f32
    %457 = vector.broadcast %cst_77 : f32 to vector<8x128xf32>
    %458 = arith.addf %457, %456 : vector<8x128xf32>
    %459 = arith.divf %457, %458 : vector<8x128xf32>
    %460 = vector.extract_strided_slice %452 {offsets = [0, 128], sizes = [8, 128], strides = [1, 1]} : vector<8x384xf32> to vector<8x128xf32>
    %461 = arith.addf %450, %460 : vector<8x128xf32>
    %462 = arith.negf %461 : vector<8x128xf32>
    %463 = math.exp %462 : vector<8x128xf32>
    %cst_78 = arith.constant 1.000000e+00 : f32
    %464 = vector.broadcast %cst_78 : f32 to vector<8x128xf32>
    %465 = arith.addf %464, %463 : vector<8x128xf32>
    %466 = arith.divf %464, %465 : vector<8x128xf32>
    %467 = vector.extract_strided_slice %452 {offsets = [0, 256], sizes = [8, 128], strides = [1, 1]} : vector<8x384xf32> to vector<8x128xf32>
    %468 = arith.addf %467, %10 : vector<8x128xf32>
    %469 = arith.mulf %459, %468 : vector<8x128xf32>
    %470 = arith.addf %451, %469 : vector<8x128xf32>
    %471 = math.tanh %470 : vector<8x128xf32>
    %cst_79 = arith.constant 1.000000e+00 : f32
    %472 = vector.broadcast %cst_79 : f32 to vector<8x128xf32>
    %473 = arith.subf %472, %466 : vector<8x128xf32>
    %474 = arith.mulf %473, %471 : vector<8x128xf32>
    %475 = arith.mulf %466, %445 : vector<8x128xf32>
    %476 = arith.addf %474, %475 : vector<8x128xf32>
    %477 = vector.extract_strided_slice %7 {offsets = [0, 384], sizes = [8, 128], strides = [1, 1]} : vector<64x768xf32> to vector<8x128xf32>
    %478 = vector.extract_strided_slice %7 {offsets = [0, 512], sizes = [8, 128], strides = [1, 1]} : vector<64x768xf32> to vector<8x128xf32>
    %479 = vector.extract_strided_slice %7 {offsets = [0, 640], sizes = [8, 128], strides = [1, 1]} : vector<64x768xf32> to vector<8x128xf32>
    %cst_80 = arith.constant dense<0.000000e+00> : vector<8x384xf32>
    %480 = tpu.matmul %448, %9, %cst_80 {dimension_numbers = #tpu.dot_dimension_numbers<[1], [0], [0], [1], [0, 0, 1, 1], [], []>} : vector<8x128xf32>, vector<128x384xf32>, vector<8x384xf32> -> vector<8x384xf32>
    %481 = vector.extract_strided_slice %480 {offsets = [0, 0], sizes = [8, 128], strides = [1, 1]} : vector<8x384xf32> to vector<8x128xf32>
    %482 = arith.addf %477, %481 : vector<8x128xf32>
    %483 = arith.negf %482 : vector<8x128xf32>
    %484 = math.exp %483 : vector<8x128xf32>
    %cst_81 = arith.constant 1.000000e+00 : f32
    %485 = vector.broadcast %cst_81 : f32 to vector<8x128xf32>
    %486 = arith.addf %485, %484 : vector<8x128xf32>
    %487 = arith.divf %485, %486 : vector<8x128xf32>
    %488 = vector.extract_strided_slice %480 {offsets = [0, 128], sizes = [8, 128], strides = [1, 1]} : vector<8x384xf32> to vector<8x128xf32>
    %489 = arith.addf %478, %488 : vector<8x128xf32>
    %490 = arith.negf %489 : vector<8x128xf32>
    %491 = math.exp %490 : vector<8x128xf32>
    %cst_82 = arith.constant 1.000000e+00 : f32
    %492 = vector.broadcast %cst_82 : f32 to vector<8x128xf32>
    %493 = arith.addf %492, %491 : vector<8x128xf32>
    %494 = arith.divf %492, %493 : vector<8x128xf32>
    %495 = vector.extract_strided_slice %480 {offsets = [0, 256], sizes = [8, 128], strides = [1, 1]} : vector<8x384xf32> to vector<8x128xf32>
    %496 = arith.addf %495, %11 : vector<8x128xf32>
    %497 = arith.mulf %487, %496 : vector<8x128xf32>
    %498 = arith.addf %479, %497 : vector<8x128xf32>
    %499 = math.tanh %498 : vector<8x128xf32>
    %cst_83 = arith.constant 1.000000e+00 : f32
    %500 = vector.broadcast %cst_83 : f32 to vector<8x128xf32>
    %501 = arith.subf %500, %494 : vector<8x128xf32>
    %502 = arith.mulf %501, %499 : vector<8x128xf32>
    %503 = arith.mulf %494, %448 : vector<8x128xf32>
    %504 = arith.addf %502, %503 : vector<8x128xf32>
    %c7_i32_84 = arith.constant 7 : i32
    %505 = vector.broadcast %c7_i32_84 : i32 to vector<8x128xi32>
    %506 = arith.cmpi sgt, %12, %505 : vector<8x128xi32>
    %507 = arith.select %506, %476, %445 : vector<8x128xi1>, vector<8x128xf32>
    %c0_i32_85 = arith.constant 0 : i32
    %508 = vector.broadcast %c0_i32_85 : i32 to vector<8x128xi32>
    %509 = arith.cmpi sgt, %12, %508 : vector<8x128xi32>
    %510 = arith.select %509, %504, %448 : vector<8x128xi1>, vector<8x128xf32>
    %cst_86 = arith.constant 0.000000e+00 : f32
    %511 = vector.broadcast %cst_86 : f32 to vector<8x128xf32>
    %512 = arith.maximumf %507, %511 : vector<8x128xf32>
    %cst_87 = arith.constant 0.000000e+00 : f32
    %513 = vector.broadcast %cst_87 : f32 to vector<8x128xf32>
    %514 = arith.maximumf %510, %513 : vector<8x128xf32>
    %c0_88 = arith.constant 0 : index
    %c0_89 = arith.constant 0 : index
    %515 = vector.load %arg6[%c0_88, %c0_89] : memref<256x128xf32, #tpu.memory_space<vmem>>, vector<256x128xf32>
    %516 = vector.extract_strided_slice %515 {offsets = [0, 0], sizes = [128, 128], strides = [1, 1]} : vector<256x128xf32> to vector<128x128xf32>
    %cst_90 = arith.constant dense<0.000000e+00> : vector<8x128xf32>
    %517 = tpu.matmul %512, %516, %cst_90 {dimension_numbers = #tpu.dot_dimension_numbers<[1], [0], [0], [1], [0, 0, 1, 1], [], []>} : vector<8x128xf32>, vector<128x128xf32>, vector<8x128xf32> -> vector<8x128xf32>
    %518 = vector.extract_strided_slice %515 {offsets = [128, 0], sizes = [128, 128], strides = [1, 1]} : vector<256x128xf32> to vector<128x128xf32>
    %cst_91 = arith.constant dense<0.000000e+00> : vector<8x128xf32>
    %519 = tpu.matmul %514, %518, %cst_91 {dimension_numbers = #tpu.dot_dimension_numbers<[1], [0], [0], [1], [0, 0, 1, 1], [], []>} : vector<8x128xf32>, vector<128x128xf32>, vector<8x128xf32> -> vector<8x128xf32>
    %520 = arith.addf %517, %519 : vector<8x128xf32>
    %c0_92 = arith.constant 0 : index
    %c0_93 = arith.constant 0 : index
    %521 = vector.load %arg7[%c0_92, %c0_93] : memref<8x128xf32, #tpu.memory_space<vmem>>, vector<8x128xf32>
    %522 = arith.addf %520, %521 : vector<8x128xf32>
    %c0_94 = arith.constant 0 : index
    %c0_95 = arith.constant 0 : index
    %523 = vector.load %arg8[%c0_94, %c0_95] : memref<8x128xf32, #tpu.memory_space<vmem>>, vector<8x128xf32>
    tpu.vector_store %arg8[%c0_94, %c0_95], %522 {strides = array<i32>} : memref<8x128xf32, #tpu.memory_space<vmem>>, vector<8x128xf32>,
    return
  }
}

</mosaic_0001>

<llo_original>
// kernel: tpu_custom_call.1
$region0: #{tpu_custom_call.1}
  #allocation0 [shape = 'u32[]', space=smem, size = 0x4, offset = 0x4, fixed_abs, tag = 'smem constant byte address 0x4 - core index']
  #allocation1 [shape = 'u32[144,128]{1,0:T(1,128)}', space=vmem, size = 0x12000, scoped, tag = 'internal scratch']
  %s0 = inlined_call_operand.vmem [shape: s32[64,1], index: 0, kind: input, shape index: {}]
  %s1 = inlined_call_operand.vmem [shape: s32[8,128], index: 1, kind: input, shape index: {}]
  %s2 = inlined_call_operand.hbm [shape: f32[128,768], index: 2, kind: input, shape index: {}]
  %s3 = inlined_call_operand.hbm [shape: f32[128,384], index: 3, kind: input, shape index: {}]
  %s4 = inlined_call_operand.hbm [shape: f32[128,384], index: 4, kind: input, shape index: {}]
  %s5 = inlined_call_operand.vmem [shape: f32[8,256], index: 5, kind: input, shape index: {}]
  %s6 = inlined_call_operand.hbm [shape: f32[256,128], index: 6, kind: input, shape index: {}]
  %s7 = inlined_call_operand.vmem [shape: f32[8,128], index: 7, kind: input, shape index: {}]
  %s8 = inlined_call_operand.hbm [shape: f32[8,128], index: 8, kind: output, shape index: {}]
  %s9 = sld [smem:[#allocation0]]
  $region58: #{tpu_custom_call.1} parent=0
    _
  %s11 = ssub.s32 1, %s9
  %s12 = scalar_select 0, %s11, %s9
  $region1: #{tpu_custom_call.1} parent=0
    #allocation2 [shape = 'u8[393216]{0}', space=vmem, size = 0x60000, scoped, tag = 'input window, operand 2, single buffered']
    #allocation3 [shape = 's32[1]{0}', space=sflag, size = 0x4, scoped, tag = 'scoped memory for tpu_custom_call.1']
    #allocation4 [shape = 's32[1]{0}', space=sflag, size = 0x4, scoped, tag = 'scoped memory for tpu_custom_call.1']
    #allocation5 [shape = 'u8[196608]{0}', space=vmem, size = 0x30000, scoped, tag = 'input window, operand 3, single buffered']
    #allocation6 [shape = 's32[1]{0}', space=sflag, size = 0x4, scoped, tag = 'scoped memory for tpu_custom_call.1']
    #allocation7 [shape = 'u8[196608]{0}', space=vmem, size = 0x30000, scoped, tag = 'input window, operand 4, single buffered']
    #allocation8 [shape = 'u8[131072]{0}', space=vmem, size = 0x20000, scoped, tag = 'input window, operand 6, single buffered']
    #allocation9 [shape = 's32[1]{0}', space=sflag, size = 0x4, scoped, tag = 'scoped memory for tpu_custom_call.1']
    #allocation10 [shape = 'u8[4096]{0}', space=vmem, size = 0x1000, scoped, tag = 'output window, operand 0, single buffered']
    %13 = vsyncpa [#allocation3], 0
    %14 = vsyncpa [#allocation6], 0
    %15 = vsyncpa [#allocation9], 0
    %16 = vsyncpa [#allocation4], 0
    // Predicated region
    $region2: #{tpu_custom_call.1} parent=1 // pred_check
      _
    $region3: #{tpu_custom_call.1} parent=1 // pred_check_branch
      %18 = sbr.rel (0) target = $region5
    $region4: #{tpu_custom_call.1} parent=1 // pred_region
      _
    $region5: #{tpu_custom_call.1} parent=1 // pred_fallthru
      _
    // Predicated region
    $region6: #{tpu_custom_call.1} parent=1 // pred_check
      _
    $region7: #{tpu_custom_call.1} parent=1 // pred_check_branch
      %20 = sbr.rel (0) target = $region9
    $region8: #{tpu_custom_call.1} parent=1 // pred_region
      _
    $region9: #{tpu_custom_call.1} parent=1 // pred_fallthru
      _
    // Predicated region
    $region10: #{tpu_custom_call.1} parent=1 // pred_check
      _
    $region11: #{tpu_custom_call.1} parent=1 // pred_check_branch
      %22 = sbr.rel (0) target = $region13
    $region12: #{tpu_custom_call.1} parent=1 // pred_region
      %s24 = ssub.s32 12288, 12288
      %25 = vsyncadd [#allocation3], %s24
      %s26 = sshll.u32 [#allocation2], 4
      %s27 = int_to_ptr.vmem [resolvable:$true] %s26
      %32 = dma.hbm_to_vmem [thread:$0]  %s2, 12288, %s27, [#allocation3], 768, 768, 48
    $region13: #{tpu_custom_call.1} parent=1 // pred_fallthru
      _
    // Predicated region
    $region14: #{tpu_custom_call.1} parent=1 // pred_check
      _
    $region15: #{tpu_custom_call.1} parent=1 // pred_check_branch
      %34 = sbr.rel (0) target = $region17
    $region16: #{tpu_custom_call.1} parent=1 // pred_region
      %s36 = ssub.s32 6144, 6144
      %37 = vsyncadd [#allocation6], %s36
      %s38 = sshll.u32 [#allocation5], 4
      %s39 = int_to_ptr.vmem [resolvable:$true] %s38
      %44 = dma.hbm_to_vmem [thread:$0]  %s3, 6144, %s39, [#allocation6], 384, 384, 24
    $region17: #{tpu_custom_call.1} parent=1 // pred_fallthru
      _
    // Predicated region
    $region18: #{tpu_custom_call.1} parent=1 // pred_check
      _
    $region19: #{tpu_custom_call.1} parent=1 // pred_check_branch
      %46 = sbr.rel (0) target = $region21
    $region20: #{tpu_custom_call.1} parent=1 // pred_region
      %s48 = ssub.s32 6144, 6144
      %49 = vsyncadd [#allocation6], %s48
      %s50 = sshll.u32 [#allocation7], 4
      %s51 = int_to_ptr.vmem [resolvable:$true] %s50
      %56 = dma.hbm_to_vmem [thread:$0]  %s4, 6144, %s51, [#allocation6], 384, 384, 24
    $region21: #{tpu_custom_call.1} parent=1 // pred_fallthru
      _
    // Predicated region
    $region22: #{tpu_custom_call.1} parent=1 // pred_check
      _
    $region23: #{tpu_custom_call.1} parent=1 // pred_check_branch
      %58 = sbr.rel (0) target = $region25
    $region24: #{tpu_custom_call.1} parent=1 // pred_region
      _
    $region25: #{tpu_custom_call.1} parent=1 // pred_fallthru
      _
    // Predicated region
    $region26: #{tpu_custom_call.1} parent=1 // pred_check
      _
    $region27: #{tpu_custom_call.1} parent=1 // pred_check_branch
      %60 = sbr.rel (0) target = $region29
    $region28: #{tpu_custom_call.1} parent=1 // pred_region
      %s62 = ssub.s32 4096, 4096
      %63 = vsyncadd [#allocation9], %s62
      %s64 = sshll.u32 [#allocation8], 4
      %s65 = int_to_ptr.vmem [resolvable:$true] %s64
      %70 = dma.hbm_to_vmem [thread:$0]  %s6, 4096, %s65, [#allocation9], 128, 128, 8
    $region29: #{tpu_custom_call.1} parent=1 // pred_fallthru
      _
    // Predicated region
    $region30: #{tpu_custom_call.1} parent=1 // pred_check
      _
    $region31: #{tpu_custom_call.1} parent=1 // pred_check_branch
      %72 = sbr.rel (0) target = $region33
    $region32: #{tpu_custom_call.1} parent=1 // pred_region
      _
    $region33: #{tpu_custom_call.1} parent=1 // pred_fallthru
      _
    // Predicated region
    $region34: #{tpu_custom_call.1} parent=1 // pred_check
      _
    $region35: #{tpu_custom_call.1} parent=1 // pred_check_branch
      %74 = sbr.rel (0) target = $region37
    $region36: #{tpu_custom_call.1} parent=1 // pred_region
      %75 = dma.done [#allocation3], 12288
    $region37: #{tpu_custom_call.1} parent=1 // pred_fallthru
      _
    // Predicated region
    $region38: #{tpu_custom_call.1} parent=1 // pred_check
      _
    $region39: #{tpu_custom_call.1} parent=1 // pred_check_branch
      %77 = sbr.rel (0) target = $region41
    $region40: #{tpu_custom_call.1} parent=1 // pred_region
      %78 = dma.done [#allocation6], 6144
    $region41: #{tpu_custom_call.1} parent=1 // pred_fallthru
      _
    // Predicated region
    $region42: #{tpu_custom_call.1} parent=1 // pred_check
      _
    $region43: #{tpu_custom_call.1} parent=1 // pred_check_branch
      %80 = sbr.rel (0) target = $region45
    $region44: #{tpu_custom_call.1} parent=1 // pred_region
      %81 = dma.done [#allocation6], 6144
    $region45: #{tpu_custom_call.1} parent=1 // pred_fallthru
      _
    // Predicated region
    $region46: #{tpu_custom_call.1} parent=1 // pred_check
      _
    $region47: #{tpu_custom_call.1} parent=1 // pred_check_branch
      %83 = sbr.rel (0) target = $region49
    $region48: #{tpu_custom_call.1} parent=1 // pred_region
      %84 = dma.done [#allocation9], 4096
    $region49: #{tpu_custom_call.1} parent=1 // pred_fallthru
      _
    %v85 = vld [vmem:[%s0] sm:$0xff]
    %v86 = vld [vmem:[%s0 + $0x8] sm:$0xff]
    %v87 = vld [vmem:[%s0 + $0x10] sm:$0xff]
    %v88 = vld [vmem:[%s0 + $0x18] sm:$0xff]
    %v89 = vld [vmem:[%s0 + $0x20] sm:$0xff]
    %v90 = vld [vmem:[%s0 + $0x28] sm:$0xff]
    %v91 = vld [vmem:[%s0 + $0x30] sm:$0xff]
    %v92 = vld [vmem:[%s0 + $0x38] sm:$0xff]
    %v93 = vlaneseq
    %v94 = vand.u32 %v93, 127
    %95 = vset.pattern.permute.xlu0 0
    %96 = vperm.xlu0 %95, %v85
    %v97 = vpop.permute.xlu0 %96
    %98 = vset.pattern.permute.xlu0 0
    %99 = vperm.xlu0 %98, %v86
    %v100 = vpop.permute.xlu0 %99
    %101 = vset.pattern.permute.xlu0 0
    %102 = vperm.xlu0 %101, %v87
    %v103 = vpop.permute.xlu0 %102
    %104 = vset.pattern.permute.xlu0 0
    %105 = vperm.xlu0 %104, %v88
    %v106 = vpop.permute.xlu0 %105
    %107 = vset.pattern.permute.xlu0 0
    %108 = vperm.xlu0 %107, %v89
    %v109 = vpop.permute.xlu0 %108
    %110 = vset.pattern.permute.xlu0 0
    %111 = vperm.xlu0 %110, %v90
    %v112 = vpop.permute.xlu0 %111
    %113 = vset.pattern.permute.xlu0 0
    %114 = vperm.xlu0 %113, %v91
    %v115 = vpop.permute.xlu0 %114
    %116 = vset.pattern.permute.xlu0 0
    %117 = vperm.xlu0 %116, %v92
    %v118 = vpop.permute.xlu0 %117
    %vm119 = vcmp.eq.s32.totalorder %v97, %v94
    %vm120 = vcmp.eq.s32.totalorder %v100, %v94
    %vm121 = vcmp.eq.s32.totalorder %v103, %v94
    %vm122 = vcmp.eq.s32.totalorder %v106, %v94
    %vm123 = vcmp.eq.s32.totalorder %v109, %v94
    %vm124 = vcmp.eq.s32.totalorder %v112, %v94
    %vm125 = vcmp.eq.s32.totalorder %v115, %v94
    %vm126 = vcmp.eq.s32.totalorder %v118, %v94
    %v127 = vsel %vm119, 1, 0
    %v128 = vsel %vm120, 1, 0
    %v129 = vsel %vm121, 1, 0
    %v130 = vsel %vm122, 1, 0
    %v131 = vsel %vm123, 1, 0
    %v132 = vsel %vm124, 1, 0
    %v133 = vsel %vm125, 1, 0
    %v134 = vsel %vm126, 1, 0
    %v135 = vcvt.s32.f32 %v127
    %v136 = vcvt.s32.f32 %v128
    %v137 = vcvt.s32.f32 %v129
    %v138 = vcvt.s32.f32 %v130
    %v139 = vcvt.s32.f32 %v131
    %v140 = vcvt.s32.f32 %v132
    %v141 = vcvt.s32.f32 %v133
    %v142 = vcvt.s32.f32 %v134
    %v143 = vld [vmem:[#allocation2] sm:$0xff]
    %v144 = vld [vmem:[#allocation2 + $0x8] sm:$0xff]
    %v145 = vld [vmem:[#allocation2 + $0x10] sm:$0xff]
    %v146 = vld [vmem:[#allocation2 + $0x18] sm:$0xff]
    %v147 = vld [vmem:[#allocation2 + $0x20] sm:$0xff]
    %v148 = vld [vmem:[#allocation2 + $0x28] sm:$0xff]
    %v149 = vld [vmem:[#allocation2 + $0x30] sm:$0xff]
    %v150 = vld [vmem:[#allocation2 + $0x38] sm:$0xff]
    %v151 = vld [vmem:[#allocation2 + $0x40] sm:$0xff]
    %v152 = vld [vmem:[#allocation2 + $0x48] sm:$0xff]
    %v153 = vld [vmem:[#allocation2 + $0x50] sm:$0xff]
    %v154 = vld [vmem:[#allocation2 + $0x58] sm:$0xff]
    %v155 = vld [vmem:[#allocation2 + $0x60] sm:$0xff]
    %v156 = vld [vmem:[#allocation2 + $0x68] sm:$0xff]
    %v157 = vld [vmem:[#allocation2 + $0x70] sm:$0xff]
    %v158 = vld [vmem:[#allocation2 + $0x78] sm:$0xff]
    %v159 = vld [vmem:[#allocation2 + $0x80] sm:$0xff]
    %v160 = vld [vmem:[#allocation2 + $0x88] sm:$0xff]
    %v161 = vld [vmem:[#allocation2 + $0x90] sm:$0xff]
    %v162 = vld [vmem:[#allocation2 + $0x98] sm:$0xff]
    %v163 = vld [vmem:[#allocation2 + $0xa0] sm:$0xff]
    %v164 = vld [vmem:[#allocation2 + $0xa8] sm:$0xff]
    %v165 = vld [vmem:[#allocation2 + $0xb0] sm:$0xff]
    %v166 = vld [vmem:[#allocation2 + $0xb8] sm:$0xff]
    %v167 = vld [vmem:[#allocation2 + $0xc0] sm:$0xff]
    %v168 = vld [vmem:[#allocation2 + $0xc8] sm:$0xff]
    %v169 = vld [vmem:[#allocation2 + $0xd0] sm:$0xff]
    %v170 = vld [vmem:[#allocation2 + $0xd8] sm:$0xff]
    %v171 = vld [vmem:[#allocation2 + $0xe0] sm:$0xff]
    %v172 = vld [vmem:[#allocation2 + $0xe8] sm:$0xff]
    %v173 = vld [vmem:[#allocation2 + $0xf0] sm:$0xff]
    %v174 = vld [vmem:[#allocation2 + $0xf8] sm:$0xff]
    %v175 = vld [vmem:[#allocation2 + $0x100] sm:$0xff]
    %v176 = vld [vmem:[#allocation2 + $0x108] sm:$0xff]
    %v177 = vld [vmem:[#allocation2 + $0x110] sm:$0xff]
    %v178 = vld [vmem:[#allocation2 + $0x118] sm:$0xff]
    %v179 = vld [vmem:[#allocation2 + $0x120] sm:$0xff]
    %v180 = vld [vmem:[#allocation2 + $0x128] sm:$0xff]
    %v181 = vld [vmem:[#allocation2 + $0x130] sm:$0xff]
    %v182 = vld [vmem:[#allocation2 + $0x138] sm:$0xff]
    %v183 = vld [vmem:[#allocation2 + $0x140] sm:$0xff]
    %v184 = vld [vmem:[#allocation2 + $0x148] sm:$0xff]
    %v185 = vld [vmem:[#allocation2 + $0x150] sm:$0xff]
    %v186 = vld [vmem:[#allocation2 + $0x158] sm:$0xff]
    %v187 = vld [vmem:[#allocation2 + $0x160] sm:$0xff]
    %v188 = vld [vmem:[#allocation2 + $0x168] sm:$0xff]
    %v189 = vld [vmem:[#allocation2 + $0x170] sm:$0xff]
    %v190 = vld [vmem:[#allocation2 + $0x178] sm:$0xff]
    %v191 = vld [vmem:[#allocation2 + $0x180] sm:$0xff]
    %v192 = vld [vmem:[#allocation2 + $0x188] sm:$0xff]
    %v193 = vld [vmem:[#allocation2 + $0x190] sm:$0xff]
    %v194 = vld [vmem:[#allocation2 + $0x198] sm:$0xff]
    %v195 = vld [vmem:[#allocation2 + $0x1a0] sm:$0xff]
    %v196 = vld [vmem:[#allocation2 + $0x1a8] sm:$0xff]
    %v197 = vld [vmem:[#allocation2 + $0x1b0] sm:$0xff]
    %v198 = vld [vmem:[#allocation2 + $0x1b8] sm:$0xff]
    %v199 = vld [vmem:[#allocation2 + $0x1c0] sm:$0xff]
    %v200 = vld [vmem:[#allocation2 + $0x1c8] sm:$0xff]
    %v201 = vld [vmem:[#allocation2 + $0x1d0] sm:$0xff]
    %v202 = vld [vmem:[#allocation2 + $0x1d8] sm:$0xff]
    %v203 = vld [vmem:[#allocation2 + $0x1e0] sm:$0xff]
    %v204 = vld [vmem:[#allocation2 + $0x1e8] sm:$0xff]
    %v205 = vld [vmem:[#allocation2 + $0x1f0] sm:$0xff]
    %v206 = vld [vmem:[#allocation2 + $0x1f8] sm:$0xff]
    %v207 = vld [vmem:[#allocation2 + $0x200] sm:$0xff]
    %v208 = vld [vmem:[#allocation2 + $0x208] sm:$0xff]
    %v209 = vld [vmem:[#allocation2 + $0x210] sm:$0xff]
    %v210 = vld [vmem:[#allocation2 + $0x218] sm:$0xff]
    %v211 = vld [vmem:[#allocation2 + $0x220] sm:$0xff]
    %v212 = vld [vmem:[#allocation2 + $0x228] sm:$0xff]
    %v213 = vld [vmem:[#allocation2 + $0x230] sm:$0xff]
    %v214 = vld [vmem:[#allocation2 + $0x238] sm:$0xff]
    %v215 = vld [vmem:[#allocation2 + $0x240] sm:$0xff]
    %v216 = vld [vmem:[#allocation2 + $0x248] sm:$0xff]
    %v217 = vld [vmem:[#allocation2 + $0x250] sm:$0xff]
    %v218 = vld [vmem:[#allocation2 + $0x258] sm:$0xff]
    %v219 = vld [vmem:[#allocation2 + $0x260] sm:$0xff]
    %v220 = vld [vmem:[#allocation2 + $0x268] sm:$0xff]
    %v221 = vld [vmem:[#allocation2 + $0x270] sm:$0xff]
    %v222 = vld [vmem:[#allocation2 + $0x278] sm:$0xff]
    %v223 = vld [vmem:[#allocation2 + $0x280] sm:$0xff]
    %v224 = vld [vmem:[#allocation2 + $0x288] sm:$0xff]
    %v225 = vld [vmem:[#allocation2 + $0x290] sm:$0xff]
    %v226 = vld [vmem:[#allocation2 + $0x298] sm:$0xff]
    %v227 = vld [vmem:[#allocation2 + $0x2a0] sm:$0xff]
    %v228 = vld [vmem:[#allocation2 + $0x2a8] sm:$0xff]
    %v229 = vld [vmem:[#allocation2 + $0x2b0] sm:$0xff]
    %v230 = vld [vmem:[#allocation2 + $0x2b8] sm:$0xff]
    %v231 = vld [vmem:[#allocation2 + $0x2c0] sm:$0xff]
    %v232 = vld [vmem:[#allocation2 + $0x2c8] sm:$0xff]
    %v233 = vld [vmem:[#allocation2 + $0x2d0] sm:$0xff]
    %v234 = vld [vmem:[#allocation2 + $0x2d8] sm:$0xff]
    %v235 = vld [vmem:[#allocation2 + $0x2e0] sm:$0xff]
    %v236 = vld [vmem:[#allocation2 + $0x2e8] sm:$0xff]
    %v237 = vld [vmem:[#allocation2 + $0x2f0] sm:$0xff]
    %v238 = vld [vmem:[#allocation2 + $0x2f8] sm:$0xff]
    %239 = vmatprep.subr.mxu0 %v144
    %240 = vmatpush1.msra.mxu0 %v143
    %241 = vmatprep.subr.mxu0 %v150
    %242 = vmatpush1.msra.mxu0 %v149
    %243 = vmatprep.subr.mxu0 %v156
    %244 = vmatpush1.msra.mxu0 %v155
    %245 = vmatprep.subr.mxu0 %v162
    %246 = vmatpush1.msra.mxu0 %v161
    %247 = vmatprep.subr.mxu0 %v168
    %248 = vmatpush1.msra.mxu0 %v167
    %249 = vmatprep.subr.mxu0 %v174
    %250 = vmatpush1.msra.mxu0 %v173
    %251 = vmatprep.subr.mxu0 %v180
    %252 = vmatpush1.msra.mxu0 %v179
    %253 = vmatprep.subr.mxu0 %v186
    %254 = vmatpush1.msra.mxu0 %v185
    %255 = vmatprep.subr.mxu0 %v192
    %256 = vmatpush1.msra.mxu0 %v191
    %257 = vmatprep.subr.mxu0 %v198
    %258 = vmatpush1.msra.mxu0 %v197
    %259 = vmatprep.subr.mxu0 %v204
    %260 = vmatpush1.msra.mxu0 %v203
    %261 = vmatprep.subr.mxu0 %v210
    %262 = vmatpush1.msra.mxu0 %v209
    %263 = vmatprep.subr.mxu0 %v216
    %264 = vmatpush1.msra.mxu0 %v215
    %265 = vmatprep.subr.mxu0 %v222
    %266 = vmatpush1.msra.mxu0 %v221
    %267 = vmatprep.subr.mxu0 %v228
    %268 = vmatpush1.msra.mxu0 %v227
    %269 = vmatprep.subr.mxu0 %v234
    %270 = vmatpush1.msra.mxu0 %v233
    %271 = vmatprep.subr.mxu0 0.0
    %272 = vmatpush1.msra.mxu0 0.0
    %273 = vmatprep.subr.mxu0 0.0
    %274 = vmatpush1.msra.mxu0 0.0
    %275 = vmatprep.subr.mxu0 0.0
    %276 = vmatpush1.msra.mxu0 0.0
    %277 = vmatprep.subr.mxu0 0.0
    %278 = vmatpush1.msra.mxu0 0.0
    %279 = vmatprep.subr.mxu0 0.0
    %280 = vmatpush1.msra.mxu0 0.0
    %281 = vmatprep.subr.mxu0 0.0
    %282 = vmatpush1.msra.mxu0 0.0
    %283 = vmatprep.subr.mxu0 0.0
    %284 = vmatpush1.msra.mxu0 0.0
    %285 = vmatprep.subr.mxu0 0.0
    %286 = vmatpush1.msra.mxu0 0.0
    %287 = vmatprep.subr.mxu0 0.0
    %288 = vmatpush1.msra.mxu0 0.0
    %289 = vmatprep.subr.mxu0 0.0
    %290 = vmatpush1.msra.mxu0 0.0
    %291 = vmatprep.subr.mxu0 0.0
    %292 = vmatpush1.msra.mxu0 0.0
    %293 = vmatprep.subr.mxu0 0.0
    %294 = vmatpush1.msra.mxu0 0.0
    %295 = vmatprep.subr.mxu0 0.0
    %296 = vmatpush1.msra.mxu0 0.0
    %297 = vmatprep.subr.mxu0 0.0
    %298 = vmatpush1.msra.mxu0 0.0
    %299 = vmatprep.subr.mxu0 0.0
    %300 = vmatpush1.msra.mxu0 0.0
    %301 = vmatprep.subr.mxu0 0.0
    %302 = vmatpush1.msra.mxu0 0.0
    %303 = vmatprep.mubr.f32.mxu0 0.0
    %304 = vmatmul.mubr.f32.gmra.mrb[0].mxu0 %v135
    %v305 = vpop.f32.mrb[0].mxu0
    %v306 = vadd.f32 0.0, %v305
    %v307 = vpop.f32.mrb[0].mxu0
    %v308 = vadd.f32 0.0, %v307
    %309 = vmatprep.mubr.f32.mxu0 0.0
    %310 = vmatmul.mubr.f32.gmra.mrb[0].mxu0 %v136
    %v311 = vpop.f32.mrb[0].mxu0
    %v312 = vadd.f32 0.0, %v311
    %v313 = vpop.f32.mrb[0].mxu0
    %v314 = vadd.f32 0.0, %v313
    %315 = vmatprep.mubr.f32.mxu0 0.0
    %316 = vmatmul.mubr.f32.gmra.mrb[0].mxu0 %v137
    %v317 = vpop.f32.mrb[0].mxu0
    %v318 = vadd.f32 0.0, %v317
    %v319 = vpop.f32.mrb[0].mxu0
    %v320 = vadd.f32 0.0, %v319
    %321 = vmatprep.mubr.f32.mxu0 0.0
    %322 = vmatmul.mubr.f32.gmra.mrb[0].mxu0 %v138
    %v323 = vpop.f32.mrb[0].mxu0
    %v324 = vadd.f32 0.0, %v323
    %v325 = vpop.f32.mrb[0].mxu0
    %v326 = vadd.f32 0.0, %v325
    %327 = vmatprep.mubr.f32.mxu0 0.0
    %328 = vmatmul.mubr.f32.gmra.mrb[0].mxu0 %v139
    %v329 = vpop.f32.mrb[0].mxu0
    %v330 = vadd.f32 0.0, %v329
    %v331 = vpop.f32.mrb[0].mxu0
    %v332 = vadd.f32 0.0, %v331
    %333 = vmatprep.mubr.f32.mxu0 0.0
    %334 = vmatmul.mubr.f32.gmra.mrb[0].mxu0 %v140
    %v335 = vpop.f32.mrb[0].mxu0
    %v336 = vadd.f32 0.0, %v335
    %v337 = vpop.f32.mrb[0].mxu0
    %v338 = vadd.f32 0.0, %v337
    %339 = vmatprep.mubr.f32.mxu0 0.0
    %340 = vmatmul.mubr.f32.gmra.mrb[0].mxu0 %v141
    %v341 = vpop.f32.mrb[0].mxu0
    %v342 = vadd.f32 0.0, %v341
    %v343 = vpop.f32.mrb[0].mxu0
    %v344 = vadd.f32 0.0, %v343
    %345 = vmatprep.mubr.f32.mxu0 0.0
    %346 = vmatmul.mubr.f32.gmra.mrb[0].mxu0 %v142
    %v347 = vpop.f32.mrb[0].mxu0
    %v348 = vadd.f32 0.0, %v347
    %v349 = vpop.f32.mrb[0].mxu0
    %v350 = vadd.f32 0.0, %v349
    %351 = vdwg.mxu0
    %352 = vmatprep.subr.mxu0 %v146
    %353 = vmatpush1.msra.mxu0 %v145
    %354 = vmatprep.subr.mxu0 %v152
    %355 = vmatpush1.msra.mxu0 %v151
    %356 = vmatprep.subr.mxu0 %v158
    %357 = vmatpush1.msra.mxu0 %v157
    %358 = vmatprep.subr.mxu0 %v164
    %359 = vmatpush1.msra.mxu0 %v163
    %360 = vmatprep.subr.mxu0 %v170
    %361 = vmatpush1.msra.mxu0 %v169
    %362 = vmatprep.subr.mxu0 %v176
    %363 = vmatpush1.msra.mxu0 %v175
    %364 = vmatprep.subr.mxu0 %v182
    %365 = vmatpush1.msra.mxu0 %v181
    %366 = vmatprep.subr.mxu0 %v188
    %367 = vmatpush1.msra.mxu0 %v187
    %368 = vmatprep.subr.mxu0 %v194
    %369 = vmatpush1.msra.mxu0 %v193
    %370 = vmatprep.subr.mxu0 %v200
    %371 = vmatpush1.msra.mxu0 %v199
    %372 = vmatprep.subr.mxu0 %v206
    %373 = vmatpush1.msra.mxu0 %v205
    %374 = vmatprep.subr.mxu0 %v212
    %375 = vmatpush1.msra.mxu0 %v211
    %376 = vmatprep.subr.mxu0 %v218
    %377 = vmatpush1.msra.mxu0 %v217
    %378 = vmatprep.subr.mxu0 %v224
    %379 = vmatpush1.msra.mxu0 %v223
    %380 = vmatprep.subr.mxu0 %v230
    %381 = vmatpush1.msra.mxu0 %v229
    %382 = vmatprep.subr.mxu0 %v236
    %383 = vmatpush1.msra.mxu0 %v235
    %384 = vmatprep.subr.mxu0 0.0
    %385 = vmatpush1.msra.mxu0 0.0
    %386 = vmatprep.subr.mxu0 0.0
    %387 = vmatpush1.msra.mxu0 0.0
    %388 = vmatprep.subr.mxu0 0.0
    %389 = vmatpush1.msra.mxu0 0.0
    %390 = vmatprep.subr.mxu0 0.0
    %391 = vmatpush1.msra.mxu0 0.0
    %392 = vmatprep.subr.mxu0 0.0
    %393 = vmatpush1.msra.mxu0 0.0
    %394 = vmatprep.subr.mxu0 0.0
    %395 = vmatpush1.msra.mxu0 0.0
    %396 = vmatprep.subr.mxu0 0.0
    %397 = vmatpush1.msra.mxu0 0.0
    %398 = vmatprep.subr.mxu0 0.0
    %399 = vmatpush1.msra.mxu0 0.0
    %400 = vmatprep.subr.mxu0 0.0
    %401 = vmatpush1.msra.mxu0 0.0
    %402 = vmatprep.subr.mxu0 0.0
    %403 = vmatpush1.msra.mxu0 0.0
    %404 = vmatprep.subr.mxu0 0.0
    %405 = vmatpush1.msra.mxu0 0.0
    %406 = vmatprep.subr.mxu0 0.0
    %407 = vmatpush1.msra.mxu0 0.0
    %408 = vmatprep.subr.mxu0 0.0
    %409 = vmatpush1.msra.mxu0 0.0
    %410 = vmatprep.subr.mxu0 0.0
    %411 = vmatpush1.msra.mxu0 0.0
    %412 = vmatprep.subr.mxu0 0.0
    %413 = vmatpush1.msra.mxu0 0.0
    %414 = vmatprep.subr.mxu0 0.0
    %415 = vmatpush1.msra.mxu0 0.0
    %416 = vmatprep.mubr.f32.mxu0 0.0
    %417 = vmatmul.mubr.f32.gmra.mrb[0].mxu0 %v135
    %v418 = vpop.f32.mrb[0].mxu0
    %v419 = vadd.f32 0.0, %v418
    %v420 = vpop.f32.mrb[0].mxu0
    %v421 = vadd.f32 0.0, %v420
    %422 = vmatprep.mubr.f32.mxu0 0.0
    %423 = vmatmul.mubr.f32.gmra.mrb[0].mxu0 %v136
    %v424 = vpop.f32.mrb[0].mxu0
    %v425 = vadd.f32 0.0, %v424
    %v426 = vpop.f32.mrb[0].mxu0
    %v427 = vadd.f32 0.0, %v426
    %428 = vmatprep.mubr.f32.mxu0 0.0
    %429 = vmatmul.mubr.f32.gmra.mrb[0].mxu0 %v137
    %v430 = vpop.f32.mrb[0].mxu0
    %v431 = vadd.f32 0.0, %v430
    %v432 = vpop.f32.mrb[0].mxu0
    %v433 = vadd.f32 0.0, %v432
    %434 = vmatprep.mubr.f32.mxu0 0.0
    %435 = vmatmul.mubr.f32.gmra.mrb[0].mxu0 %v138
    %v436 = vpop.f32.mrb[0].mxu0
    %v437 = vadd.f32 0.0, %v436
    %v438 = vpop.f32.mrb[0].mxu0
    %v439 = vadd.f32 0.0, %v438
    %440 = vmatprep.mubr.f32.mxu0 0.0
    %441 = vmatmul.mubr.f32.gmra.mrb[0].mxu0 %v139
    %v442 = vpop.f32.mrb[0].mxu0
    %v443 = vadd.f32 0.0, %v442
    %v444 = vpop.f32.mrb[0].mxu0
    %v445 = vadd.f32 0.0, %v444
    %446 = vmatprep.mubr.f32.mxu0 0.0
    %447 = vmatmul.mubr.f32.gmra.mrb[0].mxu0 %v140
    %v448 = vpop.f32.mrb[0].mxu0
    %v449 = vadd.f32 0.0, %v448
    %v450 = vpop.f32.mrb[0].mxu0
    %v451 = vadd.f32 0.0, %v450
    %452 = vmatprep.mubr.f32.mxu0 0.0
    %453 = vmatmul.mubr.f32.gmra.mrb[0].mxu0 %v141
    %v454 = vpop.f32.mrb[0].mxu0
    %v455 = vadd.f32 0.0, %v454
    %v456 = vpop.f32.mrb[0].mxu0
    %v457 = vadd.f32 0.0, %v456
    %458 = vmatprep.mubr.f32.mxu0 0.0
    %459 = vmatmul.mubr.f32.gmra.mrb[0].mxu0 %v142
    %v460 = vpop.f32.mrb[0].mxu0
    %v461 = vadd.f32 0.0, %v460
    %v462 = vpop.f32.mrb[0].mxu0
    %v463 = vadd.f32 0.0, %v462
    %464 = vdwg.mxu0
    %465 = vmatprep.subr.mxu0 %v148
    %466 = vmatpush1.msra.mxu0 %v147
    %467 = vmatprep.subr.mxu0 %v154
    %468 = vmatpush1.msra.mxu0 %v153
    %469 = vmatprep.subr.mxu0 %v160
    %470 = vmatpush1.msra.mxu0 %v159
    %471 = vmatprep.subr.mxu0 %v166
    %472 = vmatpush1.msra.mxu0 %v165
    %473 = vmatprep.subr.mxu0 %v172
    %474 = vmatpush1.msra.mxu0 %v171
    %475 = vmatprep.subr.mxu0 %v178
    %476 = vmatpush1.msra.mxu0 %v177
    %477 = vmatprep.subr.mxu0 %v184
    %478 = vmatpush1.msra.mxu0 %v183
    %479 = vmatprep.subr.mxu0 %v190
    %480 = vmatpush1.msra.mxu0 %v189
    %481 = vmatprep.subr.mxu0 %v196
    %482 = vmatpush1.msra.mxu0 %v195
    %483 = vmatprep.subr.mxu0 %v202
    %484 = vmatpush1.msra.mxu0 %v201
    %485 = vmatprep.subr.mxu0 %v208
    %486 = vmatpush1.msra.mxu0 %v207
    %487 = vmatprep.subr.mxu0 %v214
    %488 = vmatpush1.msra.mxu0 %v213
    %489 = vmatprep.subr.mxu0 %v220
    %490 = vmatpush1.msra.mxu0 %v219
    %491 = vmatprep.subr.mxu0 %v226
    %492 = vmatpush1.msra.mxu0 %v225
    %493 = vmatprep.subr.mxu0 %v232
    %494 = vmatpush1.msra.mxu0 %v231
    %495 = vmatprep.subr.mxu0 %v238
    %496 = vmatpush1.msra.mxu0 %v237
    %497 = vmatprep.subr.mxu0 0.0
    %498 = vmatpush1.msra.mxu0 0.0
    %499 = vmatprep.subr.mxu0 0.0
    %500 = vmatpush1.msra.mxu0 0.0
    %501 = vmatprep.subr.mxu0 0.0
    %502 = vmatpush1.msra.mxu0 0.0
    %503 = vmatprep.subr.mxu0 0.0
    %504 = vmatpush1.msra.mxu0 0.0
    %505 = vmatprep.subr.mxu0 0.0
    %506 = vmatpush1.msra.mxu0 0.0
    %507 = vmatprep.subr.mxu0 0.0
    %508 = vmatpush1.msra.mxu0 0.0
    %509 = vmatprep.subr.mxu0 0.0
    %510 = vmatpush1.msra.mxu0 0.0
    %511 = vmatprep.subr.mxu0 0.0
    %512 = vmatpush1.msra.mxu0 0.0
    %513 = vmatprep.subr.mxu0 0.0
    %514 = vmatpush1.msra.mxu0 0.0
    %515 = vmatprep.subr.mxu0 0.0
    %516 = vmatpush1.msra.mxu0 0.0
    %517 = vmatprep.subr.mxu0 0.0
    %518 = vmatpush1.msra.mxu0 0.0
    %519 = vmatprep.subr.mxu0 0.0
    %520 = vmatpush1.msra.mxu0 0.0
    %521 = vmatprep.subr.mxu0 0.0
    %522 = vmatpush1.msra.mxu0 0.0
    %523 = vmatprep.subr.mxu0 0.0
    %524 = vmatpush1.msra.mxu0 0.0
    %525 = vmatprep.subr.mxu0 0.0
    %526 = vmatpush1.msra.mxu0 0.0
    %527 = vmatprep.subr.mxu0 0.0
    %528 = vmatpush1.msra.mxu0 0.0
    %529 = vmatprep.mubr.f32.mxu0 0.0
    %530 = vmatmul.mubr.f32.gmra.mrb[0].mxu0 %v135
    %v531 = vpop.f32.mrb[0].mxu0
    %v532 = vadd.f32 0.0, %v531
    %v533 = vpop.f32.mrb[0].mxu0
    %v534 = vadd.f32 0.0, %v533
    %535 = vmatprep.mubr.f32.mxu0 0.0
    %536 = vmatmul.mubr.f32.gmra.mrb[0].mxu0 %v136
    %v537 = vpop.f32.mrb[0].mxu0
    %v538 = vadd.f32 0.0, %v537
    %v539 = vpop.f32.mrb[0].mxu0
    %v540 = vadd.f32 0.0, %v539
    %541 = vmatprep.mubr.f32.mxu0 0.0
    %542 = vmatmul.mubr.f32.gmra.mrb[0].mxu0 %v137
    %v543 = vpop.f32.mrb[0].mxu0
    %v544 = vadd.f32 0.0, %v543
    %v545 = vpop.f32.mrb[0].mxu0
    %v546 = vadd.f32 0.0, %v545
    %547 = vmatprep.mubr.f32.mxu0 0.0
    %548 = vmatmul.mubr.f32.gmra.mrb[0].mxu0 %v138
    %v549 = vpop.f32.mrb[0].mxu0
    %v550 = vadd.f32 0.0, %v549
    %v551 = vpop.f32.mrb[0].mxu0
    %v552 = vadd.f32 0.0, %v551
    %553 = vmatprep.mubr.f32.mxu0 0.0
    %554 = vmatmul.mubr.f32.gmra.mrb[0].mxu0 %v139
    %v555 = vpop.f32.mrb[0].mxu0
    %v556 = vadd.f32 0.0, %v555
    %v557 = vpop.f32.mrb[0].mxu0
    %v558 = vadd.f32 0.0, %v557
    %559 = vmatprep.mubr.f32.mxu0 0.0
    %560 = vmatmul.mubr.f32.gmra.mrb[0].mxu0 %v140
    %v561 = vpop.f32.mrb[0].mxu0
    %v562 = vadd.f32 0.0, %v561
    %v563 = vpop.f32.mrb[0].mxu0
    %v564 = vadd.f32 0.0, %v563
    %565 = vmatprep.mubr.f32.mxu0 0.0
    %566 = vmatmul.mubr.f32.gmra.mrb[0].mxu0 %v141
    %v567 = vpop.f32.mrb[0].mxu0
    %v568 = vadd.f32 0.0, %v567
    %v569 = vpop.f32.mrb[0].mxu0
    %v570 = vadd.f32 0.0, %v569
    %571 = vmatprep.mubr.f32.mxu0 0.0
    %572 = vmatmul.mubr.f32.gmra.mrb[0].mxu0 %v142
    %v573 = vpop.f32.mrb[0].mxu0
    %v574 = vadd.f32 0.0, %v573
    %v575 = vpop.f32.mrb[0].mxu0
    %v576 = vadd.f32 0.0, %v575
    %577 = vdwg.mxu0
    %v578 = vld [vmem:[#allocation5] sm:$0xff]
    %v579 = vld [vmem:[#allocation5 + $0x8] sm:$0xff]
    %v580 = vld [vmem:[#allocation5 + $0x10] sm:$0xff]
    %v581 = vld [vmem:[#allocation5 + $0x18] sm:$0xff]
    %v582 = vld [vmem:[#allocation5 + $0x20] sm:$0xff]
    %v583 = vld [vmem:[#allocation5 + $0x28] sm:$0xff]
    %v584 = vld [vmem:[#allocation5 + $0x30] sm:$0xff]
    %v585 = vld [vmem:[#allocation5 + $0x38] sm:$0xff]
    %v586 = vld [vmem:[#allocation5 + $0x40] sm:$0xff]
    %v587 = vld [vmem:[#allocation5 + $0x48] sm:$0xff]
    %v588 = vld [vmem:[#allocation5 + $0x50] sm:$0xff]
    %v589 = vld [vmem:[#allocation5 + $0x58] sm:$0xff]
    %v590 = vld [vmem:[#allocation5 + $0x60] sm:$0xff]
    %v591 = vld [vmem:[#allocation5 + $0x68] sm:$0xff]
    %v592 = vld [vmem:[#allocation5 + $0x70] sm:$0xff]
    %v593 = vld [vmem:[#allocation5 + $0x78] sm:$0xff]
    %v594 = vld [vmem:[#allocation5 + $0x80] sm:$0xff]
    %v595 = vld [vmem:[#allocation5 + $0x88] sm:$0xff]
    %v596 = vld [vmem:[#allocation5 + $0x90] sm:$0xff]
    %v597 = vld [vmem:[#allocation5 + $0x98] sm:$0xff]
    %v598 = vld [vmem:[#allocation5 + $0xa0] sm:$0xff]
    %v599 = vld [vmem:[#allocation5 + $0xa8] sm:$0xff]
    %v600 = vld [vmem:[#allocation5 + $0xb0] sm:$0xff]
    %v601 = vld [vmem:[#allocation5 + $0xb8] sm:$0xff]
    %v602 = vld [vmem:[#allocation5 + $0xc0] sm:$0xff]
    %v603 = vld [vmem:[#allocation5 + $0xc8] sm:$0xff]
    %v604 = vld [vmem:[#allocation5 + $0xd0] sm:$0xff]
    %v605 = vld [vmem:[#allocation5 + $0xd8] sm:$0xff]
    %v606 = vld [vmem:[#allocation5 + $0xe0] sm:$0xff]
    %v607 = vld [vmem:[#allocation5 + $0xe8] sm:$0xff]
    %v608 = vld [vmem:[#allocation5 + $0xf0] sm:$0xff]
    %v609 = vld [vmem:[#allocation5 + $0xf8] sm:$0xff]
    %v610 = vld [vmem:[#allocation5 + $0x100] sm:$0xff]
    %v611 = vld [vmem:[#allocation5 + $0x108] sm:$0xff]
    %v612 = vld [vmem:[#allocation5 + $0x110] sm:$0xff]
    %v613 = vld [vmem:[#allocation5 + $0x118] sm:$0xff]
    %v614 = vld [vmem:[#allocation5 + $0x120] sm:$0xff]
    %v615 = vld [vmem:[#allocation5 + $0x128] sm:$0xff]
    %v616 = vld [vmem:[#allocation5 + $0x130] sm:$0xff]
    %v617 = vld [vmem:[#allocation5 + $0x138] sm:$0xff]
    %v618 = vld [vmem:[#allocation5 + $0x140] sm:$0xff]
    %v619 = vld [vmem:[#allocation5 + $0x148] sm:$0xff]
    %v620 = vld [vmem:[#allocation5 + $0x150] sm:$0xff]
    %v621 = vld [vmem:[#allocation5 + $0x158] sm:$0xff]
    %v622 = vld [vmem:[#allocation5 + $0x160] sm:$0xff]
    %v623 = vld [vmem:[#allocation5 + $0x168] sm:$0xff]
    %v624 = vld [vmem:[#allocation5 + $0x170] sm:$0xff]
    %v625 = vld [vmem:[#allocation5 + $0x178] sm:$0xff]
    %v626 = vld [vmem:[#allocation7] sm:$0xff]
    %v627 = vld [vmem:[#allocation7 + $0x8] sm:$0xff]
    %v628 = vld [vmem:[#allocation7 + $0x10] sm:$0xff]
    %v629 = vld [vmem:[#allocation7 + $0x18] sm:$0xff]
    %v630 = vld [vmem:[#allocation7 + $0x20] sm:$0xff]
    %v631 = vld [vmem:[#allocation7 + $0x28] sm:$0xff]
    %v632 = vld [vmem:[#allocation7 + $0x30] sm:$0xff]
    %v633 = vld [vmem:[#allocation7 + $0x38] sm:$0xff]
    %v634 = vld [vmem:[#allocation7 + $0x40] sm:$0xff]
    %v635 = vld [vmem:[#allocation7 + $0x48] sm:$0xff]
    %v636 = vld [vmem:[#allocation7 + $0x50] sm:$0xff]
    %v637 = vld [vmem:[#allocation7 + $0x58] sm:$0xff]
    %v638 = vld [vmem:[#allocation7 + $0x60] sm:$0xff]
    %v639 = vld [vmem:[#allocation7 + $0x68] sm:$0xff]
    %v640 = vld [vmem:[#allocation7 + $0x70] sm:$0xff]
    %v641 = vld [vmem:[#allocation7 + $0x78] sm:$0xff]
    %v642 = vld [vmem:[#allocation7 + $0x80] sm:$0xff]
    %v643 = vld [vmem:[#allocation7 + $0x88] sm:$0xff]
    %v644 = vld [vmem:[#allocation7 + $0x90] sm:$0xff]
    %v645 = vld [vmem:[#allocation7 + $0x98] sm:$0xff]
    %v646 = vld [vmem:[#allocation7 + $0xa0] sm:$0xff]
    %v647 = vld [vmem:[#allocation7 + $0xa8] sm:$0xff]
    %v648 = vld [vmem:[#allocation7 + $0xb0] sm:$0xff]
    %v649 = vld [vmem:[#allocation7 + $0xb8] sm:$0xff]
    %v650 = vld [vmem:[#allocation7 + $0xc0] sm:$0xff]
    %v651 = vld [vmem:[#allocation7 + $0xc8] sm:$0xff]
    %v652 = vld [vmem:[#allocation7 + $0xd0] sm:$0xff]
    %v653 = vld [vmem:[#allocation7 + $0xd8] sm:$0xff]
    %v654 = vld [vmem:[#allocation7 + $0xe0] sm:$0xff]
    %v655 = vld [vmem:[#allocation7 + $0xe8] sm:$0xff]
    %v656 = vld [vmem:[#allocation7 + $0xf0] sm:$0xff]
    %v657 = vld [vmem:[#allocation7 + $0xf8] sm:$0xff]
    %v658 = vld [vmem:[#allocation7 + $0x100] sm:$0xff]
    %v659 = vld [vmem:[#allocation7 + $0x108] sm:$0xff]
    %v660 = vld [vmem:[#allocation7 + $0x110] sm:$0xff]
    %v661 = vld [vmem:[#allocation7 + $0x118] sm:$0xff]
    %v662 = vld [vmem:[#allocation7 + $0x120] sm:$0xff]
    %v663 = vld [vmem:[#allocation7 + $0x128] sm:$0xff]
    %v664 = vld [vmem:[#allocation7 + $0x130] sm:$0xff]
    %v665 = vld [vmem:[#allocation7 + $0x138] sm:$0xff]
    %v666 = vld [vmem:[#allocation7 + $0x140] sm:$0xff]
    %v667 = vld [vmem:[#allocation7 + $0x148] sm:$0xff]
    %v668 = vld [vmem:[#allocation7 + $0x150] sm:$0xff]
    %v669 = vld [vmem:[#allocation7 + $0x158] sm:$0xff]
    %v670 = vld [vmem:[#allocation7 + $0x160] sm:$0xff]
    %v671 = vld [vmem:[#allocation7 + $0x168] sm:$0xff]
    %v672 = vld [vmem:[#allocation7 + $0x170] sm:$0xff]
    %v673 = vld [vmem:[#allocation7 + $0x178] sm:$0xff]
    %v674 = vld [vmem:[%s5] sm:$0xff]
    %v675 = vld [vmem:[%s5 + $0x8] sm:$0xff]
    %v676 = vld [vmem:[%s1] sm:$0xff]
    %677 = vmatprep.subr.mxu0 %v579
    %678 = vmatpush1.msra.mxu0 %v578
    %679 = vmatprep.subr.mxu0 %v582
    %680 = vmatpush1.msra.mxu0 %v581
    %681 = vmatprep.subr.mxu0 %v585
    %682 = vmatpush1.msra.mxu0 %v584
    %683 = vmatprep.subr.mxu0 %v588
    %684 = vmatpush1.msra.mxu0 %v587
    %685 = vmatprep.subr.mxu0 %v591
    %686 = vmatpush1.msra.mxu0 %v590
    %687 = vmatprep.subr.mxu0 %v594
    %688 = vmatpush1.msra.mxu0 %v593
    %689 = vmatprep.subr.mxu0 %v597
    %690 = vmatpush1.msra.mxu0 %v596
    %691 = vmatprep.subr.mxu0 %v600
    %692 = vmatpush1.msra.mxu0 %v599
    %693 = vmatprep.subr.mxu0 %v603
    %694 = vmatpush1.msra.mxu0 %v602
    %695 = vmatprep.subr.mxu0 %v606
    %696 = vmatpush1.msra.mxu0 %v605
    %697 = vmatprep.subr.mxu0 %v609
    %698 = vmatpush1.msra.mxu0 %v608
    %699 = vmatprep.subr.mxu0 %v612
    %700 = vmatpush1.msra.mxu0 %v611
    %701 = vmatprep.subr.mxu0 %v615
    %702 = vmatpush1.msra.mxu0 %v614
    %703 = vmatprep.subr.mxu0 %v618
    %704 = vmatpush1.msra.mxu0 %v617
    %705 = vmatprep.subr.mxu0 %v621
    %706 = vmatpush1.msra.mxu0 %v620
    %707 = vmatprep.subr.mxu0 %v624
    %708 = vmatpush1.msra.mxu0 %v623
    %709 = vmatprep.subr.mxu0 0.0
    %710 = vmatpush1.msra.mxu0 0.0
    %711 = vmatprep.subr.mxu0 0.0
    %712 = vmatpush1.msra.mxu0 0.0
    %713 = vmatprep.subr.mxu0 0.0
    %714 = vmatpush1.msra.mxu0 0.0
    %715 = vmatprep.subr.mxu0 0.0
    %716 = vmatpush1.msra.mxu0 0.0
    %717 = vmatprep.subr.mxu0 0.0
    %718 = vmatpush1.msra.mxu0 0.0
    %719 = vmatprep.subr.mxu0 0.0
    %720 = vmatpush1.msra.mxu0 0.0
    %721 = vmatprep.subr.mxu0 0.0
    %722 = vmatpush1.msra.mxu0 0.0
    %723 = vmatprep.subr.mxu0 0.0
    %724 = vmatpush1.msra.mxu0 0.0
    %725 = vmatprep.subr.mxu0 0.0
    %726 = vmatpush1.msra.mxu0 0.0
    %727 = vmatprep.subr.mxu0 0.0
    %728 = vmatpush1.msra.mxu0 0.0
    %729 = vmatprep.subr.mxu0 0.0
    %730 = vmatpush1.msra.mxu0 0.0
    %731 = vmatprep.subr.mxu0 0.0
    %732 = vmatpush1.msra.mxu0 0.0
    %733 = vmatprep.subr.mxu0 0.0
    %734 = vmatpush1.msra.mxu0 0.0
    %735 = vmatprep.subr.mxu0 0.0
    %736 = vmatpush1.msra.mxu0 0.0
    %737 = vmatprep.subr.mxu0 0.0
    %738 = vmatpush1.msra.mxu0 0.0
    %739 = vmatprep.subr.mxu0 0.0
    %740 = vmatpush1.msra.mxu0 0.0
    %741 = vmatprep.mubr.f32.mxu0 0.0
    %742 = vmatmul.mubr.f32.gmra.mrb[0].mxu0 0.0
    %v743 = vpop.f32.mrb[0].mxu0
    %v744 = vadd.f32 0.0, %v743
    %v745 = vpop.f32.mrb[0].mxu0
    %v746 = vadd.f32 0.0, %v745
    %747 = vdwg.mxu0
    %748 = vmatprep.subr.mxu0 0.0
    %749 = vmatpush1.msra.mxu0 %v580
    %750 = vmatprep.subr.mxu0 0.0
    %751 = vmatpush1.msra.mxu0 %v583
    %752 = vmatprep.subr.mxu0 0.0
    %753 = vmatpush1.msra.mxu0 %v586
    %754 = vmatprep.subr.mxu0 0.0
    %755 = vmatpush1.msra.mxu0 %v589
    %756 = vmatprep.subr.mxu0 0.0
    %757 = vmatpush1.msra.mxu0 %v592
    %758 = vmatprep.subr.mxu0 0.0
    %759 = vmatpush1.msra.mxu0 %v595
    %760 = vmatprep.subr.mxu0 0.0
    %761 = vmatpush1.msra.mxu0 %v598
    %762 = vmatprep.subr.mxu0 0.0
    %763 = vmatpush1.msra.mxu0 %v601
    %764 = vmatprep.subr.mxu0 0.0
    %765 = vmatpush1.msra.mxu0 %v604
    %766 = vmatprep.subr.mxu0 0.0
    %767 = vmatpush1.msra.mxu0 %v607
    %768 = vmatprep.subr.mxu0 0.0
    %769 = vmatpush1.msra.mxu0 %v610
    %770 = vmatprep.subr.mxu0 0.0
    %771 = vmatpush1.msra.mxu0 %v613
    %772 = vmatprep.subr.mxu0 0.0
    %773 = vmatpush1.msra.mxu0 %v616
    %774 = vmatprep.subr.mxu0 0.0
    %775 = vmatpush1.msra.mxu0 %v619
    %776 = vmatprep.subr.mxu0 0.0
    %777 = vmatpush1.msra.mxu0 %v622
    %778 = vmatprep.subr.mxu0 0.0
    %779 = vmatpush1.msra.mxu0 %v625
    %780 = vmatprep.subr.mxu0 0.0
    %781 = vmatpush1.msra.mxu0 0.0
    %782 = vmatprep.subr.mxu0 0.0
    %783 = vmatpush1.msra.mxu0 0.0
    %784 = vmatprep.subr.mxu0 0.0
    %785 = vmatpush1.msra.mxu0 0.0
    %786 = vmatprep.subr.mxu0 0.0
    %787 = vmatpush1.msra.mxu0 0.0
    %788 = vmatprep.subr.mxu0 0.0
    %789 = vmatpush1.msra.mxu0 0.0
    %790 = vmatprep.subr.mxu0 0.0
    %791 = vmatpush1.msra.mxu0 0.0
    %792 = vmatprep.subr.mxu0 0.0
    %793 = vmatpush1.msra.mxu0 0.0
    %794 = vmatprep.subr.mxu0 0.0
    %795 = vmatpush1.msra.mxu0 0.0
    %796 = vmatprep.subr.mxu0 0.0
    %797 = vmatpush1.msra.mxu0 0.0
    %798 = vmatprep.subr.mxu0 0.0
    %799 = vmatpush1.msra.mxu0 0.0
    %800 = vmatprep.subr.mxu0 0.0
    %801 = vmatpush1.msra.mxu0 0.0
    %802 = vmatprep.subr.mxu0 0.0
    %803 = vmatpush1.msra.mxu0 0.0
    %804 = vmatprep.subr.mxu0 0.0
    %805 = vmatpush1.msra.mxu0 0.0
    %806 = vmatprep.subr.mxu0 0.0
    %807 = vmatpush1.msra.mxu0 0.0
    %808 = vmatprep.subr.mxu0 0.0
    %809 = vmatpush1.msra.mxu0 0.0
    %810 = vmatprep.subr.mxu0 0.0
    %811 = vmatpush1.msra.mxu0 0.0
    %812 = vmatprep.mubr.f32.mxu0 0.0
    %813 = vmatmul.mubr.f32.gmra.mrb[0].mxu0 0.0
    %v814 = vpop.f32.mrb[0].mxu0
    %v815 = vadd.f32 0.0, %v814
    %v816 = vpop.f32.mrb[0].mxu0
    %817 = vdwg.mxu0
    %v818 = vadd.f32 %v306, %v744
    %v819 = vxor.u32 %v818, 2147483648
    %v820 = vmul.f32 %v819, 1.442695
    %v821 = vpow.pop %v820
    %v822 = vadd.f32 %v821, 1.0
    %v823 = vrcp.pop %v822
    %v824 = vmul.f32 1.0, %v823
    %v825 = vadd.f32 %v308, %v746
    %v826 = vxor.u32 %v825, 2147483648
    %v827 = vmul.f32 %v826, 1.442695
    %v828 = vpow.pop %v827
    %v829 = vadd.f32 %v828, 1.0
    %v830 = vrcp.pop %v829
    %v831 = vmul.f32 1.0, %v830
    %v832 = vadd.f32 %v815, %v674
    %v833 = vmul.f32 %v824, %v832
    %v834 = vadd.f32 %v419, %v833
    %v835 = vtanh.pop %v834
    %v836 = vsub.f32 1.0, %v831
    %v837 = vmul.f32 %v836, %v835
    %v838 = vmul.f32 %v831, 0.0
    %v839 = vadd.f32 %v837, %v838
    %840 = vmatprep.subr.mxu0 %v627
    %841 = vmatpush1.msra.mxu0 %v626
    %842 = vmatprep.subr.mxu0 %v630
    %843 = vmatpush1.msra.mxu0 %v629
    %844 = vmatprep.subr.mxu0 %v633
    %845 = vmatpush1.msra.mxu0 %v632
    %846 = vmatprep.subr.mxu0 %v636
    %847 = vmatpush1.msra.mxu0 %v635
    %848 = vmatprep.subr.mxu0 %v639
    %849 = vmatpush1.msra.mxu0 %v638
    %850 = vmatprep.subr.mxu0 %v642
    %851 = vmatpush1.msra.mxu0 %v641
    %852 = vmatprep.subr.mxu0 %v645
    %853 = vmatpush1.msra.mxu0 %v644
    %854 = vmatprep.subr.mxu0 %v648
    %855 = vmatpush1.msra.mxu0 %v647
    %856 = vmatprep.subr.mxu0 %v651
    %857 = vmatpush1.msra.mxu0 %v650
    %858 = vmatprep.subr.mxu0 %v654
    %859 = vmatpush1.msra.mxu0 %v653
    %860 = vmatprep.subr.mxu0 %v657
    %861 = vmatpush1.msra.mxu0 %v656
    %862 = vmatprep.subr.mxu0 %v660
    %863 = vmatpush1.msra.mxu0 %v659
    %864 = vmatprep.subr.mxu0 %v663
    %865 = vmatpush1.msra.mxu0 %v662
    %866 = vmatprep.subr.mxu0 %v666
    %867 = vmatpush1.msra.mxu0 %v665
    %868 = vmatprep.subr.mxu0 %v669
    %869 = vmatpush1.msra.mxu0 %v668
    %870 = vmatprep.subr.mxu0 %v672
    %871 = vmatpush1.msra.mxu0 %v671
    %872 = vmatprep.subr.mxu0 0.0
    %873 = vmatpush1.msra.mxu0 0.0
    %874 = vmatprep.subr.mxu0 0.0
    %875 = vmatpush1.msra.mxu0 0.0
    %876 = vmatprep.subr.mxu0 0.0
    %877 = vmatpush1.msra.mxu0 0.0
    %878 = vmatprep.subr.mxu0 0.0
    %879 = vmatpush1.msra.mxu0 0.0
    %880 = vmatprep.subr.mxu0 0.0
    %881 = vmatpush1.msra.mxu0 0.0
    %882 = vmatprep.subr.mxu0 0.0
    %883 = vmatpush1.msra.mxu0 0.0
    %884 = vmatprep.subr.mxu0 0.0
    %885 = vmatpush1.msra.mxu0 0.0
    %886 = vmatprep.subr.mxu0 0.0
    %887 = vmatpush1.msra.mxu0 0.0
    %888 = vmatprep.subr.mxu0 0.0
    %889 = vmatpush1.msra.mxu0 0.0
    %890 = vmatprep.subr.mxu0 0.0
    %891 = vmatpush1.msra.mxu0 0.0
    %892 = vmatprep.subr.mxu0 0.0
    %893 = vmatpush1.msra.mxu0 0.0
    %894 = vmatprep.subr.mxu0 0.0
    %895 = vmatpush1.msra.mxu0 0.0
    %896 = vmatprep.subr.mxu0 0.0
    %897 = vmatpush1.msra.mxu0 0.0
    %898 = vmatprep.subr.mxu0 0.0
    %899 = vmatpush1.msra.mxu0 0.0
    %900 = vmatprep.subr.mxu0 0.0
    %901 = vmatpush1.msra.mxu0 0.0
    %902 = vmatprep.subr.mxu0 0.0
    %903 = vmatpush1.msra.mxu0 0.0
    %904 = vmatprep.mubr.f32.mxu0 0.0
    %905 = vmatmul.mubr.f32.gmra.mrb[0].mxu0 0.0
    %v906 = vpop.f32.mrb[0].mxu0
    %v907 = vadd.f32 0.0, %v906
    %v908 = vpop.f32.mrb[0].mxu0
    %v909 = vadd.f32 0.0, %v908
    %910 = vdwg.mxu0
    %911 = vmatprep.subr.mxu0 0.0
    %912 = vmatpush1.msra.mxu0 %v628
    %913 = vmatprep.subr.mxu0 0.0
    %914 = vmatpush1.msra.mxu0 %v631
    %915 = vmatprep.subr.mxu0 0.0
    %916 = vmatpush1.msra.mxu0 %v634
    %917 = vmatprep.subr.mxu0 0.0
    %918 = vmatpush1.msra.mxu0 %v637
    %919 = vmatprep.subr.mxu0 0.0
    %920 = vmatpush1.msra.mxu0 %v640
    %921 = vmatprep.subr.mxu0 0.0
    %922 = vmatpush1.msra.mxu0 %v643
    %923 = vmatprep.subr.mxu0 0.0
    %924 = vmatpush1.msra.mxu0 %v646
    %925 = vmatprep.subr.mxu0 0.0
    %926 = vmatpush1.msra.mxu0 %v649
    %927 = vmatprep.subr.mxu0 0.0
    %928 = vmatpush1.msra.mxu0 %v652
    %929 = vmatprep.subr.mxu0 0.0
    %930 = vmatpush1.msra.mxu0 %v655
    %931 = vmatprep.subr.mxu0 0.0
    %932 = vmatpush1.msra.mxu0 %v658
    %933 = vmatprep.subr.mxu0 0.0
    %934 = vmatpush1.msra.mxu0 %v661
    %935 = vmatprep.subr.mxu0 0.0
    %936 = vmatpush1.msra.mxu0 %v664
    %937 = vmatprep.subr.mxu0 0.0
    %938 = vmatpush1.msra.mxu0 %v667
    %939 = vmatprep.subr.mxu0 0.0
    %940 = vmatpush1.msra.mxu0 %v670
    %941 = vmatprep.subr.mxu0 0.0
    %942 = vmatpush1.msra.mxu0 %v673
    %943 = vmatprep.subr.mxu0 0.0
    %944 = vmatpush1.msra.mxu0 0.0
    %945 = vmatprep.subr.mxu0 0.0
    %946 = vmatpush1.msra.mxu0 0.0
    %947 = vmatprep.subr.mxu0 0.0
    %948 = vmatpush1.msra.mxu0 0.0
    %949 = vmatprep.subr.mxu0 0.0
    %950 = vmatpush1.msra.mxu0 0.0
    %951 = vmatprep.subr.mxu0 0.0
    %952 = vmatpush1.msra.mxu0 0.0
    %953 = vmatprep.subr.mxu0 0.0
    %954 = vmatpush1.msra.mxu0 0.0
    %955 = vmatprep.subr.mxu0 0.0
    %956 = vmatpush1.msra.mxu0 0.0
    %957 = vmatprep.subr.mxu0 0.0
    %958 = vmatpush1.msra.mxu0 0.0
    %959 = vmatprep.subr.mxu0 0.0
    %960 = vmatpush1.msra.mxu0 0.0
    %961 = vmatprep.subr.mxu0 0.0
    %962 = vmatpush1.msra.mxu0 0.0
    %963 = vmatprep.subr.mxu0 0.0
    %964 = vmatpush1.msra.mxu0 0.0
    %965 = vmatprep.subr.mxu0 0.0
    %966 = vmatpush1.msra.mxu0 0.0
    %967 = vmatprep.subr.mxu0 0.0
    %968 = vmatpush1.msra.mxu0 0.0
    %969 = vmatprep.subr.mxu0 0.0
    %970 = vmatpush1.msra.mxu0 0.0
    %971 = vmatprep.subr.mxu0 0.0
    %972 = vmatpush1.msra.mxu0 0.0
    %973 = vmatprep.subr.mxu0 0.0
    %974 = vmatpush1.msra.mxu0 0.0
    %975 = vmatprep.mubr.f32.mxu0 0.0
    %976 = vmatmul.mubr.f32.gmra.mrb[0].mxu0 0.0
    %v977 = vpop.f32.mrb[0].mxu0
    %v978 = vadd.f32 0.0, %v977
    %v979 = vpop.f32.mrb[0].mxu0
    %980 = vdwg.mxu0
    %v981 = vadd.f32 %v463, %v907
    %v982 = vxor.u32 %v981, 2147483648
    %v983 = vmul.f32 %v982, 1.442695
    %v984 = vpow.pop %v983
    %v985 = vadd.f32 %v984, 1.0
    %v986 = vrcp.pop %v985
    %v987 = vmul.f32 1.0, %v986
    %v988 = vadd.f32 %v574, %v909
    %v989 = vxor.u32 %v988, 2147483648
    %v990 = vmul.f32 %v989, 1.442695
    %v991 = vpow.pop %v990
    %v992 = vadd.f32 %v991, 1.0
    %v993 = vrcp.pop %v992
    %v994 = vmul.f32 1.0, %v993
    %v995 = vadd.f32 %v978, %v675
    %v996 = vmul.f32 %v987, %v995
    %v997 = vadd.f32 %v576, %v996
    %v998 = vtanh.pop %v997
    %v999 = vsub.f32 1.0, %v994
    %v1000 = vmul.f32 %v999, %v998
    %v1001 = vmul.f32 %v994, 0.0
    %v1002 = vadd.f32 %v1000, %v1001
    %vm1003 = vcmp.gt.s32.totalorder %v676, 0
    %v1004 = vsel %vm1003, %v839, 0.0
    %vm1005 = vcmp.gt.s32.totalorder %v676, 7
    %v1006 = vsel %vm1005, %v1002, 0.0
    %1007 = vmatprep.subr.mxu0 %v579
    %1008 = vmatpush1.msra.mxu0 %v578
    %1009 = vmatprep.subr.mxu0 %v582
    %1010 = vmatpush1.msra.mxu0 %v581
    %1011 = vmatprep.subr.mxu0 %v585
    %1012 = vmatpush1.msra.mxu0 %v584
    %1013 = vmatprep.subr.mxu0 %v588
    %1014 = vmatpush1.msra.mxu0 %v587
    %1015 = vmatprep.subr.mxu0 %v591
    %1016 = vmatpush1.msra.mxu0 %v590
    %1017 = vmatprep.subr.mxu0 %v594
    %1018 = vmatpush1.msra.mxu0 %v593
    %1019 = vmatprep.subr.mxu0 %v597
    %1020 = vmatpush1.msra.mxu0 %v596
    %1021 = vmatprep.subr.mxu0 %v600
    %1022 = vmatpush1.msra.mxu0 %v599
    %1023 = vmatprep.subr.mxu0 %v603
    %1024 = vmatpush1.msra.mxu0 %v602
    %1025 = vmatprep.subr.mxu0 %v606
    %1026 = vmatpush1.msra.mxu0 %v605
    %1027 = vmatprep.subr.mxu0 %v609
    %1028 = vmatpush1.msra.mxu0 %v608
    %1029 = vmatprep.subr.mxu0 %v612
    %1030 = vmatpush1.msra.mxu0 %v611
    %1031 = vmatprep.subr.mxu0 %v615
    %1032 = vmatpush1.msra.mxu0 %v614
    %1033 = vmatprep.subr.mxu0 %v618
    %1034 = vmatpush1.msra.mxu0 %v617
    %1035 = vmatprep.subr.mxu0 %v621
    %1036 = vmatpush1.msra.mxu0 %v620
    %1037 = vmatprep.subr.mxu0 %v624
    %1038 = vmatpush1.msra.mxu0 %v623
    %1039 = vmatprep.subr.mxu0 0.0
    %1040 = vmatpush1.msra.mxu0 0.0
    %1041 = vmatprep.subr.mxu0 0.0
    %1042 = vmatpush1.msra.mxu0 0.0
    %1043 = vmatprep.subr.mxu0 0.0
    %1044 = vmatpush1.msra.mxu0 0.0
    %1045 = vmatprep.subr.mxu0 0.0
    %1046 = vmatpush1.msra.mxu0 0.0
    %1047 = vmatprep.subr.mxu0 0.0
    %1048 = vmatpush1.msra.mxu0 0.0
    %1049 = vmatprep.subr.mxu0 0.0
    %1050 = vmatpush1.msra.mxu0 0.0
    %1051 = vmatprep.subr.mxu0 0.0
    %1052 = vmatpush1.msra.mxu0 0.0
    %1053 = vmatprep.subr.mxu0 0.0
    %1054 = vmatpush1.msra.mxu0 0.0
    %1055 = vmatprep.subr.mxu0 0.0
    %1056 = vmatpush1.msra.mxu0 0.0
    %1057 = vmatprep.subr.mxu0 0.0
    %1058 = vmatpush1.msra.mxu0 0.0
    %1059 = vmatprep.subr.mxu0 0.0
    %1060 = vmatpush1.msra.mxu0 0.0
    %1061 = vmatprep.subr.mxu0 0.0
    %1062 = vmatpush1.msra.mxu0 0.0
    %1063 = vmatprep.subr.mxu0 0.0
    %1064 = vmatpush1.msra.mxu0 0.0
    %1065 = vmatprep.subr.mxu0 0.0
    %1066 = vmatpush1.msra.mxu0 0.0
    %1067 = vmatprep.subr.mxu0 0.0
    %1068 = vmatpush1.msra.mxu0 0.0
    %1069 = vmatprep.subr.mxu0 0.0
    %1070 = vmatpush1.msra.mxu0 0.0
    %1071 = vmatprep.mubr.f32.mxu0 0.0
    %1072 = vmatmul.mubr.f32.gmra.mrb[0].mxu0 %v1004
    %v1073 = vpop.f32.mrb[0].mxu0
    %v1074 = vadd.f32 0.0, %v1073
    %v1075 = vpop.f32.mrb[0].mxu0
    %v1076 = vadd.f32 0.0, %v1075
    %1077 = vdwg.mxu0
    %1078 = vmatprep.subr.mxu0 0.0
    %1079 = vmatpush1.msra.mxu0 %v580
    %1080 = vmatprep.subr.mxu0 0.0
    %1081 = vmatpush1.msra.mxu0 %v583
    %1082 = vmatprep.subr.mxu0 0.0
    %1083 = vmatpush1.msra.mxu0 %v586
    %1084 = vmatprep.subr.mxu0 0.0
    %1085 = vmatpush1.msra.mxu0 %v589
    %1086 = vmatprep.subr.mxu0 0.0
    %1087 = vmatpush1.msra.mxu0 %v592
    %1088 = vmatprep.subr.mxu0 0.0
    %1089 = vmatpush1.msra.mxu0 %v595
    %1090 = vmatprep.subr.mxu0 0.0
    %1091 = vmatpush1.msra.mxu0 %v598
    %1092 = vmatprep.subr.mxu0 0.0
    %1093 = vmatpush1.msra.mxu0 %v601
    %1094 = vmatprep.subr.mxu0 0.0
    %1095 = vmatpush1.msra.mxu0 %v604
    %1096 = vmatprep.subr.mxu0 0.0
    %1097 = vmatpush1.msra.mxu0 %v607
    %1098 = vmatprep.subr.mxu0 0.0
    %1099 = vmatpush1.msra.mxu0 %v610
    %1100 = vmatprep.subr.mxu0 0.0
    %1101 = vmatpush1.msra.mxu0 %v613
    %1102 = vmatprep.subr.mxu0 0.0
    %1103 = vmatpush1.msra.mxu0 %v616
    %1104 = vmatprep.subr.mxu0 0.0
    %1105 = vmatpush1.msra.mxu0 %v619
    %1106 = vmatprep.subr.mxu0 0.0
    %1107 = vmatpush1.msra.mxu0 %v622
    %1108 = vmatprep.subr.mxu0 0.0
    %1109 = vmatpush1.msra.mxu0 %v625
    %1110 = vmatprep.subr.mxu0 0.0
    %1111 = vmatpush1.msra.mxu0 0.0
    %1112 = vmatprep.subr.mxu0 0.0
    %1113 = vmatpush1.msra.mxu0 0.0
    %1114 = vmatprep.subr.mxu0 0.0
    %1115 = vmatpush1.msra.mxu0 0.0
    %1116 = vmatprep.subr.mxu0 0.0
    %1117 = vmatpush1.msra.mxu0 0.0
    %1118 = vmatprep.subr.mxu0 0.0
    %1119 = vmatpush1.msra.mxu0 0.0
    %1120 = vmatprep.subr.mxu0 0.0
    %1121 = vmatpush1.msra.mxu0 0.0
    %1122 = vmatprep.subr.mxu0 0.0
    %1123 = vmatpush1.msra.mxu0 0.0
    %1124 = vmatprep.subr.mxu0 0.0
    %1125 = vmatpush1.msra.mxu0 0.0
    %1126 = vmatprep.subr.mxu0 0.0
    %1127 = vmatpush1.msra.mxu0 0.0
    %1128 = vmatprep.subr.mxu0 0.0
    %1129 = vmatpush1.msra.mxu0 0.0
    %1130 = vmatprep.subr.mxu0 0.0
    %1131 = vmatpush1.msra.mxu0 0.0
    %1132 = vmatprep.subr.mxu0 0.0
    %1133 = vmatpush1.msra.mxu0 0.0
    %1134 = vmatprep.subr.mxu0 0.0
    %1135 = vmatpush1.msra.mxu0 0.0
    %1136 = vmatprep.subr.mxu0 0.0
    %1137 = vmatpush1.msra.mxu0 0.0
    %1138 = vmatprep.subr.mxu0 0.0
    %1139 = vmatpush1.msra.mxu0 0.0
    %1140 = vmatprep.subr.mxu0 0.0
    %1141 = vmatpush1.msra.mxu0 0.0
    %1142 = vmatprep.mubr.f32.mxu0 0.0
    %1143 = vmatmul.mubr.f32.gmra.mrb[0].mxu0 %v1004
    %v1144 = vpop.f32.mrb[0].mxu0
    %v1145 = vadd.f32 0.0, %v1144
    %v1146 = vpop.f32.mrb[0].mxu0
    %1147 = vdwg.mxu0
    %v1148 = vadd.f32 %v312, %v1074
    %v1149 = vxor.u32 %v1148, 2147483648
    %v1150 = vmul.f32 %v1149, 1.442695
    %v1151 = vpow.pop %v1150
    %v1152 = vadd.f32 %v1151, 1.0
    %v1153 = vrcp.pop %v1152
    %v1154 = vmul.f32 1.0, %v1153
    %v1155 = vadd.f32 %v314, %v1076
    %v1156 = vxor.u32 %v1155, 2147483648
    %v1157 = vmul.f32 %v1156, 1.442695
    %v1158 = vpow.pop %v1157
    %v1159 = vadd.f32 %v1158, 1.0
    %v1160 = vrcp.pop %v1159
    %v1161 = vmul.f32 1.0, %v1160
    %v1162 = vadd.f32 %v1145, %v674
    %v1163 = vmul.f32 %v1154, %v1162
    %v1164 = vadd.f32 %v425, %v1163
    %v1165 = vtanh.pop %v1164
    %v1166 = vsub.f32 1.0, %v1161
    %v1167 = vmul.f32 %v1166, %v1165
    %v1168 = vmul.f32 %v1161, %v1004
    %v1169 = vadd.f32 %v1167, %v1168
    %1170 = vmatprep.subr.mxu0 %v627
    %1171 = vmatpush1.msra.mxu0 %v626
    %1172 = vmatprep.subr.mxu0 %v630
    %1173 = vmatpush1.msra.mxu0 %v629
    %1174 = vmatprep.subr.mxu0 %v633
    %1175 = vmatpush1.msra.mxu0 %v632
    %1176 = vmatprep.subr.mxu0 %v636
    %1177 = vmatpush1.msra.mxu0 %v635
    %1178 = vmatprep.subr.mxu0 %v639
    %1179 = vmatpush1.msra.mxu0 %v638
    %1180 = vmatprep.subr.mxu0 %v642
    %1181 = vmatpush1.msra.mxu0 %v641
    %1182 = vmatprep.subr.mxu0 %v645
    %1183 = vmatpush1.msra.mxu0 %v644
    %1184 = vmatprep.subr.mxu0 %v648
    %1185 = vmatpush1.msra.mxu0 %v647
    %1186 = vmatprep.subr.mxu0 %v651
    %1187 = vmatpush1.msra.mxu0 %v650
    %1188 = vmatprep.subr.mxu0 %v654
    %1189 = vmatpush1.msra.mxu0 %v653
    %1190 = vmatprep.subr.mxu0 %v657
    %1191 = vmatpush1.msra.mxu0 %v656
    %1192 = vmatprep.subr.mxu0 %v660
    %1193 = vmatpush1.msra.mxu0 %v659
    %1194 = vmatprep.subr.mxu0 %v663
    %1195 = vmatpush1.msra.mxu0 %v662
    %1196 = vmatprep.subr.mxu0 %v666
    %1197 = vmatpush1.msra.mxu0 %v665
    %1198 = vmatprep.subr.mxu0 %v669
    %1199 = vmatpush1.msra.mxu0 %v668
    %1200 = vmatprep.subr.mxu0 %v672
    %1201 = vmatpush1.msra.mxu0 %v671
    %1202 = vmatprep.subr.mxu0 0.0
    %1203 = vmatpush1.msra.mxu0 0.0
    %1204 = vmatprep.subr.mxu0 0.0
    %1205 = vmatpush1.msra.mxu0 0.0
    %1206 = vmatprep.subr.mxu0 0.0
    %1207 = vmatpush1.msra.mxu0 0.0
    %1208 = vmatprep.subr.mxu0 0.0
    %1209 = vmatpush1.msra.mxu0 0.0
    %1210 = vmatprep.subr.mxu0 0.0
    %1211 = vmatpush1.msra.mxu0 0.0
    %1212 = vmatprep.subr.mxu0 0.0
    %1213 = vmatpush1.msra.mxu0 0.0
    %1214 = vmatprep.subr.mxu0 0.0
    %1215 = vmatpush1.msra.mxu0 0.0
    %1216 = vmatprep.subr.mxu0 0.0
    %1217 = vmatpush1.msra.mxu0 0.0
    %1218 = vmatprep.subr.mxu0 0.0
    %1219 = vmatpush1.msra.mxu0 0.0
    %1220 = vmatprep.subr.mxu0 0.0
    %1221 = vmatpush1.msra.mxu0 0.0
    %1222 = vmatprep.subr.mxu0 0.0
    %1223 = vmatpush1.msra.mxu0 0.0
    %1224 = vmatprep.subr.mxu0 0.0
    %1225 = vmatpush1.msra.mxu0 0.0
    %1226 = vmatprep.subr.mxu0 0.0
    %1227 = vmatpush1.msra.mxu0 0.0
    %1228 = vmatprep.subr.mxu0 0.0
    %1229 = vmatpush1.msra.mxu0 0.0
    %1230 = vmatprep.subr.mxu0 0.0
    %1231 = vmatpush1.msra.mxu0 0.0
    %1232 = vmatprep.subr.mxu0 0.0
    %1233 = vmatpush1.msra.mxu0 0.0
    %1234 = vmatprep.mubr.f32.mxu0 0.0
    %1235 = vmatmul.mubr.f32.gmra.mrb[0].mxu0 %v1006
    %v1236 = vpop.f32.mrb[0].mxu0
    %v1237 = vadd.f32 0.0, %v1236
    %v1238 = vpop.f32.mrb[0].mxu0
    %v1239 = vadd.f32 0.0, %v1238
    %1240 = vdwg.mxu0
    %1241 = vmatprep.subr.mxu0 0.0
    %1242 = vmatpush1.msra.mxu0 %v628
    %1243 = vmatprep.subr.mxu0 0.0
    %1244 = vmatpush1.msra.mxu0 %v631
    %1245 = vmatprep.subr.mxu0 0.0
    %1246 = vmatpush1.msra.mxu0 %v634
    %1247 = vmatprep.subr.mxu0 0.0
    %1248 = vmatpush1.msra.mxu0 %v637
    %1249 = vmatprep.subr.mxu0 0.0
    %1250 = vmatpush1.msra.mxu0 %v640
    %1251 = vmatprep.subr.mxu0 0.0
    %1252 = vmatpush1.msra.mxu0 %v643
    %1253 = vmatprep.subr.mxu0 0.0
    %1254 = vmatpush1.msra.mxu0 %v646
    %1255 = vmatprep.subr.mxu0 0.0
    %1256 = vmatpush1.msra.mxu0 %v649
    %1257 = vmatprep.subr.mxu0 0.0
    %1258 = vmatpush1.msra.mxu0 %v652
    %1259 = vmatprep.subr.mxu0 0.0
    %1260 = vmatpush1.msra.mxu0 %v655
    %1261 = vmatprep.subr.mxu0 0.0
    %1262 = vmatpush1.msra.mxu0 %v658
    %1263 = vmatprep.subr.mxu0 0.0
    %1264 = vmatpush1.msra.mxu0 %v661
    %1265 = vmatprep.subr.mxu0 0.0
    %1266 = vmatpush1.msra.mxu0 %v664
    %1267 = vmatprep.subr.mxu0 0.0
    %1268 = vmatpush1.msra.mxu0 %v667
    %1269 = vmatprep.subr.mxu0 0.0
    %1270 = vmatpush1.msra.mxu0 %v670
    %1271 = vmatprep.subr.mxu0 0.0
    %1272 = vmatpush1.msra.mxu0 %v673
    %1273 = vmatprep.subr.mxu0 0.0
    %1274 = vmatpush1.msra.mxu0 0.0
    %1275 = vmatprep.subr.mxu0 0.0
    %1276 = vmatpush1.msra.mxu0 0.0
    %1277 = vmatprep.subr.mxu0 0.0
    %1278 = vmatpush1.msra.mxu0 0.0
    %1279 = vmatprep.subr.mxu0 0.0
    %1280 = vmatpush1.msra.mxu0 0.0
    %1281 = vmatprep.subr.mxu0 0.0
    %1282 = vmatpush1.msra.mxu0 0.0
    %1283 = vmatprep.subr.mxu0 0.0
    %1284 = vmatpush1.msra.mxu0 0.0
    %1285 = vmatprep.subr.mxu0 0.0
    %1286 = vmatpush1.msra.mxu0 0.0
    %1287 = vmatprep.subr.mxu0 0.0
    %1288 = vmatpush1.msra.mxu0 0.0
    %1289 = vmatprep.subr.mxu0 0.0
    %1290 = vmatpush1.msra.mxu0 0.0
    %1291 = vmatprep.subr.mxu0 0.0
    %1292 = vmatpush1.msra.mxu0 0.0
    %1293 = vmatprep.subr.mxu0 0.0
    %1294 = vmatpush1.msra.mxu0 0.0
    %1295 = vmatprep.subr.mxu0 0.0
    %1296 = vmatpush1.msra.mxu0 0.0
    %1297 = vmatprep.subr.mxu0 0.0
    %1298 = vmatpush1.msra.mxu0 0.0
    %1299 = vmatprep.subr.mxu0 0.0
    %1300 = vmatpush1.msra.mxu0 0.0
    %1301 = vmatprep.subr.mxu0 0.0
    %1302 = vmatpush1.msra.mxu0 0.0
    %1303 = vmatprep.subr.mxu0 0.0
    %1304 = vmatpush1.msra.mxu0 0.0
    %1305 = vmatprep.mubr.f32.mxu0 0.0
    %1306 = vmatmul.mubr.f32.gmra.mrb[0].mxu0 %v1006
    %v1307 = vpop.f32.mrb[0].mxu0
    %v1308 = vadd.f32 0.0, %v1307
    %v1309 = vpop.f32.mrb[0].mxu0
    %1310 = vdwg.mxu0
    %v1311 = vadd.f32 %v457, %v1237
    %v1312 = vxor.u32 %v1311, 2147483648
    %v1313 = vmul.f32 %v1312, 1.442695
    %v1314 = vpow.pop %v1313
    %v1315 = vadd.f32 %v1314, 1.0
    %v1316 = vrcp.pop %v1315
    %v1317 = vmul.f32 1.0, %v1316
    %v1318 = vadd.f32 %v568, %v1239
    %v1319 = vxor.u32 %v1318, 2147483648
    %v1320 = vmul.f32 %v1319, 1.442695
    %v1321 = vpow.pop %v1320
    %v1322 = vadd.f32 %v1321, 1.0
    %v1323 = vrcp.pop %v1322
    %v1324 = vmul.f32 1.0, %v1323
    %v1325 = vadd.f32 %v1308, %v675
    %v1326 = vmul.f32 %v1317, %v1325
    %v1327 = vadd.f32 %v570, %v1326
    %v1328 = vtanh.pop %v1327
    %v1329 = vsub.f32 1.0, %v1324
    %v1330 = vmul.f32 %v1329, %v1328
    %v1331 = vmul.f32 %v1324, %v1006
    %v1332 = vadd.f32 %v1330, %v1331
    %vm1333 = vcmp.gt.s32.totalorder %v676, 1
    %v1334 = vsel %vm1333, %v1169, %v1004
    %vm1335 = vcmp.gt.s32.totalorder %v676, 6
    %v1336 = vsel %vm1335, %v1332, %v1006
    %1337 = vmatprep.subr.mxu0 %v579
    %1338 = vmatpush1.msra.mxu0 %v578
    %1339 = vmatprep.subr.mxu0 %v582
    %1340 = vmatpush1.msra.mxu0 %v581
    %1341 = vmatprep.subr.mxu0 %v585
    %1342 = vmatpush1.msra.mxu0 %v584
    %1343 = vmatprep.subr.mxu0 %v588
    %1344 = vmatpush1.msra.mxu0 %v587
    %1345 = vmatprep.subr.mxu0 %v591
    %1346 = vmatpush1.msra.mxu0 %v590
    %1347 = vmatprep.subr.mxu0 %v594
    %1348 = vmatpush1.msra.mxu0 %v593
    %1349 = vmatprep.subr.mxu0 %v597
    %1350 = vmatpush1.msra.mxu0 %v596
    %1351 = vmatprep.subr.mxu0 %v600
    %1352 = vmatpush1.msra.mxu0 %v599
    %1353 = vmatprep.subr.mxu0 %v603
    %1354 = vmatpush1.msra.mxu0 %v602
    %1355 = vmatprep.subr.mxu0 %v606
    %1356 = vmatpush1.msra.mxu0 %v605
    %1357 = vmatprep.subr.mxu0 %v609
    %1358 = vmatpush1.msra.mxu0 %v608
    %1359 = vmatprep.subr.mxu0 %v612
    %1360 = vmatpush1.msra.mxu0 %v611
    %1361 = vmatprep.subr.mxu0 %v615
    %1362 = vmatpush1.msra.mxu0 %v614
    %1363 = vmatprep.subr.mxu0 %v618
    %1364 = vmatpush1.msra.mxu0 %v617
    %1365 = vmatprep.subr.mxu0 %v621
    %1366 = vmatpush1.msra.mxu0 %v620
    %1367 = vmatprep.subr.mxu0 %v624
    %1368 = vmatpush1.msra.mxu0 %v623
    %1369 = vmatprep.subr.mxu0 0.0
    %1370 = vmatpush1.msra.mxu0 0.0
    %1371 = vmatprep.subr.mxu0 0.0
    %1372 = vmatpush1.msra.mxu0 0.0
    %1373 = vmatprep.subr.mxu0 0.0
    %1374 = vmatpush1.msra.mxu0 0.0
    %1375 = vmatprep.subr.mxu0 0.0
    %1376 = vmatpush1.msra.mxu0 0.0
    %1377 = vmatprep.subr.mxu0 0.0
    %1378 = vmatpush1.msra.mxu0 0.0
    %1379 = vmatprep.subr.mxu0 0.0
    %1380 = vmatpush1.msra.mxu0 0.0
    %1381 = vmatprep.subr.mxu0 0.0
    %1382 = vmatpush1.msra.mxu0 0.0
    %1383 = vmatprep.subr.mxu0 0.0
    %1384 = vmatpush1.msra.mxu0 0.0
    %1385 = vmatprep.subr.mxu0 0.0
    %1386 = vmatpush1.msra.mxu0 0.0
    %1387 = vmatprep.subr.mxu0 0.0
    %1388 = vmatpush1.msra.mxu0 0.0
    %1389 = vmatprep.subr.mxu0 0.0
    %1390 = vmatpush1.msra.mxu0 0.0
    %1391 = vmatprep.subr.mxu0 0.0
    %1392 = vmatpush1.msra.mxu0 0.0
    %1393 = vmatprep.subr.mxu0 0.0
    %1394 = vmatpush1.msra.mxu0 0.0
    %1395 = vmatprep.subr.mxu0 0.0
    %1396 = vmatpush1.msra.mxu0 0.0
    %1397 = vmatprep.subr.mxu0 0.0
    %1398 = vmatpush1.msra.mxu0 0.0
    %1399 = vmatprep.subr.mxu0 0.0
    %1400 = vmatpush1.msra.mxu0 0.0
    %1401 = vmatprep.mubr.f32.mxu0 0.0
    %1402 = vmatmul.mubr.f32.gmra.mrb[0].mxu0 %v1334
    %v1403 = vpop.f32.mrb[0].mxu0
    %v1404 = vadd.f32 0.0, %v1403
    %v1405 = vpop.f32.mrb[0].mxu0
    %v1406 = vadd.f32 0.0, %v1405
    %1407 = vdwg.mxu0
    %1408 = vmatprep.subr.mxu0 0.0
    %1409 = vmatpush1.msra.mxu0 %v580
    %1410 = vmatprep.subr.mxu0 0.0
    %1411 = vmatpush1.msra.mxu0 %v583
    %1412 = vmatprep.subr.mxu0 0.0
    %1413 = vmatpush1.msra.mxu0 %v586
    %1414 = vmatprep.subr.mxu0 0.0
    %1415 = vmatpush1.msra.mxu0 %v589
    %1416 = vmatprep.subr.mxu0 0.0
    %1417 = vmatpush1.msra.mxu0 %v592
    %1418 = vmatprep.subr.mxu0 0.0
    %1419 = vmatpush1.msra.mxu0 %v595
    %1420 = vmatprep.subr.mxu0 0.0
    %1421 = vmatpush1.msra.mxu0 %v598
    %1422 = vmatprep.subr.mxu0 0.0
    %1423 = vmatpush1.msra.mxu0 %v601
    %1424 = vmatprep.subr.mxu0 0.0
    %1425 = vmatpush1.msra.mxu0 %v604
    %1426 = vmatprep.subr.mxu0 0.0
    %1427 = vmatpush1.msra.mxu0 %v607
    %1428 = vmatprep.subr.mxu0 0.0
    %1429 = vmatpush1.msra.mxu0 %v610
    %1430 = vmatprep.subr.mxu0 0.0
    %1431 = vmatpush1.msra.mxu0 %v613
    %1432 = vmatprep.subr.mxu0 0.0
    %1433 = vmatpush1.msra.mxu0 %v616
    %1434 = vmatprep.subr.mxu0 0.0
    %1435 = vmatpush1.msra.mxu0 %v619
    %1436 = vmatprep.subr.mxu0 0.0
    %1437 = vmatpush1.msra.mxu0 %v622
    %1438 = vmatprep.subr.mxu0 0.0
    %1439 = vmatpush1.msra.mxu0 %v625
    %1440 = vmatprep.subr.mxu0 0.0
    %1441 = vmatpush1.msra.mxu0 0.0
    %1442 = vmatprep.subr.mxu0 0.0
    %1443 = vmatpush1.msra.mxu0 0.0
    %1444 = vmatprep.subr.mxu0 0.0
    %1445 = vmatpush1.msra.mxu0 0.0
    %1446 = vmatprep.subr.mxu0 0.0
    %1447 = vmatpush1.msra.mxu0 0.0
    %1448 = vmatprep.subr.mxu0 0.0
    %1449 = vmatpush1.msra.mxu0 0.0
    %1450 = vmatprep.subr.mxu0 0.0
    %1451 = vmatpush1.msra.mxu0 0.0
    %1452 = vmatprep.subr.mxu0 0.0
    %1453 = vmatpush1.msra.mxu0 0.0
    %1454 = vmatprep.subr.mxu0 0.0
    %1455 = vmatpush1.msra.mxu0 0.0
    %1456 = vmatprep.subr.mxu0 0.0
    %1457 = vmatpush1.msra.mxu0 0.0
    %1458 = vmatprep.subr.mxu0 0.0
    %1459 = vmatpush1.msra.mxu0 0.0
    %1460 = vmatprep.subr.mxu0 0.0
    %1461 = vmatpush1.msra.mxu0 0.0
    %1462 = vmatprep.subr.mxu0 0.0
    %1463 = vmatpush1.msra.mxu0 0.0
    %1464 = vmatprep.subr.mxu0 0.0
    %1465 = vmatpush1.msra.mxu0 0.0
    %1466 = vmatprep.subr.mxu0 0.0
    %1467 = vmatpush1.msra.mxu0 0.0
    %1468 = vmatprep.subr.mxu0 0.0
    %1469 = vmatpush1.msra.mxu0 0.0
    %1470 = vmatprep.subr.mxu0 0.0
    %1471 = vmatpush1.msra.mxu0 0.0
    %1472 = vmatprep.mubr.f32.mxu0 0.0
    %1473 = vmatmul.mubr.f32.gmra.mrb[0].mxu0 %v1334
    %v1474 = vpop.f32.mrb[0].mxu0
    %v1475 = vadd.f32 0.0, %v1474
    %v1476 = vpop.f32.mrb[0].mxu0
    %1477 = vdwg.mxu0
    %v1478 = vadd.f32 %v318, %v1404
    %v1479 = vxor.u32 %v1478, 2147483648
    %v1480 = vmul.f32 %v1479, 1.442695
    %v1481 = vpow.pop %v1480
    %v1482 = vadd.f32 %v1481, 1.0
    %v1483 = vrcp.pop %v1482
    %v1484 = vmul.f32 1.0, %v1483
    %v1485 = vadd.f32 %v320, %v1406
    %v1486 = vxor.u32 %v1485, 2147483648
    %v1487 = vmul.f32 %v1486, 1.442695
    %v1488 = vpow.pop %v1487
    %v1489 = vadd.f32 %v1488, 1.0
    %v1490 = vrcp.pop %v1489
    %v1491 = vmul.f32 1.0, %v1490
    %v1492 = vadd.f32 %v1475, %v674
    %v1493 = vmul.f32 %v1484, %v1492
    %v1494 = vadd.f32 %v431, %v1493
    %v1495 = vtanh.pop %v1494
    %v1496 = vsub.f32 1.0, %v1491
    %v1497 = vmul.f32 %v1496, %v1495
    %v1498 = vmul.f32 %v1491, %v1334
    %v1499 = vadd.f32 %v1497, %v1498
    %1500 = vmatprep.subr.mxu0 %v627
    %1501 = vmatpush1.msra.mxu0 %v626
    %1502 = vmatprep.subr.mxu0 %v630
    %1503 = vmatpush1.msra.mxu0 %v629
    %1504 = vmatprep.subr.mxu0 %v633
    %1505 = vmatpush1.msra.mxu0 %v632
    %1506 = vmatprep.subr.mxu0 %v636
    %1507 = vmatpush1.msra.mxu0 %v635
    %1508 = vmatprep.subr.mxu0 %v639
    %1509 = vmatpush1.msra.mxu0 %v638
    %1510 = vmatprep.subr.mxu0 %v642
    %1511 = vmatpush1.msra.mxu0 %v641
    %1512 = vmatprep.subr.mxu0 %v645
    %1513 = vmatpush1.msra.mxu0 %v644
    %1514 = vmatprep.subr.mxu0 %v648
    %1515 = vmatpush1.msra.mxu0 %v647
    %1516 = vmatprep.subr.mxu0 %v651
    %1517 = vmatpush1.msra.mxu0 %v650
    %1518 = vmatprep.subr.mxu0 %v654
    %1519 = vmatpush1.msra.mxu0 %v653
    %1520 = vmatprep.subr.mxu0 %v657
    %1521 = vmatpush1.msra.mxu0 %v656
    %1522 = vmatprep.subr.mxu0 %v660
    %1523 = vmatpush1.msra.mxu0 %v659
    %1524 = vmatprep.subr.mxu0 %v663
    %1525 = vmatpush1.msra.mxu0 %v662
    %1526 = vmatprep.subr.mxu0 %v666
    %1527 = vmatpush1.msra.mxu0 %v665
    %1528 = vmatprep.subr.mxu0 %v669
    %1529 = vmatpush1.msra.mxu0 %v668
    %1530 = vmatprep.subr.mxu0 %v672
    %1531 = vmatpush1.msra.mxu0 %v671
    %1532 = vmatprep.subr.mxu0 0.0
    %1533 = vmatpush1.msra.mxu0 0.0
    %1534 = vmatprep.subr.mxu0 0.0
    %1535 = vmatpush1.msra.mxu0 0.0
    %1536 = vmatprep.subr.mxu0 0.0
    %1537 = vmatpush1.msra.mxu0 0.0
    %1538 = vmatprep.subr.mxu0 0.0
    %1539 = vmatpush1.msra.mxu0 0.0
    %1540 = vmatprep.subr.mxu0 0.0
    %1541 = vmatpush1.msra.mxu0 0.0
    %1542 = vmatprep.subr.mxu0 0.0
    %1543 = vmatpush1.msra.mxu0 0.0
    %1544 = vmatprep.subr.mxu0 0.0
    %1545 = vmatpush1.msra.mxu0 0.0
    %1546 = vmatprep.subr.mxu0 0.0
    %1547 = vmatpush1.msra.mxu0 0.0
    %1548 = vmatprep.subr.mxu0 0.0
    %1549 = vmatpush1.msra.mxu0 0.0
    %1550 = vmatprep.subr.mxu0 0.0
    %1551 = vmatpush1.msra.mxu0 0.0
    %1552 = vmatprep.subr.mxu0 0.0
    %1553 = vmatpush1.msra.mxu0 0.0
    %1554 = vmatprep.subr.mxu0 0.0
    %1555 = vmatpush1.msra.mxu0 0.0
    %1556 = vmatprep.subr.mxu0 0.0
    %1557 = vmatpush1.msra.mxu0 0.0
    %1558 = vmatprep.subr.mxu0 0.0
    %1559 = vmatpush1.msra.mxu0 0.0
    %1560 = vmatprep.subr.mxu0 0.0
    %1561 = vmatpush1.msra.mxu0 0.0
    %1562 = vmatprep.subr.mxu0 0.0
    %1563 = vmatpush1.msra.mxu0 0.0
    %1564 = vmatprep.mubr.f32.mxu0 0.0
    %1565 = vmatmul.mubr.f32.gmra.mrb[0].mxu0 %v1336
    %v1566 = vpop.f32.mrb[0].mxu0
    %v1567 = vadd.f32 0.0, %v1566
    %v1568 = vpop.f32.mrb[0].mxu0
    %v1569 = vadd.f32 0.0, %v1568
    %1570 = vdwg.mxu0
    %1571 = vmatprep.subr.mxu0 0.0
    %1572 = vmatpush1.msra.mxu0 %v628
    %1573 = vmatprep.subr.mxu0 0.0
    %1574 = vmatpush1.msra.mxu0 %v631
    %1575 = vmatprep.subr.mxu0 0.0
    %1576 = vmatpush1.msra.mxu0 %v634
    %1577 = vmatprep.subr.mxu0 0.0
    %1578 = vmatpush1.msra.mxu0 %v637
    %1579 = vmatprep.subr.mxu0 0.0
    %1580 = vmatpush1.msra.mxu0 %v640
    %1581 = vmatprep.subr.mxu0 0.0
    %1582 = vmatpush1.msra.mxu0 %v643
    %1583 = vmatprep.subr.mxu0 0.0
    %1584 = vmatpush1.msra.mxu0 %v646
    %1585 = vmatprep.subr.mxu0 0.0
    %1586 = vmatpush1.msra.mxu0 %v649
    %1587 = vmatprep.subr.mxu0 0.0
    %1588 = vmatpush1.msra.mxu0 %v652
    %1589 = vmatprep.subr.mxu0 0.0
    %1590 = vmatpush1.msra.mxu0 %v655
    %1591 = vmatprep.subr.mxu0 0.0
    %1592 = vmatpush1.msra.mxu0 %v658
    %1593 = vmatprep.subr.mxu0 0.0
    %1594 = vmatpush1.msra.mxu0 %v661
    %1595 = vmatprep.subr.mxu0 0.0
    %1596 = vmatpush1.msra.mxu0 %v664
    %1597 = vmatprep.subr.mxu0 0.0
    %1598 = vmatpush1.msra.mxu0 %v667
    %1599 = vmatprep.subr.mxu0 0.0
    %1600 = vmatpush1.msra.mxu0 %v670
    %1601 = vmatprep.subr.mxu0 0.0
    %1602 = vmatpush1.msra.mxu0 %v673
    %1603 = vmatprep.subr.mxu0 0.0
    %1604 = vmatpush1.msra.mxu0 0.0
    %1605 = vmatprep.subr.mxu0 0.0
    %1606 = vmatpush1.msra.mxu0 0.0
    %1607 = vmatprep.subr.mxu0 0.0
    %1608 = vmatpush1.msra.mxu0 0.0
    %1609 = vmatprep.subr.mxu0 0.0
    %1610 = vmatpush1.msra.mxu0 0.0
    %1611 = vmatprep.subr.mxu0 0.0
    %1612 = vmatpush1.msra.mxu0 0.0
    %1613 = vmatprep.subr.mxu0 0.0
    %1614 = vmatpush1.msra.mxu0 0.0
    %1615 = vmatprep.subr.mxu0 0.0
    %1616 = vmatpush1.msra.mxu0 0.0
    %1617 = vmatprep.subr.mxu0 0.0
    %1618 = vmatpush1.msra.mxu0 0.0
    %1619 = vmatprep.subr.mxu0 0.0
    %1620 = vmatpush1.msra.mxu0 0.0
    %1621 = vmatprep.subr.mxu0 0.0
    %1622 = vmatpush1.msra.mxu0 0.0
    %1623 = vmatprep.subr.mxu0 0.0
    %1624 = vmatpush1.msra.mxu0 0.0
    %1625 = vmatprep.subr.mxu0 0.0
    %1626 = vmatpush1.msra.mxu0 0.0
    %1627 = vmatprep.subr.mxu0 0.0
    %1628 = vmatpush1.msra.mxu0 0.0
    %1629 = vmatprep.subr.mxu0 0.0
    %1630 = vmatpush1.msra.mxu0 0.0
    %1631 = vmatprep.subr.mxu0 0.0
    %1632 = vmatpush1.msra.mxu0 0.0
    %1633 = vmatprep.subr.mxu0 0.0
    %1634 = vmatpush1.msra.mxu0 0.0
    %1635 = vmatprep.mubr.f32.mxu0 0.0
    %1636 = vmatmul.mubr.f32.gmra.mrb[0].mxu0 %v1336
    %v1637 = vpop.f32.mrb[0].mxu0
    %v1638 = vadd.f32 0.0, %v1637
    %v1639 = vpop.f32.mrb[0].mxu0
    %1640 = vdwg.mxu0
    %v1641 = vadd.f32 %v451, %v1567
    %v1642 = vxor.u32 %v1641, 2147483648
    %v1643 = vmul.f32 %v1642, 1.442695
    %v1644 = vpow.pop %v1643
    %v1645 = vadd.f32 %v1644, 1.0
    %v1646 = vrcp.pop %v1645
    %v1647 = vmul.f32 1.0, %v1646
    %v1648 = vadd.f32 %v562, %v1569
    %v1649 = vxor.u32 %v1648, 2147483648
    %v1650 = vmul.f32 %v1649, 1.442695
    %v1651 = vpow.pop %v1650
    %v1652 = vadd.f32 %v1651, 1.0
    %v1653 = vrcp.pop %v1652
    %v1654 = vmul.f32 1.0, %v1653
    %v1655 = vadd.f32 %v1638, %v675
    %v1656 = vmul.f32 %v1647, %v1655
    %v1657 = vadd.f32 %v564, %v1656
    %v1658 = vtanh.pop %v1657
    %v1659 = vsub.f32 1.0, %v1654
    %v1660 = vmul.f32 %v1659, %v1658
    %v1661 = vmul.f32 %v1654, %v1336
    %v1662 = vadd.f32 %v1660, %v1661
    %vm1663 = vcmp.gt.s32.totalorder %v676, 2
    %v1664 = vsel %vm1663, %v1499, %v1334
    %vm1665 = vcmp.gt.s32.totalorder %v676, 5
    %v1666 = vsel %vm1665, %v1662, %v1336
    %1667 = vmatprep.subr.mxu0 %v579
    %1668 = vmatpush1.msra.mxu0 %v578
    %1669 = vmatprep.subr.mxu0 %v582
    %1670 = vmatpush1.msra.mxu0 %v581
    %1671 = vmatprep.subr.mxu0 %v585
    %1672 = vmatpush1.msra.mxu0 %v584
    %1673 = vmatprep.subr.mxu0 %v588
    %1674 = vmatpush1.msra.mxu0 %v587
    %1675 = vmatprep.subr.mxu0 %v591
    %1676 = vmatpush1.msra.mxu0 %v590
    %1677 = vmatprep.subr.mxu0 %v594
    %1678 = vmatpush1.msra.mxu0 %v593
    %1679 = vmatprep.subr.mxu0 %v597
    %1680 = vmatpush1.msra.mxu0 %v596
    %1681 = vmatprep.subr.mxu0 %v600
    %1682 = vmatpush1.msra.mxu0 %v599
    %1683 = vmatprep.subr.mxu0 %v603
    %1684 = vmatpush1.msra.mxu0 %v602
    %1685 = vmatprep.subr.mxu0 %v606
    %1686 = vmatpush1.msra.mxu0 %v605
    %1687 = vmatprep.subr.mxu0 %v609
    %1688 = vmatpush1.msra.mxu0 %v608
    %1689 = vmatprep.subr.mxu0 %v612
    %1690 = vmatpush1.msra.mxu0 %v611
    %1691 = vmatprep.subr.mxu0 %v615
    %1692 = vmatpush1.msra.mxu0 %v614
    %1693 = vmatprep.subr.mxu0 %v618
    %1694 = vmatpush1.msra.mxu0 %v617
    %1695 = vmatprep.subr.mxu0 %v621
    %1696 = vmatpush1.msra.mxu0 %v620
    %1697 = vmatprep.subr.mxu0 %v624
    %1698 = vmatpush1.msra.mxu0 %v623
    %1699 = vmatprep.subr.mxu0 0.0
    %1700 = vmatpush1.msra.mxu0 0.0
    %1701 = vmatprep.subr.mxu0 0.0
    %1702 = vmatpush1.msra.mxu0 0.0
    %1703 = vmatprep.subr.mxu0 0.0
    %1704 = vmatpush1.msra.mxu0 0.0
    %1705 = vmatprep.subr.mxu0 0.0
    %1706 = vmatpush1.msra.mxu0 0.0
    %1707 = vmatprep.subr.mxu0 0.0
    %1708 = vmatpush1.msra.mxu0 0.0
    %1709 = vmatprep.subr.mxu0 0.0
    %1710 = vmatpush1.msra.mxu0 0.0
    %1711 = vmatprep.subr.mxu0 0.0
    %1712 = vmatpush1.msra.mxu0 0.0
    %1713 = vmatprep.subr.mxu0 0.0
    %1714 = vmatpush1.msra.mxu0 0.0
    %1715 = vmatprep.subr.mxu0 0.0
    %1716 = vmatpush1.msra.mxu0 0.0
    %1717 = vmatprep.subr.mxu0 0.0
    %1718 = vmatpush1.msra.mxu0 0.0
    %1719 = vmatprep.subr.mxu0 0.0
    %1720 = vmatpush1.msra.mxu0 0.0
    %1721 = vmatprep.subr.mxu0 0.0
    %1722 = vmatpush1.msra.mxu0 0.0
    %1723 = vmatprep.subr.mxu0 0.0
    %1724 = vmatpush1.msra.mxu0 0.0
    %1725 = vmatprep.subr.mxu0 0.0
    %1726 = vmatpush1.msra.mxu0 0.0
    %1727 = vmatprep.subr.mxu0 0.0
    %1728 = vmatpush1.msra.mxu0 0.0
    %1729 = vmatprep.subr.mxu0 0.0
    %1730 = vmatpush1.msra.mxu0 0.0
    %1731 = vmatprep.mubr.f32.mxu0 0.0
    %1732 = vmatmul.mubr.f32.gmra.mrb[0].mxu0 %v1664
    %v1733 = vpop.f32.mrb[0].mxu0
    %v1734 = vadd.f32 0.0, %v1733
    %v1735 = vpop.f32.mrb[0].mxu0
    %v1736 = vadd.f32 0.0, %v1735
    %1737 = vdwg.mxu0
    %1738 = vmatprep.subr.mxu0 0.0
    %1739 = vmatpush1.msra.mxu0 %v580
    %1740 = vmatprep.subr.mxu0 0.0
    %1741 = vmatpush1.msra.mxu0 %v583
    %1742 = vmatprep.subr.mxu0 0.0
    %1743 = vmatpush1.msra.mxu0 %v586
    %1744 = vmatprep.subr.mxu0 0.0
    %1745 = vmatpush1.msra.mxu0 %v589
    %1746 = vmatprep.subr.mxu0 0.0
    %1747 = vmatpush1.msra.mxu0 %v592
    %1748 = vmatprep.subr.mxu0 0.0
    %1749 = vmatpush1.msra.mxu0 %v595
    %1750 = vmatprep.subr.mxu0 0.0
    %1751 = vmatpush1.msra.mxu0 %v598
    %1752 = vmatprep.subr.mxu0 0.0
    %1753 = vmatpush1.msra.mxu0 %v601
    %1754 = vmatprep.subr.mxu0 0.0
    %1755 = vmatpush1.msra.mxu0 %v604
    %1756 = vmatprep.subr.mxu0 0.0
    %1757 = vmatpush1.msra.mxu0 %v607
    %1758 = vmatprep.subr.mxu0 0.0
    %1759 = vmatpush1.msra.mxu0 %v610
    %1760 = vmatprep.subr.mxu0 0.0
    %1761 = vmatpush1.msra.mxu0 %v613
    %1762 = vmatprep.subr.mxu0 0.0
    %1763 = vmatpush1.msra.mxu0 %v616
    %1764 = vmatprep.subr.mxu0 0.0
    %1765 = vmatpush1.msra.mxu0 %v619
    %1766 = vmatprep.subr.mxu0 0.0
    %1767 = vmatpush1.msra.mxu0 %v622
    %1768 = vmatprep.subr.mxu0 0.0
    %1769 = vmatpush1.msra.mxu0 %v625
    %1770 = vmatprep.subr.mxu0 0.0
    %1771 = vmatpush1.msra.mxu0 0.0
    %1772 = vmatprep.subr.mxu0 0.0
    %1773 = vmatpush1.msra.mxu0 0.0
    %1774 = vmatprep.subr.mxu0 0.0
    %1775 = vmatpush1.msra.mxu0 0.0
    %1776 = vmatprep.subr.mxu0 0.0
    %1777 = vmatpush1.msra.mxu0 0.0
    %1778 = vmatprep.subr.mxu0 0.0
    %1779 = vmatpush1.msra.mxu0 0.0
    %1780 = vmatprep.subr.mxu0 0.0
    %1781 = vmatpush1.msra.mxu0 0.0
    %1782 = vmatprep.subr.mxu0 0.0
    %1783 = vmatpush1.msra.mxu0 0.0
    %1784 = vmatprep.subr.mxu0 0.0
    %1785 = vmatpush1.msra.mxu0 0.0
    %1786 = vmatprep.subr.mxu0 0.0
    %1787 = vmatpush1.msra.mxu0 0.0
    %1788 = vmatprep.subr.mxu0 0.0
    %1789 = vmatpush1.msra.mxu0 0.0
    %1790 = vmatprep.subr.mxu0 0.0
    %1791 = vmatpush1.msra.mxu0 0.0
    %1792 = vmatprep.subr.mxu0 0.0
    %1793 = vmatpush1.msra.mxu0 0.0
    %1794 = vmatprep.subr.mxu0 0.0
    %1795 = vmatpush1.msra.mxu0 0.0
    %1796 = vmatprep.subr.mxu0 0.0
    %1797 = vmatpush1.msra.mxu0 0.0
    %1798 = vmatprep.subr.mxu0 0.0
    %1799 = vmatpush1.msra.mxu0 0.0
    %1800 = vmatprep.subr.mxu0 0.0
    %1801 = vmatpush1.msra.mxu0 0.0
    %1802 = vmatprep.mubr.f32.mxu0 0.0
    %1803 = vmatmul.mubr.f32.gmra.mrb[0].mxu0 %v1664
    %v1804 = vpop.f32.mrb[0].mxu0
    %v1805 = vadd.f32 0.0, %v1804
    %v1806 = vpop.f32.mrb[0].mxu0
    %1807 = vdwg.mxu0
    %v1808 = vadd.f32 %v324, %v1734
    %v1809 = vxor.u32 %v1808, 2147483648
    %v1810 = vmul.f32 %v1809, 1.442695
    %v1811 = vpow.pop %v1810
    %v1812 = vadd.f32 %v1811, 1.0
    %v1813 = vrcp.pop %v1812
    %v1814 = vmul.f32 1.0, %v1813
    %v1815 = vadd.f32 %v326, %v1736
    %v1816 = vxor.u32 %v1815, 2147483648
    %v1817 = vmul.f32 %v1816, 1.442695
    %v1818 = vpow.pop %v1817
    %v1819 = vadd.f32 %v1818, 1.0
    %v1820 = vrcp.pop %v1819
    %v1821 = vmul.f32 1.0, %v1820
    %v1822 = vadd.f32 %v1805, %v674
    %v1823 = vmul.f32 %v1814, %v1822
    %v1824 = vadd.f32 %v437, %v1823
    %v1825 = vtanh.pop %v1824
    %v1826 = vsub.f32 1.0, %v1821
    %v1827 = vmul.f32 %v1826, %v1825
    %v1828 = vmul.f32 %v1821, %v1664
    %v1829 = vadd.f32 %v1827, %v1828
    %1830 = vmatprep.subr.mxu0 %v627
    %1831 = vmatpush1.msra.mxu0 %v626
    %1832 = vmatprep.subr.mxu0 %v630
    %1833 = vmatpush1.msra.mxu0 %v629
    %1834 = vmatprep.subr.mxu0 %v633
    %1835 = vmatpush1.msra.mxu0 %v632
    %1836 = vmatprep.subr.mxu0 %v636
    %1837 = vmatpush1.msra.mxu0 %v635
    %1838 = vmatprep.subr.mxu0 %v639
    %1839 = vmatpush1.msra.mxu0 %v638
    %1840 = vmatprep.subr.mxu0 %v642
    %1841 = vmatpush1.msra.mxu0 %v641
    %1842 = vmatprep.subr.mxu0 %v645
    %1843 = vmatpush1.msra.mxu0 %v644
    %1844 = vmatprep.subr.mxu0 %v648
    %1845 = vmatpush1.msra.mxu0 %v647
    %1846 = vmatprep.subr.mxu0 %v651
    %1847 = vmatpush1.msra.mxu0 %v650
    %1848 = vmatprep.subr.mxu0 %v654
    %1849 = vmatpush1.msra.mxu0 %v653
    %1850 = vmatprep.subr.mxu0 %v657
    %1851 = vmatpush1.msra.mxu0 %v656
    %1852 = vmatprep.subr.mxu0 %v660
    %1853 = vmatpush1.msra.mxu0 %v659
    %1854 = vmatprep.subr.mxu0 %v663
    %1855 = vmatpush1.msra.mxu0 %v662
    %1856 = vmatprep.subr.mxu0 %v666
    %1857 = vmatpush1.msra.mxu0 %v665
    %1858 = vmatprep.subr.mxu0 %v669
    %1859 = vmatpush1.msra.mxu0 %v668
    %1860 = vmatprep.subr.mxu0 %v672
    %1861 = vmatpush1.msra.mxu0 %v671
    %1862 = vmatprep.subr.mxu0 0.0
    %1863 = vmatpush1.msra.mxu0 0.0
    %1864 = vmatprep.subr.mxu0 0.0
    %1865 = vmatpush1.msra.mxu0 0.0
    %1866 = vmatprep.subr.mxu0 0.0
    %1867 = vmatpush1.msra.mxu0 0.0
    %1868 = vmatprep.subr.mxu0 0.0
    %1869 = vmatpush1.msra.mxu0 0.0
    %1870 = vmatprep.subr.mxu0 0.0
    %1871 = vmatpush1.msra.mxu0 0.0
    %1872 = vmatprep.subr.mxu0 0.0
    %1873 = vmatpush1.msra.mxu0 0.0
    %1874 = vmatprep.subr.mxu0 0.0
    %1875 = vmatpush1.msra.mxu0 0.0
    %1876 = vmatprep.subr.mxu0 0.0
    %1877 = vmatpush1.msra.mxu0 0.0
    %1878 = vmatprep.subr.mxu0 0.0
    %1879 = vmatpush1.msra.mxu0 0.0
    %1880 = vmatprep.subr.mxu0 0.0
    %1881 = vmatpush1.msra.mxu0 0.0
    %1882 = vmatprep.subr.mxu0 0.0
    %1883 = vmatpush1.msra.mxu0 0.0
    %1884 = vmatprep.subr.mxu0 0.0
    %1885 = vmatpush1.msra.mxu0 0.0
    %1886 = vmatprep.subr.mxu0 0.0
    %1887 = vmatpush1.msra.mxu0 0.0
    %1888 = vmatprep.subr.mxu0 0.0
    %1889 = vmatpush1.msra.mxu0 0.0
    %1890 = vmatprep.subr.mxu0 0.0
    %1891 = vmatpush1.msra.mxu0 0.0
    %1892 = vmatprep.subr.mxu0 0.0
    %1893 = vmatpush1.msra.mxu0 0.0
    %1894 = vmatprep.mubr.f32.mxu0 0.0
    %1895 = vmatmul.mubr.f32.gmra.mrb[0].mxu0 %v1666
    %v1896 = vpop.f32.mrb[0].mxu0
    %v1897 = vadd.f32 0.0, %v1896
    %v1898 = vpop.f32.mrb[0].mxu0
    %v1899 = vadd.f32 0.0, %v1898
    %1900 = vdwg.mxu0
    %1901 = vmatprep.subr.mxu0 0.0
    %1902 = vmatpush1.msra.mxu0 %v628
    %1903 = vmatprep.subr.mxu0 0.0
    %1904 = vmatpush1.msra.mxu0 %v631
    %1905 = vmatprep.subr.mxu0 0.0
    %1906 = vmatpush1.msra.mxu0 %v634
    %1907 = vmatprep.subr.mxu0 0.0
    %1908 = vmatpush1.msra.mxu0 %v637
    %1909 = vmatprep.subr.mxu0 0.0
    %1910 = vmatpush1.msra.mxu0 %v640
    %1911 = vmatprep.subr.mxu0 0.0
    %1912 = vmatpush1.msra.mxu0 %v643
    %1913 = vmatprep.subr.mxu0 0.0
    %1914 = vmatpush1.msra.mxu0 %v646
    %1915 = vmatprep.subr.mxu0 0.0
    %1916 = vmatpush1.msra.mxu0 %v649
    %1917 = vmatprep.subr.mxu0 0.0
    %1918 = vmatpush1.msra.mxu0 %v652
    %1919 = vmatprep.subr.mxu0 0.0
    %1920 = vmatpush1.msra.mxu0 %v655
    %1921 = vmatprep.subr.mxu0 0.0
    %1922 = vmatpush1.msra.mxu0 %v658
    %1923 = vmatprep.subr.mxu0 0.0
    %1924 = vmatpush1.msra.mxu0 %v661
    %1925 = vmatprep.subr.mxu0 0.0
    %1926 = vmatpush1.msra.mxu0 %v664
    %1927 = vmatprep.subr.mxu0 0.0
    %1928 = vmatpush1.msra.mxu0 %v667
    %1929 = vmatprep.subr.mxu0 0.0
    %1930 = vmatpush1.msra.mxu0 %v670
    %1931 = vmatprep.subr.mxu0 0.0
    %1932 = vmatpush1.msra.mxu0 %v673
    %1933 = vmatprep.subr.mxu0 0.0
    %1934 = vmatpush1.msra.mxu0 0.0
    %1935 = vmatprep.subr.mxu0 0.0
    %1936 = vmatpush1.msra.mxu0 0.0
    %1937 = vmatprep.subr.mxu0 0.0
    %1938 = vmatpush1.msra.mxu0 0.0
    %1939 = vmatprep.subr.mxu0 0.0
    %1940 = vmatpush1.msra.mxu0 0.0
    %1941 = vmatprep.subr.mxu0 0.0
    %1942 = vmatpush1.msra.mxu0 0.0
    %1943 = vmatprep.subr.mxu0 0.0
    %1944 = vmatpush1.msra.mxu0 0.0
    %1945 = vmatprep.subr.mxu0 0.0
    %1946 = vmatpush1.msra.mxu0 0.0
    %1947 = vmatprep.subr.mxu0 0.0
    %1948 = vmatpush1.msra.mxu0 0.0
    %1949 = vmatprep.subr.mxu0 0.0
    %1950 = vmatpush1.msra.mxu0 0.0
    %1951 = vmatprep.subr.mxu0 0.0
    %1952 = vmatpush1.msra.mxu0 0.0
    %1953 = vmatprep.subr.mxu0 0.0
    %1954 = vmatpush1.msra.mxu0 0.0
    %1955 = vmatprep.subr.mxu0 0.0
    %1956 = vmatpush1.msra.mxu0 0.0
    %1957 = vmatprep.subr.mxu0 0.0
    %1958 = vmatpush1.msra.mxu0 0.0
    %1959 = vmatprep.subr.mxu0 0.0
    %1960 = vmatpush1.msra.mxu0 0.0
    %1961 = vmatprep.subr.mxu0 0.0
    %1962 = vmatpush1.msra.mxu0 0.0
    %1963 = vmatprep.subr.mxu0 0.0
    %1964 = vmatpush1.msra.mxu0 0.0
    %1965 = vmatprep.mubr.f32.mxu0 0.0
    %1966 = vmatmul.mubr.f32.gmra.mrb[0].mxu0 %v1666
    %v1967 = vpop.f32.mrb[0].mxu0
    %v1968 = vadd.f32 0.0, %v1967
    %v1969 = vpop.f32.mrb[0].mxu0
    %1970 = vdwg.mxu0
    %v1971 = vadd.f32 %v445, %v1897
    %v1972 = vxor.u32 %v1971, 2147483648
    %v1973 = vmul.f32 %v1972, 1.442695
    %v1974 = vpow.pop %v1973
    %v1975 = vadd.f32 %v1974, 1.0
    %v1976 = vrcp.pop %v1975
    %v1977 = vmul.f32 1.0, %v1976
    %v1978 = vadd.f32 %v556, %v1899
    %v1979 = vxor.u32 %v1978, 2147483648
    %v1980 = vmul.f32 %v1979, 1.442695
    %v1981 = vpow.pop %v1980
    %v1982 = vadd.f32 %v1981, 1.0
    %v1983 = vrcp.pop %v1982
    %v1984 = vmul.f32 1.0, %v1983
    %v1985 = vadd.f32 %v1968, %v675
    %v1986 = vmul.f32 %v1977, %v1985
    %v1987 = vadd.f32 %v558, %v1986
    %v1988 = vtanh.pop %v1987
    %v1989 = vsub.f32 1.0, %v1984
    %v1990 = vmul.f32 %v1989, %v1988
    %v1991 = vmul.f32 %v1984, %v1666
    %v1992 = vadd.f32 %v1990, %v1991
    %vm1993 = vcmp.gt.s32.totalorder %v676, 3
    %v1994 = vsel %vm1993, %v1829, %v1664
    %vm1995 = vcmp.gt.s32.totalorder %v676, 4
    %v1996 = vsel %vm1995, %v1992, %v1666
    %1997 = vmatprep.subr.mxu0 %v579
    %1998 = vmatpush1.msra.mxu0 %v578
    %1999 = vmatprep.subr.mxu0 %v582
    %2000 = vmatpush1.msra.mxu0 %v581
    %2001 = vmatprep.subr.mxu0 %v585
    %2002 = vmatpush1.msra.mxu0 %v584
    %2003 = vmatprep.subr.mxu0 %v588
    %2004 = vmatpush1.msra.mxu0 %v587
    %2005 = vmatprep.subr.mxu0 %v591
    %2006 = vmatpush1.msra.mxu0 %v590
    %2007 = vmatprep.subr.mxu0 %v594
    %2008 = vmatpush1.msra.mxu0 %v593
    %2009 = vmatprep.subr.mxu0 %v597
    %2010 = vmatpush1.msra.mxu0 %v596
    %2011 = vmatprep.subr.mxu0 %v600
    %2012 = vmatpush1.msra.mxu0 %v599
    %2013 = vmatprep.subr.mxu0 %v603
    %2014 = vmatpush1.msra.mxu0 %v602
    %2015 = vmatprep.subr.mxu0 %v606
    %2016 = vmatpush1.msra.mxu0 %v605
    %2017 = vmatprep.subr.mxu0 %v609
    %2018 = vmatpush1.msra.mxu0 %v608
    %2019 = vmatprep.subr.mxu0 %v612
    %2020 = vmatpush1.msra.mxu0 %v611
    %2021 = vmatprep.subr.mxu0 %v615
    %2022 = vmatpush1.msra.mxu0 %v614
    %2023 = vmatprep.subr.mxu0 %v618
    %2024 = vmatpush1.msra.mxu0 %v617
    %2025 = vmatprep.subr.mxu0 %v621
    %2026 = vmatpush1.msra.mxu0 %v620
    %2027 = vmatprep.subr.mxu0 %v624
    %2028 = vmatpush1.msra.mxu0 %v623
    %2029 = vmatprep.subr.mxu0 0.0
    %2030 = vmatpush1.msra.mxu0 0.0
    %2031 = vmatprep.subr.mxu0 0.0
    %2032 = vmatpush1.msra.mxu0 0.0
    %2033 = vmatprep.subr.mxu0 0.0
    %2034 = vmatpush1.msra.mxu0 0.0
    %2035 = vmatprep.subr.mxu0 0.0
    %2036 = vmatpush1.msra.mxu0 0.0
    %2037 = vmatprep.subr.mxu0 0.0
    %2038 = vmatpush1.msra.mxu0 0.0
    %2039 = vmatprep.subr.mxu0 0.0
    %2040 = vmatpush1.msra.mxu0 0.0
    %2041 = vmatprep.subr.mxu0 0.0
    %2042 = vmatpush1.msra.mxu0 0.0
    %2043 = vmatprep.subr.mxu0 0.0
    %2044 = vmatpush1.msra.mxu0 0.0
    %2045 = vmatprep.subr.mxu0 0.0
    %2046 = vmatpush1.msra.mxu0 0.0
    %2047 = vmatprep.subr.mxu0 0.0
    %2048 = vmatpush1.msra.mxu0 0.0
    %2049 = vmatprep.subr.mxu0 0.0
    %2050 = vmatpush1.msra.mxu0 0.0
    %2051 = vmatprep.subr.mxu0 0.0
    %2052 = vmatpush1.msra.mxu0 0.0
    %2053 = vmatprep.subr.mxu0 0.0
    %2054 = vmatpush1.msra.mxu0 0.0
    %2055 = vmatprep.subr.mxu0 0.0
    %2056 = vmatpush1.msra.mxu0 0.0
    %2057 = vmatprep.subr.mxu0 0.0
    %2058 = vmatpush1.msra.mxu0 0.0
    %2059 = vmatprep.subr.mxu0 0.0
    %2060 = vmatpush1.msra.mxu0 0.0
    %2061 = vmatprep.mubr.f32.mxu0 0.0
    %2062 = vmatmul.mubr.f32.gmra.mrb[0].mxu0 %v1994
    %v2063 = vpop.f32.mrb[0].mxu0
    %v2064 = vadd.f32 0.0, %v2063
    %v2065 = vpop.f32.mrb[0].mxu0
    %v2066 = vadd.f32 0.0, %v2065
    %2067 = vdwg.mxu0
    %2068 = vmatprep.subr.mxu0 0.0
    %2069 = vmatpush1.msra.mxu0 %v580
    %2070 = vmatprep.subr.mxu0 0.0
    %2071 = vmatpush1.msra.mxu0 %v583
    %2072 = vmatprep.subr.mxu0 0.0
    %2073 = vmatpush1.msra.mxu0 %v586
    %2074 = vmatprep.subr.mxu0 0.0
    %2075 = vmatpush1.msra.mxu0 %v589
    %2076 = vmatprep.subr.mxu0 0.0
    %2077 = vmatpush1.msra.mxu0 %v592
    %2078 = vmatprep.subr.mxu0 0.0
    %2079 = vmatpush1.msra.mxu0 %v595
    %2080 = vmatprep.subr.mxu0 0.0
    %2081 = vmatpush1.msra.mxu0 %v598
    %2082 = vmatprep.subr.mxu0 0.0
    %2083 = vmatpush1.msra.mxu0 %v601
    %2084 = vmatprep.subr.mxu0 0.0
    %2085 = vmatpush1.msra.mxu0 %v604
    %2086 = vmatprep.subr.mxu0 0.0
    %2087 = vmatpush1.msra.mxu0 %v607
    %2088 = vmatprep.subr.mxu0 0.0
    %2089 = vmatpush1.msra.mxu0 %v610
    %2090 = vmatprep.subr.mxu0 0.0
    %2091 = vmatpush1.msra.mxu0 %v613
    %2092 = vmatprep.subr.mxu0 0.0
    %2093 = vmatpush1.msra.mxu0 %v616
    %2094 = vmatprep.subr.mxu0 0.0
    %2095 = vmatpush1.msra.mxu0 %v619
    %2096 = vmatprep.subr.mxu0 0.0
    %2097 = vmatpush1.msra.mxu0 %v622
    %2098 = vmatprep.subr.mxu0 0.0
    %2099 = vmatpush1.msra.mxu0 %v625
    %2100 = vmatprep.subr.mxu0 0.0
    %2101 = vmatpush1.msra.mxu0 0.0
    %2102 = vmatprep.subr.mxu0 0.0
    %2103 = vmatpush1.msra.mxu0 0.0
    %2104 = vmatprep.subr.mxu0 0.0
    %2105 = vmatpush1.msra.mxu0 0.0
    %2106 = vmatprep.subr.mxu0 0.0
    %2107 = vmatpush1.msra.mxu0 0.0
    %2108 = vmatprep.subr.mxu0 0.0
    %2109 = vmatpush1.msra.mxu0 0.0
    %2110 = vmatprep.subr.mxu0 0.0
    %2111 = vmatpush1.msra.mxu0 0.0
    %2112 = vmatprep.subr.mxu0 0.0
    %2113 = vmatpush1.msra.mxu0 0.0
    %2114 = vmatprep.subr.mxu0 0.0
    %2115 = vmatpush1.msra.mxu0 0.0
    %2116 = vmatprep.subr.mxu0 0.0
    %2117 = vmatpush1.msra.mxu0 0.0
    %2118 = vmatprep.subr.mxu0 0.0
    %2119 = vmatpush1.msra.mxu0 0.0
    %2120 = vmatprep.subr.mxu0 0.0
    %2121 = vmatpush1.msra.mxu0 0.0
    %2122 = vmatprep.subr.mxu0 0.0
    %2123 = vmatpush1.msra.mxu0 0.0
    %2124 = vmatprep.subr.mxu0 0.0
    %2125 = vmatpush1.msra.mxu0 0.0
    %2126 = vmatprep.subr.mxu0 0.0
    %2127 = vmatpush1.msra.mxu0 0.0
    %2128 = vmatprep.subr.mxu0 0.0
    %2129 = vmatpush1.msra.mxu0 0.0
    %2130 = vmatprep.subr.mxu0 0.0
    %2131 = vmatpush1.msra.mxu0 0.0
    %2132 = vmatprep.mubr.f32.mxu0 0.0
    %2133 = vmatmul.mubr.f32.gmra.mrb[0].mxu0 %v1994
    %v2134 = vpop.f32.mrb[0].mxu0
    %v2135 = vadd.f32 0.0, %v2134
    %v2136 = vpop.f32.mrb[0].mxu0
    %2137 = vdwg.mxu0
    %v2138 = vadd.f32 %v330, %v2064
    %v2139 = vxor.u32 %v2138, 2147483648
    %v2140 = vmul.f32 %v2139, 1.442695
    %v2141 = vpow.pop %v2140
    %v2142 = vadd.f32 %v2141, 1.0
    %v2143 = vrcp.pop %v2142
    %v2144 = vmul.f32 1.0, %v2143
    %v2145 = vadd.f32 %v332, %v2066
    %v2146 = vxor.u32 %v2145, 2147483648
    %v2147 = vmul.f32 %v2146, 1.442695
    %v2148 = vpow.pop %v2147
    %v2149 = vadd.f32 %v2148, 1.0
    %v2150 = vrcp.pop %v2149
    %v2151 = vmul.f32 1.0, %v2150
    %v2152 = vadd.f32 %v2135, %v674
    %v2153 = vmul.f32 %v2144, %v2152
    %v2154 = vadd.f32 %v443, %v2153
    %v2155 = vtanh.pop %v2154
    %v2156 = vsub.f32 1.0, %v2151
    %v2157 = vmul.f32 %v2156, %v2155
    %v2158 = vmul.f32 %v2151, %v1994
    %v2159 = vadd.f32 %v2157, %v2158
    %2160 = vmatprep.subr.mxu0 %v627
    %2161 = vmatpush1.msra.mxu0 %v626
    %2162 = vmatprep.subr.mxu0 %v630
    %2163 = vmatpush1.msra.mxu0 %v629
    %2164 = vmatprep.subr.mxu0 %v633
    %2165 = vmatpush1.msra.mxu0 %v632
    %2166 = vmatprep.subr.mxu0 %v636
    %2167 = vmatpush1.msra.mxu0 %v635
    %2168 = vmatprep.subr.mxu0 %v639
    %2169 = vmatpush1.msra.mxu0 %v638
    %2170 = vmatprep.subr.mxu0 %v642
    %2171 = vmatpush1.msra.mxu0 %v641
    %2172 = vmatprep.subr.mxu0 %v645
    %2173 = vmatpush1.msra.mxu0 %v644
    %2174 = vmatprep.subr.mxu0 %v648
    %2175 = vmatpush1.msra.mxu0 %v647
    %2176 = vmatprep.subr.mxu0 %v651
    %2177 = vmatpush1.msra.mxu0 %v650
    %2178 = vmatprep.subr.mxu0 %v654
    %2179 = vmatpush1.msra.mxu0 %v653
    %2180 = vmatprep.subr.mxu0 %v657
    %2181 = vmatpush1.msra.mxu0 %v656
    %2182 = vmatprep.subr.mxu0 %v660
    %2183 = vmatpush1.msra.mxu0 %v659
    %2184 = vmatprep.subr.mxu0 %v663
    %2185 = vmatpush1.msra.mxu0 %v662
    %2186 = vmatprep.subr.mxu0 %v666
    %2187 = vmatpush1.msra.mxu0 %v665
    %2188 = vmatprep.subr.mxu0 %v669
    %2189 = vmatpush1.msra.mxu0 %v668
    %2190 = vmatprep.subr.mxu0 %v672
    %2191 = vmatpush1.msra.mxu0 %v671
    %2192 = vmatprep.subr.mxu0 0.0
    %2193 = vmatpush1.msra.mxu0 0.0
    %2194 = vmatprep.subr.mxu0 0.0
    %2195 = vmatpush1.msra.mxu0 0.0
    %2196 = vmatprep.subr.mxu0 0.0
    %2197 = vmatpush1.msra.mxu0 0.0
    %2198 = vmatprep.subr.mxu0 0.0
    %2199 = vmatpush1.msra.mxu0 0.0
    %2200 = vmatprep.subr.mxu0 0.0
    %2201 = vmatpush1.msra.mxu0 0.0
    %2202 = vmatprep.subr.mxu0 0.0
    %2203 = vmatpush1.msra.mxu0 0.0
    %2204 = vmatprep.subr.mxu0 0.0
    %2205 = vmatpush1.msra.mxu0 0.0
    %2206 = vmatprep.subr.mxu0 0.0
    %2207 = vmatpush1.msra.mxu0 0.0
    %2208 = vmatprep.subr.mxu0 0.0
    %2209 = vmatpush1.msra.mxu0 0.0
    %2210 = vmatprep.subr.mxu0 0.0
    %2211 = vmatpush1.msra.mxu0 0.0
    %2212 = vmatprep.subr.mxu0 0.0
    %2213 = vmatpush1.msra.mxu0 0.0
    %2214 = vmatprep.subr.mxu0 0.0
    %2215 = vmatpush1.msra.mxu0 0.0
    %2216 = vmatprep.subr.mxu0 0.0
    %2217 = vmatpush1.msra.mxu0 0.0
    %2218 = vmatprep.subr.mxu0 0.0
    %2219 = vmatpush1.msra.mxu0 0.0
    %2220 = vmatprep.subr.mxu0 0.0
    %2221 = vmatpush1.msra.mxu0 0.0
    %2222 = vmatprep.subr.mxu0 0.0
    %2223 = vmatpush1.msra.mxu0 0.0
    %2224 = vmatprep.mubr.f32.mxu0 0.0
    %2225 = vmatmul.mubr.f32.gmra.mrb[0].mxu0 %v1996
    %v2226 = vpop.f32.mrb[0].mxu0
    %v2227 = vadd.f32 0.0, %v2226
    %v2228 = vpop.f32.mrb[0].mxu0
    %v2229 = vadd.f32 0.0, %v2228
    %2230 = vdwg.mxu0
    %2231 = vmatprep.subr.mxu0 0.0
    %2232 = vmatpush1.msra.mxu0 %v628
    %2233 = vmatprep.subr.mxu0 0.0
    %2234 = vmatpush1.msra.mxu0 %v631
    %2235 = vmatprep.subr.mxu0 0.0
    %2236 = vmatpush1.msra.mxu0 %v634
    %2237 = vmatprep.subr.mxu0 0.0
    %2238 = vmatpush1.msra.mxu0 %v637
    %2239 = vmatprep.subr.mxu0 0.0
    %2240 = vmatpush1.msra.mxu0 %v640
    %2241 = vmatprep.subr.mxu0 0.0
    %2242 = vmatpush1.msra.mxu0 %v643
    %2243 = vmatprep.subr.mxu0 0.0
    %2244 = vmatpush1.msra.mxu0 %v646
    %2245 = vmatprep.subr.mxu0 0.0
    %2246 = vmatpush1.msra.mxu0 %v649
    %2247 = vmatprep.subr.mxu0 0.0
    %2248 = vmatpush1.msra.mxu0 %v652
    %2249 = vmatprep.subr.mxu0 0.0
    %2250 = vmatpush1.msra.mxu0 %v655
    %2251 = vmatprep.subr.mxu0 0.0
    %2252 = vmatpush1.msra.mxu0 %v658
    %2253 = vmatprep.subr.mxu0 0.0
    %2254 = vmatpush1.msra.mxu0 %v661
    %2255 = vmatprep.subr.mxu0 0.0
    %2256 = vmatpush1.msra.mxu0 %v664
    %2257 = vmatprep.subr.mxu0 0.0
    %2258 = vmatpush1.msra.mxu0 %v667
    %2259 = vmatprep.subr.mxu0 0.0
    %2260 = vmatpush1.msra.mxu0 %v670
    %2261 = vmatprep.subr.mxu0 0.0
    %2262 = vmatpush1.msra.mxu0 %v673
    %2263 = vmatprep.subr.mxu0 0.0
    %2264 = vmatpush1.msra.mxu0 0.0
    %2265 = vmatprep.subr.mxu0 0.0
    %2266 = vmatpush1.msra.mxu0 0.0
    %2267 = vmatprep.subr.mxu0 0.0
    %2268 = vmatpush1.msra.mxu0 0.0
    %2269 = vmatprep.subr.mxu0 0.0
    %2270 = vmatpush1.msra.mxu0 0.0
    %2271 = vmatprep.subr.mxu0 0.0
    %2272 = vmatpush1.msra.mxu0 0.0
    %2273 = vmatprep.subr.mxu0 0.0
    %2274 = vmatpush1.msra.mxu0 0.0
    %2275 = vmatprep.subr.mxu0 0.0
    %2276 = vmatpush1.msra.mxu0 0.0
    %2277 = vmatprep.subr.mxu0 0.0
    %2278 = vmatpush1.msra.mxu0 0.0
    %2279 = vmatprep.subr.mxu0 0.0
    %2280 = vmatpush1.msra.mxu0 0.0
    %2281 = vmatprep.subr.mxu0 0.0
    %2282 = vmatpush1.msra.mxu0 0.0
    %2283 = vmatprep.subr.mxu0 0.0
    %2284 = vmatpush1.msra.mxu0 0.0
    %2285 = vmatprep.subr.mxu0 0.0
    %2286 = vmatpush1.msra.mxu0 0.0
    %2287 = vmatprep.subr.mxu0 0.0
    %2288 = vmatpush1.msra.mxu0 0.0
    %2289 = vmatprep.subr.mxu0 0.0
    %2290 = vmatpush1.msra.mxu0 0.0
    %2291 = vmatprep.subr.mxu0 0.0
    %2292 = vmatpush1.msra.mxu0 0.0
    %2293 = vmatprep.subr.mxu0 0.0
    %2294 = vmatpush1.msra.mxu0 0.0
    %2295 = vmatprep.mubr.f32.mxu0 0.0
    %2296 = vmatmul.mubr.f32.gmra.mrb[0].mxu0 %v1996
    %v2297 = vpop.f32.mrb[0].mxu0
    %v2298 = vadd.f32 0.0, %v2297
    %v2299 = vpop.f32.mrb[0].mxu0
    %2300 = vdwg.mxu0
    %v2301 = vadd.f32 %v439, %v2227
    %v2302 = vxor.u32 %v2301, 2147483648
    %v2303 = vmul.f32 %v2302, 1.442695
    %v2304 = vpow.pop %v2303
    %v2305 = vadd.f32 %v2304, 1.0
    %v2306 = vrcp.pop %v2305
    %v2307 = vmul.f32 1.0, %v2306
    %v2308 = vadd.f32 %v550, %v2229
    %v2309 = vxor.u32 %v2308, 2147483648
    %v2310 = vmul.f32 %v2309, 1.442695
    %v2311 = vpow.pop %v2310
    %v2312 = vadd.f32 %v2311, 1.0
    %v2313 = vrcp.pop %v2312
    %v2314 = vmul.f32 1.0, %v2313
    %v2315 = vadd.f32 %v2298, %v675
    %v2316 = vmul.f32 %v2307, %v2315
    %v2317 = vadd.f32 %v552, %v2316
    %v2318 = vtanh.pop %v2317
    %v2319 = vsub.f32 1.0, %v2314
    %v2320 = vmul.f32 %v2319, %v2318
    %v2321 = vmul.f32 %v2314, %v1996
    %v2322 = vadd.f32 %v2320, %v2321
    %v2323 = vsel %vm1995, %v2159, %v1994
    %v2324 = vsel %vm1993, %v2322, %v1996
    %2325 = vmatprep.subr.mxu0 %v579
    %2326 = vmatpush1.msra.mxu0 %v578
    %2327 = vmatprep.subr.mxu0 %v582
    %2328 = vmatpush1.msra.mxu0 %v581
    %2329 = vmatprep.subr.mxu0 %v585
    %2330 = vmatpush1.msra.mxu0 %v584
    %2331 = vmatprep.subr.mxu0 %v588
    %2332 = vmatpush1.msra.mxu0 %v587
    %2333 = vmatprep.subr.mxu0 %v591
    %2334 = vmatpush1.msra.mxu0 %v590
    %2335 = vmatprep.subr.mxu0 %v594
    %2336 = vmatpush1.msra.mxu0 %v593
    %2337 = vmatprep.subr.mxu0 %v597
    %2338 = vmatpush1.msra.mxu0 %v596
    %2339 = vmatprep.subr.mxu0 %v600
    %2340 = vmatpush1.msra.mxu0 %v599
    %2341 = vmatprep.subr.mxu0 %v603
    %2342 = vmatpush1.msra.mxu0 %v602
    %2343 = vmatprep.subr.mxu0 %v606
    %2344 = vmatpush1.msra.mxu0 %v605
    %2345 = vmatprep.subr.mxu0 %v609
    %2346 = vmatpush1.msra.mxu0 %v608
    %2347 = vmatprep.subr.mxu0 %v612
    %2348 = vmatpush1.msra.mxu0 %v611
    %2349 = vmatprep.subr.mxu0 %v615
    %2350 = vmatpush1.msra.mxu0 %v614
    %2351 = vmatprep.subr.mxu0 %v618
    %2352 = vmatpush1.msra.mxu0 %v617
    %2353 = vmatprep.subr.mxu0 %v621
    %2354 = vmatpush1.msra.mxu0 %v620
    %2355 = vmatprep.subr.mxu0 %v624
    %2356 = vmatpush1.msra.mxu0 %v623
    %2357 = vmatprep.subr.mxu0 0.0
    %2358 = vmatpush1.msra.mxu0 0.0
    %2359 = vmatprep.subr.mxu0 0.0
    %2360 = vmatpush1.msra.mxu0 0.0
    %2361 = vmatprep.subr.mxu0 0.0
    %2362 = vmatpush1.msra.mxu0 0.0
    %2363 = vmatprep.subr.mxu0 0.0
    %2364 = vmatpush1.msra.mxu0 0.0
    %2365 = vmatprep.subr.mxu0 0.0
    %2366 = vmatpush1.msra.mxu0 0.0
    %2367 = vmatprep.subr.mxu0 0.0
    %2368 = vmatpush1.msra.mxu0 0.0
    %2369 = vmatprep.subr.mxu0 0.0
    %2370 = vmatpush1.msra.mxu0 0.0
    %2371 = vmatprep.subr.mxu0 0.0
    %2372 = vmatpush1.msra.mxu0 0.0
    %2373 = vmatprep.subr.mxu0 0.0
    %2374 = vmatpush1.msra.mxu0 0.0
    %2375 = vmatprep.subr.mxu0 0.0
    %2376 = vmatpush1.msra.mxu0 0.0
    %2377 = vmatprep.subr.mxu0 0.0
    %2378 = vmatpush1.msra.mxu0 0.0
    %2379 = vmatprep.subr.mxu0 0.0
    %2380 = vmatpush1.msra.mxu0 0.0
    %2381 = vmatprep.subr.mxu0 0.0
    %2382 = vmatpush1.msra.mxu0 0.0
    %2383 = vmatprep.subr.mxu0 0.0
    %2384 = vmatpush1.msra.mxu0 0.0
    %2385 = vmatprep.subr.mxu0 0.0
    %2386 = vmatpush1.msra.mxu0 0.0
    %2387 = vmatprep.subr.mxu0 0.0
    %2388 = vmatpush1.msra.mxu0 0.0
    %2389 = vmatprep.mubr.f32.mxu0 0.0
    %2390 = vmatmul.mubr.f32.gmra.mrb[0].mxu0 %v2323
    %v2391 = vpop.f32.mrb[0].mxu0
    %v2392 = vadd.f32 0.0, %v2391
    %v2393 = vpop.f32.mrb[0].mxu0
    %v2394 = vadd.f32 0.0, %v2393
    %2395 = vdwg.mxu0
    %2396 = vmatprep.subr.mxu0 0.0
    %2397 = vmatpush1.msra.mxu0 %v580
    %2398 = vmatprep.subr.mxu0 0.0
    %2399 = vmatpush1.msra.mxu0 %v583
    %2400 = vmatprep.subr.mxu0 0.0
    %2401 = vmatpush1.msra.mxu0 %v586
    %2402 = vmatprep.subr.mxu0 0.0
    %2403 = vmatpush1.msra.mxu0 %v589
    %2404 = vmatprep.subr.mxu0 0.0
    %2405 = vmatpush1.msra.mxu0 %v592
    %2406 = vmatprep.subr.mxu0 0.0
    %2407 = vmatpush1.msra.mxu0 %v595
    %2408 = vmatprep.subr.mxu0 0.0
    %2409 = vmatpush1.msra.mxu0 %v598
    %2410 = vmatprep.subr.mxu0 0.0
    %2411 = vmatpush1.msra.mxu0 %v601
    %2412 = vmatprep.subr.mxu0 0.0
    %2413 = vmatpush1.msra.mxu0 %v604
    %2414 = vmatprep.subr.mxu0 0.0
    %2415 = vmatpush1.msra.mxu0 %v607
    %2416 = vmatprep.subr.mxu0 0.0
    %2417 = vmatpush1.msra.mxu0 %v610
    %2418 = vmatprep.subr.mxu0 0.0
    %2419 = vmatpush1.msra.mxu0 %v613
    %2420 = vmatprep.subr.mxu0 0.0
    %2421 = vmatpush1.msra.mxu0 %v616
    %2422 = vmatprep.subr.mxu0 0.0
    %2423 = vmatpush1.msra.mxu0 %v619
    %2424 = vmatprep.subr.mxu0 0.0
    %2425 = vmatpush1.msra.mxu0 %v622
    %2426 = vmatprep.subr.mxu0 0.0
    %2427 = vmatpush1.msra.mxu0 %v625
    %2428 = vmatprep.subr.mxu0 0.0
    %2429 = vmatpush1.msra.mxu0 0.0
    %2430 = vmatprep.subr.mxu0 0.0
    %2431 = vmatpush1.msra.mxu0 0.0
    %2432 = vmatprep.subr.mxu0 0.0
    %2433 = vmatpush1.msra.mxu0 0.0
    %2434 = vmatprep.subr.mxu0 0.0
    %2435 = vmatpush1.msra.mxu0 0.0
    %2436 = vmatprep.subr.mxu0 0.0
    %2437 = vmatpush1.msra.mxu0 0.0
    %2438 = vmatprep.subr.mxu0 0.0
    %2439 = vmatpush1.msra.mxu0 0.0
    %2440 = vmatprep.subr.mxu0 0.0
    %2441 = vmatpush1.msra.mxu0 0.0
    %2442 = vmatprep.subr.mxu0 0.0
    %2443 = vmatpush1.msra.mxu0 0.0
    %2444 = vmatprep.subr.mxu0 0.0
    %2445 = vmatpush1.msra.mxu0 0.0
    %2446 = vmatprep.subr.mxu0 0.0
    %2447 = vmatpush1.msra.mxu0 0.0
    %2448 = vmatprep.subr.mxu0 0.0
    %2449 = vmatpush1.msra.mxu0 0.0
    %2450 = vmatprep.subr.mxu0 0.0
    %2451 = vmatpush1.msra.mxu0 0.0
    %2452 = vmatprep.subr.mxu0 0.0
    %2453 = vmatpush1.msra.mxu0 0.0
    %2454 = vmatprep.subr.mxu0 0.0
    %2455 = vmatpush1.msra.mxu0 0.0
    %2456 = vmatprep.subr.mxu0 0.0
    %2457 = vmatpush1.msra.mxu0 0.0
    %2458 = vmatprep.subr.mxu0 0.0
    %2459 = vmatpush1.msra.mxu0 0.0
    %2460 = vmatprep.mubr.f32.mxu0 0.0
    %2461 = vmatmul.mubr.f32.gmra.mrb[0].mxu0 %v2323
    %v2462 = vpop.f32.mrb[0].mxu0
    %v2463 = vadd.f32 0.0, %v2462
    %v2464 = vpop.f32.mrb[0].mxu0
    %2465 = vdwg.mxu0
    %v2466 = vadd.f32 %v336, %v2392
    %v2467 = vxor.u32 %v2466, 2147483648
    %v2468 = vmul.f32 %v2467, 1.442695
    %v2469 = vpow.pop %v2468
    %v2470 = vadd.f32 %v2469, 1.0
    %v2471 = vrcp.pop %v2470
    %v2472 = vmul.f32 1.0, %v2471
    %v2473 = vadd.f32 %v338, %v2394
    %v2474 = vxor.u32 %v2473, 2147483648
    %v2475 = vmul.f32 %v2474, 1.442695
    %v2476 = vpow.pop %v2475
    %v2477 = vadd.f32 %v2476, 1.0
    %v2478 = vrcp.pop %v2477
    %v2479 = vmul.f32 1.0, %v2478
    %v2480 = vadd.f32 %v2463, %v674
    %v2481 = vmul.f32 %v2472, %v2480
    %v2482 = vadd.f32 %v449, %v2481
    %v2483 = vtanh.pop %v2482
    %v2484 = vsub.f32 1.0, %v2479
    %v2485 = vmul.f32 %v2484, %v2483
    %v2486 = vmul.f32 %v2479, %v2323
    %v2487 = vadd.f32 %v2485, %v2486
    %2488 = vmatprep.subr.mxu0 %v627
    %2489 = vmatpush1.msra.mxu0 %v626
    %2490 = vmatprep.subr.mxu0 %v630
    %2491 = vmatpush1.msra.mxu0 %v629
    %2492 = vmatprep.subr.mxu0 %v633
    %2493 = vmatpush1.msra.mxu0 %v632
    %2494 = vmatprep.subr.mxu0 %v636
    %2495 = vmatpush1.msra.mxu0 %v635
    %2496 = vmatprep.subr.mxu0 %v639
    %2497 = vmatpush1.msra.mxu0 %v638
    %2498 = vmatprep.subr.mxu0 %v642
    %2499 = vmatpush1.msra.mxu0 %v641
    %2500 = vmatprep.subr.mxu0 %v645
    %2501 = vmatpush1.msra.mxu0 %v644
    %2502 = vmatprep.subr.mxu0 %v648
    %2503 = vmatpush1.msra.mxu0 %v647
    %2504 = vmatprep.subr.mxu0 %v651
    %2505 = vmatpush1.msra.mxu0 %v650
    %2506 = vmatprep.subr.mxu0 %v654
    %2507 = vmatpush1.msra.mxu0 %v653
    %2508 = vmatprep.subr.mxu0 %v657
    %2509 = vmatpush1.msra.mxu0 %v656
    %2510 = vmatprep.subr.mxu0 %v660
    %2511 = vmatpush1.msra.mxu0 %v659
    %2512 = vmatprep.subr.mxu0 %v663
    %2513 = vmatpush1.msra.mxu0 %v662
    %2514 = vmatprep.subr.mxu0 %v666
    %2515 = vmatpush1.msra.mxu0 %v665
    %2516 = vmatprep.subr.mxu0 %v669
    %2517 = vmatpush1.msra.mxu0 %v668
    %2518 = vmatprep.subr.mxu0 %v672
    %2519 = vmatpush1.msra.mxu0 %v671
    %2520 = vmatprep.subr.mxu0 0.0
    %2521 = vmatpush1.msra.mxu0 0.0
    %2522 = vmatprep.subr.mxu0 0.0
    %2523 = vmatpush1.msra.mxu0 0.0
    %2524 = vmatprep.subr.mxu0 0.0
    %2525 = vmatpush1.msra.mxu0 0.0
    %2526 = vmatprep.subr.mxu0 0.0
    %2527 = vmatpush1.msra.mxu0 0.0
    %2528 = vmatprep.subr.mxu0 0.0
    %2529 = vmatpush1.msra.mxu0 0.0
    %2530 = vmatprep.subr.mxu0 0.0
    %2531 = vmatpush1.msra.mxu0 0.0
    %2532 = vmatprep.subr.mxu0 0.0
    %2533 = vmatpush1.msra.mxu0 0.0
    %2534 = vmatprep.subr.mxu0 0.0
    %2535 = vmatpush1.msra.mxu0 0.0
    %2536 = vmatprep.subr.mxu0 0.0
    %2537 = vmatpush1.msra.mxu0 0.0
    %2538 = vmatprep.subr.mxu0 0.0
    %2539 = vmatpush1.msra.mxu0 0.0
    %2540 = vmatprep.subr.mxu0 0.0
    %2541 = vmatpush1.msra.mxu0 0.0
    %2542 = vmatprep.subr.mxu0 0.0
    %2543 = vmatpush1.msra.mxu0 0.0
    %2544 = vmatprep.subr.mxu0 0.0
    %2545 = vmatpush1.msra.mxu0 0.0
    %2546 = vmatprep.subr.mxu0 0.0
    %2547 = vmatpush1.msra.mxu0 0.0
    %2548 = vmatprep.subr.mxu0 0.0
    %2549 = vmatpush1.msra.mxu0 0.0
    %2550 = vmatprep.subr.mxu0 0.0
    %2551 = vmatpush1.msra.mxu0 0.0
    %2552 = vmatprep.mubr.f32.mxu0 0.0
    %2553 = vmatmul.mubr.f32.gmra.mrb[0].mxu0 %v2324
    %v2554 = vpop.f32.mrb[0].mxu0
    %v2555 = vadd.f32 0.0, %v2554
    %v2556 = vpop.f32.mrb[0].mxu0
    %v2557 = vadd.f32 0.0, %v2556
    %2558 = vdwg.mxu0
    %2559 = vmatprep.subr.mxu0 0.0
    %2560 = vmatpush1.msra.mxu0 %v628
    %2561 = vmatprep.subr.mxu0 0.0
    %2562 = vmatpush1.msra.mxu0 %v631
    %2563 = vmatprep.subr.mxu0 0.0
    %2564 = vmatpush1.msra.mxu0 %v634
    %2565 = vmatprep.subr.mxu0 0.0
    %2566 = vmatpush1.msra.mxu0 %v637
    %2567 = vmatprep.subr.mxu0 0.0
    %2568 = vmatpush1.msra.mxu0 %v640
    %2569 = vmatprep.subr.mxu0 0.0
    %2570 = vmatpush1.msra.mxu0 %v643
    %2571 = vmatprep.subr.mxu0 0.0
    %2572 = vmatpush1.msra.mxu0 %v646
    %2573 = vmatprep.subr.mxu0 0.0
    %2574 = vmatpush1.msra.mxu0 %v649
    %2575 = vmatprep.subr.mxu0 0.0
    %2576 = vmatpush1.msra.mxu0 %v652
    %2577 = vmatprep.subr.mxu0 0.0
    %2578 = vmatpush1.msra.mxu0 %v655
    %2579 = vmatprep.subr.mxu0 0.0
    %2580 = vmatpush1.msra.mxu0 %v658
    %2581 = vmatprep.subr.mxu0 0.0
    %2582 = vmatpush1.msra.mxu0 %v661
    %2583 = vmatprep.subr.mxu0 0.0
    %2584 = vmatpush1.msra.mxu0 %v664
    %2585 = vmatprep.subr.mxu0 0.0
    %2586 = vmatpush1.msra.mxu0 %v667
    %2587 = vmatprep.subr.mxu0 0.0
    %2588 = vmatpush1.msra.mxu0 %v670
    %2589 = vmatprep.subr.mxu0 0.0
    %2590 = vmatpush1.msra.mxu0 %v673
    %2591 = vmatprep.subr.mxu0 0.0
    %2592 = vmatpush1.msra.mxu0 0.0
    %2593 = vmatprep.subr.mxu0 0.0
    %2594 = vmatpush1.msra.mxu0 0.0
    %2595 = vmatprep.subr.mxu0 0.0
    %2596 = vmatpush1.msra.mxu0 0.0
    %2597 = vmatprep.subr.mxu0 0.0
    %2598 = vmatpush1.msra.mxu0 0.0
    %2599 = vmatprep.subr.mxu0 0.0
    %2600 = vmatpush1.msra.mxu0 0.0
    %2601 = vmatprep.subr.mxu0 0.0
    %2602 = vmatpush1.msra.mxu0 0.0
    %2603 = vmatprep.subr.mxu0 0.0
    %2604 = vmatpush1.msra.mxu0 0.0
    %2605 = vmatprep.subr.mxu0 0.0
    %2606 = vmatpush1.msra.mxu0 0.0
    %2607 = vmatprep.subr.mxu0 0.0
    %2608 = vmatpush1.msra.mxu0 0.0
    %2609 = vmatprep.subr.mxu0 0.0
    %2610 = vmatpush1.msra.mxu0 0.0
    %2611 = vmatprep.subr.mxu0 0.0
    %2612 = vmatpush1.msra.mxu0 0.0
    %2613 = vmatprep.subr.mxu0 0.0
    %2614 = vmatpush1.msra.mxu0 0.0
    %2615 = vmatprep.subr.mxu0 0.0
    %2616 = vmatpush1.msra.mxu0 0.0
    %2617 = vmatprep.subr.mxu0 0.0
    %2618 = vmatpush1.msra.mxu0 0.0
    %2619 = vmatprep.subr.mxu0 0.0
    %2620 = vmatpush1.msra.mxu0 0.0
    %2621 = vmatprep.subr.mxu0 0.0
    %2622 = vmatpush1.msra.mxu0 0.0
    %2623 = vmatprep.mubr.f32.mxu0 0.0
    %2624 = vmatmul.mubr.f32.gmra.mrb[0].mxu0 %v2324
    %v2625 = vpop.f32.mrb[0].mxu0
    %v2626 = vadd.f32 0.0, %v2625
    %v2627 = vpop.f32.mrb[0].mxu0
    %2628 = vdwg.mxu0
    %v2629 = vadd.f32 %v433, %v2555
    %v2630 = vxor.u32 %v2629, 2147483648
    %v2631 = vmul.f32 %v2630, 1.442695
    %v2632 = vpow.pop %v2631
    %v2633 = vadd.f32 %v2632, 1.0
    %v2634 = vrcp.pop %v2633
    %v2635 = vmul.f32 1.0, %v2634
    %v2636 = vadd.f32 %v544, %v2557
    %v2637 = vxor.u32 %v2636, 2147483648
    %v2638 = vmul.f32 %v2637, 1.442695
    %v2639 = vpow.pop %v2638
    %v2640 = vadd.f32 %v2639, 1.0
    %v2641 = vrcp.pop %v2640
    %v2642 = vmul.f32 1.0, %v2641
    %v2643 = vadd.f32 %v2626, %v675
    %v2644 = vmul.f32 %v2635, %v2643
    %v2645 = vadd.f32 %v546, %v2644
    %v2646 = vtanh.pop %v2645
    %v2647 = vsub.f32 1.0, %v2642
    %v2648 = vmul.f32 %v2647, %v2646
    %v2649 = vmul.f32 %v2642, %v2324
    %v2650 = vadd.f32 %v2648, %v2649
    %v2651 = vsel %vm1665, %v2487, %v2323
    %v2652 = vsel %vm1663, %v2650, %v2324
    %2653 = vmatprep.subr.mxu0 %v579
    %2654 = vmatpush1.msra.mxu0 %v578
    %2655 = vmatprep.subr.mxu0 %v582
    %2656 = vmatpush1.msra.mxu0 %v581
    %2657 = vmatprep.subr.mxu0 %v585
    %2658 = vmatpush1.msra.mxu0 %v584
    %2659 = vmatprep.subr.mxu0 %v588
    %2660 = vmatpush1.msra.mxu0 %v587
    %2661 = vmatprep.subr.mxu0 %v591
    %2662 = vmatpush1.msra.mxu0 %v590
    %2663 = vmatprep.subr.mxu0 %v594
    %2664 = vmatpush1.msra.mxu0 %v593
    %2665 = vmatprep.subr.mxu0 %v597
    %2666 = vmatpush1.msra.mxu0 %v596
    %2667 = vmatprep.subr.mxu0 %v600
    %2668 = vmatpush1.msra.mxu0 %v599
    %2669 = vmatprep.subr.mxu0 %v603
    %2670 = vmatpush1.msra.mxu0 %v602
    %2671 = vmatprep.subr.mxu0 %v606
    %2672 = vmatpush1.msra.mxu0 %v605
    %2673 = vmatprep.subr.mxu0 %v609
    %2674 = vmatpush1.msra.mxu0 %v608
    %2675 = vmatprep.subr.mxu0 %v612
    %2676 = vmatpush1.msra.mxu0 %v611
    %2677 = vmatprep.subr.mxu0 %v615
    %2678 = vmatpush1.msra.mxu0 %v614
    %2679 = vmatprep.subr.mxu0 %v618
    %2680 = vmatpush1.msra.mxu0 %v617
    %2681 = vmatprep.subr.mxu0 %v621
    %2682 = vmatpush1.msra.mxu0 %v620
    %2683 = vmatprep.subr.mxu0 %v624
    %2684 = vmatpush1.msra.mxu0 %v623
    %2685 = vmatprep.subr.mxu0 0.0
    %2686 = vmatpush1.msra.mxu0 0.0
    %2687 = vmatprep.subr.mxu0 0.0
    %2688 = vmatpush1.msra.mxu0 0.0
    %2689 = vmatprep.subr.mxu0 0.0
    %2690 = vmatpush1.msra.mxu0 0.0
    %2691 = vmatprep.subr.mxu0 0.0
    %2692 = vmatpush1.msra.mxu0 0.0
    %2693 = vmatprep.subr.mxu0 0.0
    %2694 = vmatpush1.msra.mxu0 0.0
    %2695 = vmatprep.subr.mxu0 0.0
    %2696 = vmatpush1.msra.mxu0 0.0
    %2697 = vmatprep.subr.mxu0 0.0
    %2698 = vmatpush1.msra.mxu0 0.0
    %2699 = vmatprep.subr.mxu0 0.0
    %2700 = vmatpush1.msra.mxu0 0.0
    %2701 = vmatprep.subr.mxu0 0.0
    %2702 = vmatpush1.msra.mxu0 0.0
    %2703 = vmatprep.subr.mxu0 0.0
    %2704 = vmatpush1.msra.mxu0 0.0
    %2705 = vmatprep.subr.mxu0 0.0
    %2706 = vmatpush1.msra.mxu0 0.0
    %2707 = vmatprep.subr.mxu0 0.0
    %2708 = vmatpush1.msra.mxu0 0.0
    %2709 = vmatprep.subr.mxu0 0.0
    %2710 = vmatpush1.msra.mxu0 0.0
    %2711 = vmatprep.subr.mxu0 0.0
    %2712 = vmatpush1.msra.mxu0 0.0
    %2713 = vmatprep.subr.mxu0 0.0
    %2714 = vmatpush1.msra.mxu0 0.0
    %2715 = vmatprep.subr.mxu0 0.0
    %2716 = vmatpush1.msra.mxu0 0.0
    %2717 = vmatprep.mubr.f32.mxu0 0.0
    %2718 = vmatmul.mubr.f32.gmra.mrb[0].mxu0 %v2651
    %v2719 = vpop.f32.mrb[0].mxu0
    %v2720 = vadd.f32 0.0, %v2719
    %v2721 = vpop.f32.mrb[0].mxu0
    %v2722 = vadd.f32 0.0, %v2721
    %2723 = vdwg.mxu0
    %2724 = vmatprep.subr.mxu0 0.0
    %2725 = vmatpush1.msra.mxu0 %v580
    %2726 = vmatprep.subr.mxu0 0.0
    %2727 = vmatpush1.msra.mxu0 %v583
    %2728 = vmatprep.subr.mxu0 0.0
    %2729 = vmatpush1.msra.mxu0 %v586
    %2730 = vmatprep.subr.mxu0 0.0
    %2731 = vmatpush1.msra.mxu0 %v589
    %2732 = vmatprep.subr.mxu0 0.0
    %2733 = vmatpush1.msra.mxu0 %v592
    %2734 = vmatprep.subr.mxu0 0.0
    %2735 = vmatpush1.msra.mxu0 %v595
    %2736 = vmatprep.subr.mxu0 0.0
    %2737 = vmatpush1.msra.mxu0 %v598
    %2738 = vmatprep.subr.mxu0 0.0
    %2739 = vmatpush1.msra.mxu0 %v601
    %2740 = vmatprep.subr.mxu0 0.0
    %2741 = vmatpush1.msra.mxu0 %v604
    %2742 = vmatprep.subr.mxu0 0.0
    %2743 = vmatpush1.msra.mxu0 %v607
    %2744 = vmatprep.subr.mxu0 0.0
    %2745 = vmatpush1.msra.mxu0 %v610
    %2746 = vmatprep.subr.mxu0 0.0
    %2747 = vmatpush1.msra.mxu0 %v613
    %2748 = vmatprep.subr.mxu0 0.0
    %2749 = vmatpush1.msra.mxu0 %v616
    %2750 = vmatprep.subr.mxu0 0.0
    %2751 = vmatpush1.msra.mxu0 %v619
    %2752 = vmatprep.subr.mxu0 0.0
    %2753 = vmatpush1.msra.mxu0 %v622
    %2754 = vmatprep.subr.mxu0 0.0
    %2755 = vmatpush1.msra.mxu0 %v625
    %2756 = vmatprep.subr.mxu0 0.0
    %2757 = vmatpush1.msra.mxu0 0.0
    %2758 = vmatprep.subr.mxu0 0.0
    %2759 = vmatpush1.msra.mxu0 0.0
    %2760 = vmatprep.subr.mxu0 0.0
    %2761 = vmatpush1.msra.mxu0 0.0
    %2762 = vmatprep.subr.mxu0 0.0
    %2763 = vmatpush1.msra.mxu0 0.0
    %2764 = vmatprep.subr.mxu0 0.0
    %2765 = vmatpush1.msra.mxu0 0.0
    %2766 = vmatprep.subr.mxu0 0.0
    %2767 = vmatpush1.msra.mxu0 0.0
    %2768 = vmatprep.subr.mxu0 0.0
    %2769 = vmatpush1.msra.mxu0 0.0
    %2770 = vmatprep.subr.mxu0 0.0
    %2771 = vmatpush1.msra.mxu0 0.0
    %2772 = vmatprep.subr.mxu0 0.0
    %2773 = vmatpush1.msra.mxu0 0.0
    %2774 = vmatprep.subr.mxu0 0.0
    %2775 = vmatpush1.msra.mxu0 0.0
    %2776 = vmatprep.subr.mxu0 0.0
    %2777 = vmatpush1.msra.mxu0 0.0
    %2778 = vmatprep.subr.mxu0 0.0
    %2779 = vmatpush1.msra.mxu0 0.0
    %2780 = vmatprep.subr.mxu0 0.0
    %2781 = vmatpush1.msra.mxu0 0.0
    %2782 = vmatprep.subr.mxu0 0.0
    %2783 = vmatpush1.msra.mxu0 0.0
    %2784 = vmatprep.subr.mxu0 0.0
    %2785 = vmatpush1.msra.mxu0 0.0
    %2786 = vmatprep.subr.mxu0 0.0
    %2787 = vmatpush1.msra.mxu0 0.0
    %2788 = vmatprep.mubr.f32.mxu0 0.0
    %2789 = vmatmul.mubr.f32.gmra.mrb[0].mxu0 %v2651
    %v2790 = vpop.f32.mrb[0].mxu0
    %v2791 = vadd.f32 0.0, %v2790
    %v2792 = vpop.f32.mrb[0].mxu0
    %2793 = vdwg.mxu0
    %v2794 = vadd.f32 %v342, %v2720
    %v2795 = vxor.u32 %v2794, 2147483648
    %v2796 = vmul.f32 %v2795, 1.442695
    %v2797 = vpow.pop %v2796
    %v2798 = vadd.f32 %v2797, 1.0
    %v2799 = vrcp.pop %v2798
    %v2800 = vmul.f32 1.0, %v2799
    %v2801 = vadd.f32 %v344, %v2722
    %v2802 = vxor.u32 %v2801, 2147483648
    %v2803 = vmul.f32 %v2802, 1.442695
    %v2804 = vpow.pop %v2803
    %v2805 = vadd.f32 %v2804, 1.0
    %v2806 = vrcp.pop %v2805
    %v2807 = vmul.f32 1.0, %v2806
    %v2808 = vadd.f32 %v2791, %v674
    %v2809 = vmul.f32 %v2800, %v2808
    %v2810 = vadd.f32 %v455, %v2809
    %v2811 = vtanh.pop %v2810
    %v2812 = vsub.f32 1.0, %v2807
    %v2813 = vmul.f32 %v2812, %v2811
    %v2814 = vmul.f32 %v2807, %v2651
    %v2815 = vadd.f32 %v2813, %v2814
    %2816 = vmatprep.subr.mxu0 %v627
    %2817 = vmatpush1.msra.mxu0 %v626
    %2818 = vmatprep.subr.mxu0 %v630
    %2819 = vmatpush1.msra.mxu0 %v629
    %2820 = vmatprep.subr.mxu0 %v633
    %2821 = vmatpush1.msra.mxu0 %v632
    %2822 = vmatprep.subr.mxu0 %v636
    %2823 = vmatpush1.msra.mxu0 %v635
    %2824 = vmatprep.subr.mxu0 %v639
    %2825 = vmatpush1.msra.mxu0 %v638
    %2826 = vmatprep.subr.mxu0 %v642
    %2827 = vmatpush1.msra.mxu0 %v641
    %2828 = vmatprep.subr.mxu0 %v645
    %2829 = vmatpush1.msra.mxu0 %v644
    %2830 = vmatprep.subr.mxu0 %v648
    %2831 = vmatpush1.msra.mxu0 %v647
    %2832 = vmatprep.subr.mxu0 %v651
    %2833 = vmatpush1.msra.mxu0 %v650
    %2834 = vmatprep.subr.mxu0 %v654
    %2835 = vmatpush1.msra.mxu0 %v653
    %2836 = vmatprep.subr.mxu0 %v657
    %2837 = vmatpush1.msra.mxu0 %v656
    %2838 = vmatprep.subr.mxu0 %v660
    %2839 = vmatpush1.msra.mxu0 %v659
    %2840 = vmatprep.subr.mxu0 %v663
    %2841 = vmatpush1.msra.mxu0 %v662
    %2842 = vmatprep.subr.mxu0 %v666
    %2843 = vmatpush1.msra.mxu0 %v665
    %2844 = vmatprep.subr.mxu0 %v669
    %2845 = vmatpush1.msra.mxu0 %v668
    %2846 = vmatprep.subr.mxu0 %v672
    %2847 = vmatpush1.msra.mxu0 %v671
    %2848 = vmatprep.subr.mxu0 0.0
    %2849 = vmatpush1.msra.mxu0 0.0
    %2850 = vmatprep.subr.mxu0 0.0
    %2851 = vmatpush1.msra.mxu0 0.0
    %2852 = vmatprep.subr.mxu0 0.0
    %2853 = vmatpush1.msra.mxu0 0.0
    %2854 = vmatprep.subr.mxu0 0.0
    %2855 = vmatpush1.msra.mxu0 0.0
    %2856 = vmatprep.subr.mxu0 0.0
    %2857 = vmatpush1.msra.mxu0 0.0
    %2858 = vmatprep.subr.mxu0 0.0
    %2859 = vmatpush1.msra.mxu0 0.0
    %2860 = vmatprep.subr.mxu0 0.0
    %2861 = vmatpush1.msra.mxu0 0.0
    %2862 = vmatprep.subr.mxu0 0.0
    %2863 = vmatpush1.msra.mxu0 0.0
    %2864 = vmatprep.subr.mxu0 0.0
    %2865 = vmatpush1.msra.mxu0 0.0
    %2866 = vmatprep.subr.mxu0 0.0
    %2867 = vmatpush1.msra.mxu0 0.0
    %2868 = vmatprep.subr.mxu0 0.0
    %2869 = vmatpush1.msra.mxu0 0.0
    %2870 = vmatprep.subr.mxu0 0.0
    %2871 = vmatpush1.msra.mxu0 0.0
    %2872 = vmatprep.subr.mxu0 0.0
    %2873 = vmatpush1.msra.mxu0 0.0
    %2874 = vmatprep.subr.mxu0 0.0
    %2875 = vmatpush1.msra.mxu0 0.0
    %2876 = vmatprep.subr.mxu0 0.0
    %2877 = vmatpush1.msra.mxu0 0.0
    %2878 = vmatprep.subr.mxu0 0.0
    %2879 = vmatpush1.msra.mxu0 0.0
    %2880 = vmatprep.mubr.f32.mxu0 0.0
    %2881 = vmatmul.mubr.f32.gmra.mrb[0].mxu0 %v2652
    %v2882 = vpop.f32.mrb[0].mxu0
    %v2883 = vadd.f32 0.0, %v2882
    %v2884 = vpop.f32.mrb[0].mxu0
    %v2885 = vadd.f32 0.0, %v2884
    %2886 = vdwg.mxu0
    %2887 = vmatprep.subr.mxu0 0.0
    %2888 = vmatpush1.msra.mxu0 %v628
    %2889 = vmatprep.subr.mxu0 0.0
    %2890 = vmatpush1.msra.mxu0 %v631
    %2891 = vmatprep.subr.mxu0 0.0
    %2892 = vmatpush1.msra.mxu0 %v634
    %2893 = vmatprep.subr.mxu0 0.0
    %2894 = vmatpush1.msra.mxu0 %v637
    %2895 = vmatprep.subr.mxu0 0.0
    %2896 = vmatpush1.msra.mxu0 %v640
    %2897 = vmatprep.subr.mxu0 0.0
    %2898 = vmatpush1.msra.mxu0 %v643
    %2899 = vmatprep.subr.mxu0 0.0
    %2900 = vmatpush1.msra.mxu0 %v646
    %2901 = vmatprep.subr.mxu0 0.0
    %2902 = vmatpush1.msra.mxu0 %v649
    %2903 = vmatprep.subr.mxu0 0.0
    %2904 = vmatpush1.msra.mxu0 %v652
    %2905 = vmatprep.subr.mxu0 0.0
    %2906 = vmatpush1.msra.mxu0 %v655
    %2907 = vmatprep.subr.mxu0 0.0
    %2908 = vmatpush1.msra.mxu0 %v658
    %2909 = vmatprep.subr.mxu0 0.0
    %2910 = vmatpush1.msra.mxu0 %v661
    %2911 = vmatprep.subr.mxu0 0.0
    %2912 = vmatpush1.msra.mxu0 %v664
    %2913 = vmatprep.subr.mxu0 0.0
    %2914 = vmatpush1.msra.mxu0 %v667
    %2915 = vmatprep.subr.mxu0 0.0
    %2916 = vmatpush1.msra.mxu0 %v670
    %2917 = vmatprep.subr.mxu0 0.0
    %2918 = vmatpush1.msra.mxu0 %v673
    %2919 = vmatprep.subr.mxu0 0.0
    %2920 = vmatpush1.msra.mxu0 0.0
    %2921 = vmatprep.subr.mxu0 0.0
    %2922 = vmatpush1.msra.mxu0 0.0
    %2923 = vmatprep.subr.mxu0 0.0
    %2924 = vmatpush1.msra.mxu0 0.0
    %2925 = vmatprep.subr.mxu0 0.0
    %2926 = vmatpush1.msra.mxu0 0.0
    %2927 = vmatprep.subr.mxu0 0.0
    %2928 = vmatpush1.msra.mxu0 0.0
    %2929 = vmatprep.subr.mxu0 0.0
    %2930 = vmatpush1.msra.mxu0 0.0
    %2931 = vmatprep.subr.mxu0 0.0
    %2932 = vmatpush1.msra.mxu0 0.0
    %2933 = vmatprep.subr.mxu0 0.0
    %2934 = vmatpush1.msra.mxu0 0.0
    %2935 = vmatprep.subr.mxu0 0.0
    %2936 = vmatpush1.msra.mxu0 0.0
    %2937 = vmatprep.subr.mxu0 0.0
    %2938 = vmatpush1.msra.mxu0 0.0
    %2939 = vmatprep.subr.mxu0 0.0
    %2940 = vmatpush1.msra.mxu0 0.0
    %2941 = vmatprep.subr.mxu0 0.0
    %2942 = vmatpush1.msra.mxu0 0.0
    %2943 = vmatprep.subr.mxu0 0.0
    %2944 = vmatpush1.msra.mxu0 0.0
    %2945 = vmatprep.subr.mxu0 0.0
    %2946 = vmatpush1.msra.mxu0 0.0
    %2947 = vmatprep.subr.mxu0 0.0
    %2948 = vmatpush1.msra.mxu0 0.0
    %2949 = vmatprep.subr.mxu0 0.0
    %2950 = vmatpush1.msra.mxu0 0.0
    %2951 = vmatprep.mubr.f32.mxu0 0.0
    %2952 = vmatmul.mubr.f32.gmra.mrb[0].mxu0 %v2652
    %v2953 = vpop.f32.mrb[0].mxu0
    %v2954 = vadd.f32 0.0, %v2953
    %v2955 = vpop.f32.mrb[0].mxu0
    %2956 = vdwg.mxu0
    %v2957 = vadd.f32 %v427, %v2883
    %v2958 = vxor.u32 %v2957, 2147483648
    %v2959 = vmul.f32 %v2958, 1.442695
    %v2960 = vpow.pop %v2959
    %v2961 = vadd.f32 %v2960, 1.0
    %v2962 = vrcp.pop %v2961
    %v2963 = vmul.f32 1.0, %v2962
    %v2964 = vadd.f32 %v538, %v2885
    %v2965 = vxor.u32 %v2964, 2147483648
    %v2966 = vmul.f32 %v2965, 1.442695
    %v2967 = vpow.pop %v2966
    %v2968 = vadd.f32 %v2967, 1.0
    %v2969 = vrcp.pop %v2968
    %v2970 = vmul.f32 1.0, %v2969
    %v2971 = vadd.f32 %v2954, %v675
    %v2972 = vmul.f32 %v2963, %v2971
    %v2973 = vadd.f32 %v540, %v2972
    %v2974 = vtanh.pop %v2973
    %v2975 = vsub.f32 1.0, %v2970
    %v2976 = vmul.f32 %v2975, %v2974
    %v2977 = vmul.f32 %v2970, %v2652
    %v2978 = vadd.f32 %v2976, %v2977
    %v2979 = vsel %vm1335, %v2815, %v2651
    %v2980 = vsel %vm1333, %v2978, %v2652
    %2981 = vmatprep.subr.mxu0 %v579
    %2982 = vmatpush1.msra.mxu0 %v578
    %2983 = vmatprep.subr.mxu0 %v582
    %2984 = vmatpush1.msra.mxu0 %v581
    %2985 = vmatprep.subr.mxu0 %v585
    %2986 = vmatpush1.msra.mxu0 %v584
    %2987 = vmatprep.subr.mxu0 %v588
    %2988 = vmatpush1.msra.mxu0 %v587
    %2989 = vmatprep.subr.mxu0 %v591
    %2990 = vmatpush1.msra.mxu0 %v590
    %2991 = vmatprep.subr.mxu0 %v594
    %2992 = vmatpush1.msra.mxu0 %v593
    %2993 = vmatprep.subr.mxu0 %v597
    %2994 = vmatpush1.msra.mxu0 %v596
    %2995 = vmatprep.subr.mxu0 %v600
    %2996 = vmatpush1.msra.mxu0 %v599
    %2997 = vmatprep.subr.mxu0 %v603
    %2998 = vmatpush1.msra.mxu0 %v602
    %2999 = vmatprep.subr.mxu0 %v606
    %3000 = vmatpush1.msra.mxu0 %v605
    %3001 = vmatprep.subr.mxu0 %v609
    %3002 = vmatpush1.msra.mxu0 %v608
    %3003 = vmatprep.subr.mxu0 %v612
    %3004 = vmatpush1.msra.mxu0 %v611
    %3005 = vmatprep.subr.mxu0 %v615
    %3006 = vmatpush1.msra.mxu0 %v614
    %3007 = vmatprep.subr.mxu0 %v618
    %3008 = vmatpush1.msra.mxu0 %v617
    %3009 = vmatprep.subr.mxu0 %v621
    %3010 = vmatpush1.msra.mxu0 %v620
    %3011 = vmatprep.subr.mxu0 %v624
    %3012 = vmatpush1.msra.mxu0 %v623
    %3013 = vmatprep.subr.mxu0 0.0
    %3014 = vmatpush1.msra.mxu0 0.0
    %3015 = vmatprep.subr.mxu0 0.0
    %3016 = vmatpush1.msra.mxu0 0.0
    %3017 = vmatprep.subr.mxu0 0.0
    %3018 = vmatpush1.msra.mxu0 0.0
    %3019 = vmatprep.subr.mxu0 0.0
    %3020 = vmatpush1.msra.mxu0 0.0
    %3021 = vmatprep.subr.mxu0 0.0
    %3022 = vmatpush1.msra.mxu0 0.0
    %3023 = vmatprep.subr.mxu0 0.0
    %3024 = vmatpush1.msra.mxu0 0.0
    %3025 = vmatprep.subr.mxu0 0.0
    %3026 = vmatpush1.msra.mxu0 0.0
    %3027 = vmatprep.subr.mxu0 0.0
    %3028 = vmatpush1.msra.mxu0 0.0
    %3029 = vmatprep.subr.mxu0 0.0
    %3030 = vmatpush1.msra.mxu0 0.0
    %3031 = vmatprep.subr.mxu0 0.0
    %3032 = vmatpush1.msra.mxu0 0.0
    %3033 = vmatprep.subr.mxu0 0.0
    %3034 = vmatpush1.msra.mxu0 0.0
    %3035 = vmatprep.subr.mxu0 0.0
    %3036 = vmatpush1.msra.mxu0 0.0
    %3037 = vmatprep.subr.mxu0 0.0
    %3038 = vmatpush1.msra.mxu0 0.0
    %3039 = vmatprep.subr.mxu0 0.0
    %3040 = vmatpush1.msra.mxu0 0.0
    %3041 = vmatprep.subr.mxu0 0.0
    %3042 = vmatpush1.msra.mxu0 0.0
    %3043 = vmatprep.subr.mxu0 0.0
    %3044 = vmatpush1.msra.mxu0 0.0
    %3045 = vmatprep.mubr.f32.mxu0 0.0
    %3046 = vmatmul.mubr.f32.gmra.mrb[0].mxu0 %v2979
    %v3047 = vpop.f32.mrb[0].mxu0
    %v3048 = vadd.f32 0.0, %v3047
    %v3049 = vpop.f32.mrb[0].mxu0
    %v3050 = vadd.f32 0.0, %v3049
    %3051 = vdwg.mxu0
    %3052 = vmatprep.subr.mxu0 0.0
    %3053 = vmatpush1.msra.mxu0 %v580
    %3054 = vmatprep.subr.mxu0 0.0
    %3055 = vmatpush1.msra.mxu0 %v583
    %3056 = vmatprep.subr.mxu0 0.0
    %3057 = vmatpush1.msra.mxu0 %v586
    %3058 = vmatprep.subr.mxu0 0.0
    %3059 = vmatpush1.msra.mxu0 %v589
    %3060 = vmatprep.subr.mxu0 0.0
    %3061 = vmatpush1.msra.mxu0 %v592
    %3062 = vmatprep.subr.mxu0 0.0
    %3063 = vmatpush1.msra.mxu0 %v595
    %3064 = vmatprep.subr.mxu0 0.0
    %3065 = vmatpush1.msra.mxu0 %v598
    %3066 = vmatprep.subr.mxu0 0.0
    %3067 = vmatpush1.msra.mxu0 %v601
    %3068 = vmatprep.subr.mxu0 0.0
    %3069 = vmatpush1.msra.mxu0 %v604
    %3070 = vmatprep.subr.mxu0 0.0
    %3071 = vmatpush1.msra.mxu0 %v607
    %3072 = vmatprep.subr.mxu0 0.0
    %3073 = vmatpush1.msra.mxu0 %v610
    %3074 = vmatprep.subr.mxu0 0.0
    %3075 = vmatpush1.msra.mxu0 %v613
    %3076 = vmatprep.subr.mxu0 0.0
    %3077 = vmatpush1.msra.mxu0 %v616
    %3078 = vmatprep.subr.mxu0 0.0
    %3079 = vmatpush1.msra.mxu0 %v619
    %3080 = vmatprep.subr.mxu0 0.0
    %3081 = vmatpush1.msra.mxu0 %v622
    %3082 = vmatprep.subr.mxu0 0.0
    %3083 = vmatpush1.msra.mxu0 %v625
    %3084 = vmatprep.subr.mxu0 0.0
    %3085 = vmatpush1.msra.mxu0 0.0
    %3086 = vmatprep.subr.mxu0 0.0
    %3087 = vmatpush1.msra.mxu0 0.0
    %3088 = vmatprep.subr.mxu0 0.0
    %3089 = vmatpush1.msra.mxu0 0.0
    %3090 = vmatprep.subr.mxu0 0.0
    %3091 = vmatpush1.msra.mxu0 0.0
    %3092 = vmatprep.subr.mxu0 0.0
    %3093 = vmatpush1.msra.mxu0 0.0
    %3094 = vmatprep.subr.mxu0 0.0
    %3095 = vmatpush1.msra.mxu0 0.0
    %3096 = vmatprep.subr.mxu0 0.0
    %3097 = vmatpush1.msra.mxu0 0.0
    %3098 = vmatprep.subr.mxu0 0.0
    %3099 = vmatpush1.msra.mxu0 0.0
    %3100 = vmatprep.subr.mxu0 0.0
    %3101 = vmatpush1.msra.mxu0 0.0
    %3102 = vmatprep.subr.mxu0 0.0
    %3103 = vmatpush1.msra.mxu0 0.0
    %3104 = vmatprep.subr.mxu0 0.0
    %3105 = vmatpush1.msra.mxu0 0.0
    %3106 = vmatprep.subr.mxu0 0.0
    %3107 = vmatpush1.msra.mxu0 0.0
    %3108 = vmatprep.subr.mxu0 0.0
    %3109 = vmatpush1.msra.mxu0 0.0
    %3110 = vmatprep.subr.mxu0 0.0
    %3111 = vmatpush1.msra.mxu0 0.0
    %3112 = vmatprep.subr.mxu0 0.0
    %3113 = vmatpush1.msra.mxu0 0.0
    %3114 = vmatprep.subr.mxu0 0.0
    %3115 = vmatpush1.msra.mxu0 0.0
    %3116 = vmatprep.mubr.f32.mxu0 0.0
    %3117 = vmatmul.mubr.f32.gmra.mrb[0].mxu0 %v2979
    %v3118 = vpop.f32.mrb[0].mxu0
    %v3119 = vadd.f32 0.0, %v3118
    %v3120 = vpop.f32.mrb[0].mxu0
    %3121 = vdwg.mxu0
    %v3122 = vadd.f32 %v348, %v3048
    %v3123 = vxor.u32 %v3122, 2147483648
    %v3124 = vmul.f32 %v3123, 1.442695
    %v3125 = vpow.pop %v3124
    %v3126 = vadd.f32 %v3125, 1.0
    %v3127 = vrcp.pop %v3126
    %v3128 = vmul.f32 1.0, %v3127
    %v3129 = vadd.f32 %v350, %v3050
    %v3130 = vxor.u32 %v3129, 2147483648
    %v3131 = vmul.f32 %v3130, 1.442695
    %v3132 = vpow.pop %v3131
    %v3133 = vadd.f32 %v3132, 1.0
    %v3134 = vrcp.pop %v3133
    %v3135 = vmul.f32 1.0, %v3134
    %v3136 = vadd.f32 %v3119, %v674
    %v3137 = vmul.f32 %v3128, %v3136
    %v3138 = vadd.f32 %v461, %v3137
    %v3139 = vtanh.pop %v3138
    %v3140 = vsub.f32 1.0, %v3135
    %v3141 = vmul.f32 %v3140, %v3139
    %v3142 = vmul.f32 %v3135, %v2979
    %v3143 = vadd.f32 %v3141, %v3142
    %3144 = vmatprep.subr.mxu0 %v627
    %3145 = vmatpush1.msra.mxu0 %v626
    %3146 = vmatprep.subr.mxu0 %v630
    %3147 = vmatpush1.msra.mxu0 %v629
    %3148 = vmatprep.subr.mxu0 %v633
    %3149 = vmatpush1.msra.mxu0 %v632
    %3150 = vmatprep.subr.mxu0 %v636
    %3151 = vmatpush1.msra.mxu0 %v635
    %3152 = vmatprep.subr.mxu0 %v639
    %3153 = vmatpush1.msra.mxu0 %v638
    %3154 = vmatprep.subr.mxu0 %v642
    %3155 = vmatpush1.msra.mxu0 %v641
    %3156 = vmatprep.subr.mxu0 %v645
    %3157 = vmatpush1.msra.mxu0 %v644
    %3158 = vmatprep.subr.mxu0 %v648
    %3159 = vmatpush1.msra.mxu0 %v647
    %3160 = vmatprep.subr.mxu0 %v651
    %3161 = vmatpush1.msra.mxu0 %v650
    %3162 = vmatprep.subr.mxu0 %v654
    %3163 = vmatpush1.msra.mxu0 %v653
    %3164 = vmatprep.subr.mxu0 %v657
    %3165 = vmatpush1.msra.mxu0 %v656
    %3166 = vmatprep.subr.mxu0 %v660
    %3167 = vmatpush1.msra.mxu0 %v659
    %3168 = vmatprep.subr.mxu0 %v663
    %3169 = vmatpush1.msra.mxu0 %v662
    %3170 = vmatprep.subr.mxu0 %v666
    %3171 = vmatpush1.msra.mxu0 %v665
    %3172 = vmatprep.subr.mxu0 %v669
    %3173 = vmatpush1.msra.mxu0 %v668
    %3174 = vmatprep.subr.mxu0 %v672
    %3175 = vmatpush1.msra.mxu0 %v671
    %3176 = vmatprep.subr.mxu0 0.0
    %3177 = vmatpush1.msra.mxu0 0.0
    %3178 = vmatprep.subr.mxu0 0.0
    %3179 = vmatpush1.msra.mxu0 0.0
    %3180 = vmatprep.subr.mxu0 0.0
    %3181 = vmatpush1.msra.mxu0 0.0
    %3182 = vmatprep.subr.mxu0 0.0
    %3183 = vmatpush1.msra.mxu0 0.0
    %3184 = vmatprep.subr.mxu0 0.0
    %3185 = vmatpush1.msra.mxu0 0.0
    %3186 = vmatprep.subr.mxu0 0.0
    %3187 = vmatpush1.msra.mxu0 0.0
    %3188 = vmatprep.subr.mxu0 0.0
    %3189 = vmatpush1.msra.mxu0 0.0
    %3190 = vmatprep.subr.mxu0 0.0
    %3191 = vmatpush1.msra.mxu0 0.0
    %3192 = vmatprep.subr.mxu0 0.0
    %3193 = vmatpush1.msra.mxu0 0.0
    %3194 = vmatprep.subr.mxu0 0.0
    %3195 = vmatpush1.msra.mxu0 0.0
    %3196 = vmatprep.subr.mxu0 0.0
    %3197 = vmatpush1.msra.mxu0 0.0
    %3198 = vmatprep.subr.mxu0 0.0
    %3199 = vmatpush1.msra.mxu0 0.0
    %3200 = vmatprep.subr.mxu0 0.0
    %3201 = vmatpush1.msra.mxu0 0.0
    %3202 = vmatprep.subr.mxu0 0.0
    %3203 = vmatpush1.msra.mxu0 0.0
    %3204 = vmatprep.subr.mxu0 0.0
    %3205 = vmatpush1.msra.mxu0 0.0
    %3206 = vmatprep.subr.mxu0 0.0
    %3207 = vmatpush1.msra.mxu0 0.0
    %3208 = vmatprep.mubr.f32.mxu0 0.0
    %3209 = vmatmul.mubr.f32.gmra.mrb[0].mxu0 %v2980
    %v3210 = vpop.f32.mrb[0].mxu0
    %v3211 = vadd.f32 0.0, %v3210
    %v3212 = vpop.f32.mrb[0].mxu0
    %v3213 = vadd.f32 0.0, %v3212
    %3214 = vdwg.mxu0
    %3215 = vmatprep.subr.mxu0 0.0
    %3216 = vmatpush1.msra.mxu0 %v628
    %3217 = vmatprep.subr.mxu0 0.0
    %3218 = vmatpush1.msra.mxu0 %v631
    %3219 = vmatprep.subr.mxu0 0.0
    %3220 = vmatpush1.msra.mxu0 %v634
    %3221 = vmatprep.subr.mxu0 0.0
    %3222 = vmatpush1.msra.mxu0 %v637
    %3223 = vmatprep.subr.mxu0 0.0
    %3224 = vmatpush1.msra.mxu0 %v640
    %3225 = vmatprep.subr.mxu0 0.0
    %3226 = vmatpush1.msra.mxu0 %v643
    %3227 = vmatprep.subr.mxu0 0.0
    %3228 = vmatpush1.msra.mxu0 %v646
    %3229 = vmatprep.subr.mxu0 0.0
    %3230 = vmatpush1.msra.mxu0 %v649
    %3231 = vmatprep.subr.mxu0 0.0
    %3232 = vmatpush1.msra.mxu0 %v652
    %3233 = vmatprep.subr.mxu0 0.0
    %3234 = vmatpush1.msra.mxu0 %v655
    %3235 = vmatprep.subr.mxu0 0.0
    %3236 = vmatpush1.msra.mxu0 %v658
    %3237 = vmatprep.subr.mxu0 0.0
    %3238 = vmatpush1.msra.mxu0 %v661
    %3239 = vmatprep.subr.mxu0 0.0
    %3240 = vmatpush1.msra.mxu0 %v664
    %3241 = vmatprep.subr.mxu0 0.0
    %3242 = vmatpush1.msra.mxu0 %v667
    %3243 = vmatprep.subr.mxu0 0.0
    %3244 = vmatpush1.msra.mxu0 %v670
    %3245 = vmatprep.subr.mxu0 0.0
    %3246 = vmatpush1.msra.mxu0 %v673
    %3247 = vmatprep.subr.mxu0 0.0
    %3248 = vmatpush1.msra.mxu0 0.0
    %3249 = vmatprep.subr.mxu0 0.0
    %3250 = vmatpush1.msra.mxu0 0.0
    %3251 = vmatprep.subr.mxu0 0.0
    %3252 = vmatpush1.msra.mxu0 0.0
    %3253 = vmatprep.subr.mxu0 0.0
    %3254 = vmatpush1.msra.mxu0 0.0
    %3255 = vmatprep.subr.mxu0 0.0
    %3256 = vmatpush1.msra.mxu0 0.0
    %3257 = vmatprep.subr.mxu0 0.0
    %3258 = vmatpush1.msra.mxu0 0.0
    %3259 = vmatprep.subr.mxu0 0.0
    %3260 = vmatpush1.msra.mxu0 0.0
    %3261 = vmatprep.subr.mxu0 0.0
    %3262 = vmatpush1.msra.mxu0 0.0
    %3263 = vmatprep.subr.mxu0 0.0
    %3264 = vmatpush1.msra.mxu0 0.0
    %3265 = vmatprep.subr.mxu0 0.0
    %3266 = vmatpush1.msra.mxu0 0.0
    %3267 = vmatprep.subr.mxu0 0.0
    %3268 = vmatpush1.msra.mxu0 0.0
    %3269 = vmatprep.subr.mxu0 0.0
    %3270 = vmatpush1.msra.mxu0 0.0
    %3271 = vmatprep.subr.mxu0 0.0
    %3272 = vmatpush1.msra.mxu0 0.0
    %3273 = vmatprep.subr.mxu0 0.0
    %3274 = vmatpush1.msra.mxu0 0.0
    %3275 = vmatprep.subr.mxu0 0.0
    %3276 = vmatpush1.msra.mxu0 0.0
    %3277 = vmatprep.subr.mxu0 0.0
    %3278 = vmatpush1.msra.mxu0 0.0
    %3279 = vmatprep.mubr.f32.mxu0 0.0
    %3280 = vmatmul.mubr.f32.gmra.mrb[0].mxu0 %v2980
    %v3281 = vpop.f32.mrb[0].mxu0
    %v3282 = vadd.f32 0.0, %v3281
    %v3283 = vpop.f32.mrb[0].mxu0
    %3284 = vdwg.mxu0
    %v3285 = vadd.f32 %v421, %v3211
    %v3286 = vxor.u32 %v3285, 2147483648
    %v3287 = vmul.f32 %v3286, 1.442695
    %v3288 = vpow.pop %v3287
    %v3289 = vadd.f32 %v3288, 1.0
    %v3290 = vrcp.pop %v3289
    %v3291 = vmul.f32 1.0, %v3290
    %v3292 = vadd.f32 %v532, %v3213
    %v3293 = vxor.u32 %v3292, 2147483648
    %v3294 = vmul.f32 %v3293, 1.442695
    %v3295 = vpow.pop %v3294
    %v3296 = vadd.f32 %v3295, 1.0
    %v3297 = vrcp.pop %v3296
    %v3298 = vmul.f32 1.0, %v3297
    %v3299 = vadd.f32 %v3282, %v675
    %v3300 = vmul.f32 %v3291, %v3299
    %v3301 = vadd.f32 %v534, %v3300
    %v3302 = vtanh.pop %v3301
    %v3303 = vsub.f32 1.0, %v3298
    %v3304 = vmul.f32 %v3303, %v3302
    %v3305 = vmul.f32 %v3298, %v2980
    %v3306 = vadd.f32 %v3304, %v3305
    %v3307 = vsel %vm1005, %v3143, %v2979
    %v3308 = vsel %vm1003, %v3306, %v2980
    %v3309 = vmax.f32 %v3307, 0.0
    %v3310 = vmax.f32 %v3308, 0.0
    %v3311 = vld [vmem:[#allocation8] sm:$0xff]
    %v3312 = vld [vmem:[#allocation8 + $0x8] sm:$0xff]
    %v3313 = vld [vmem:[#allocation8 + $0x10] sm:$0xff]
    %v3314 = vld [vmem:[#allocation8 + $0x18] sm:$0xff]
    %v3315 = vld [vmem:[#allocation8 + $0x20] sm:$0xff]
    %v3316 = vld [vmem:[#allocation8 + $0x28] sm:$0xff]
    %v3317 = vld [vmem:[#allocation8 + $0x30] sm:$0xff]
    %v3318 = vld [vmem:[#allocation8 + $0x38] sm:$0xff]
    %v3319 = vld [vmem:[#allocation8 + $0x40] sm:$0xff]
    %v3320 = vld [vmem:[#allocation8 + $0x48] sm:$0xff]
    %v3321 = vld [vmem:[#allocation8 + $0x50] sm:$0xff]
    %v3322 = vld [vmem:[#allocation8 + $0x58] sm:$0xff]
    %v3323 = vld [vmem:[#allocation8 + $0x60] sm:$0xff]
    %v3324 = vld [vmem:[#allocation8 + $0x68] sm:$0xff]
    %v3325 = vld [vmem:[#allocation8 + $0x70] sm:$0xff]
    %v3326 = vld [vmem:[#allocation8 + $0x78] sm:$0xff]
    %v3327 = vld [vmem:[#allocation8 + $0x80] sm:$0xff]
    %v3328 = vld [vmem:[#allocation8 + $0x88] sm:$0xff]
    %v3329 = vld [vmem:[#allocation8 + $0x90] sm:$0xff]
    %v3330 = vld [vmem:[#allocation8 + $0x98] sm:$0xff]
    %v3331 = vld [vmem:[#allocation8 + $0xa0] sm:$0xff]
    %v3332 = vld [vmem:[#allocation8 + $0xa8] sm:$0xff]
    %v3333 = vld [vmem:[#allocation8 + $0xb0] sm:$0xff]
    %v3334 = vld [vmem:[#allocation8 + $0xb8] sm:$0xff]
    %v3335 = vld [vmem:[#allocation8 + $0xc0] sm:$0xff]
    %v3336 = vld [vmem:[#allocation8 + $0xc8] sm:$0xff]
    %v3337 = vld [vmem:[#allocation8 + $0xd0] sm:$0xff]
    %v3338 = vld [vmem:[#allocation8 + $0xd8] sm:$0xff]
    %v3339 = vld [vmem:[#allocation8 + $0xe0] sm:$0xff]
    %v3340 = vld [vmem:[#allocation8 + $0xe8] sm:$0xff]
    %v3341 = vld [vmem:[#allocation8 + $0xf0] sm:$0xff]
    %v3342 = vld [vmem:[#allocation8 + $0xf8] sm:$0xff]
    %3343 = vmatprep.subr.mxu0 0.0
    %3344 = vmatpush1.msra.mxu0 %v3327
    %3345 = vmatprep.subr.mxu0 0.0
    %3346 = vmatpush1.msra.mxu0 %v3328
    %3347 = vmatprep.subr.mxu0 0.0
    %3348 = vmatpush1.msra.mxu0 %v3329
    %3349 = vmatprep.subr.mxu0 0.0
    %3350 = vmatpush1.msra.mxu0 %v3330
    %3351 = vmatprep.subr.mxu0 0.0
    %3352 = vmatpush1.msra.mxu0 %v3331
    %3353 = vmatprep.subr.mxu0 0.0
    %3354 = vmatpush1.msra.mxu0 %v3332
    %3355 = vmatprep.subr.mxu0 0.0
    %3356 = vmatpush1.msra.mxu0 %v3333
    %3357 = vmatprep.subr.mxu0 0.0
    %3358 = vmatpush1.msra.mxu0 %v3334
    %3359 = vmatprep.subr.mxu0 0.0
    %3360 = vmatpush1.msra.mxu0 %v3335
    %3361 = vmatprep.subr.mxu0 0.0
    %3362 = vmatpush1.msra.mxu0 %v3336
    %3363 = vmatprep.subr.mxu0 0.0
    %3364 = vmatpush1.msra.mxu0 %v3337
    %3365 = vmatprep.subr.mxu0 0.0
    %3366 = vmatpush1.msra.mxu0 %v3338
    %3367 = vmatprep.subr.mxu0 0.0
    %3368 = vmatpush1.msra.mxu0 %v3339
    %3369 = vmatprep.subr.mxu0 0.0
    %3370 = vmatpush1.msra.mxu0 %v3340
    %3371 = vmatprep.subr.mxu0 0.0
    %3372 = vmatpush1.msra.mxu0 %v3341
    %3373 = vmatprep.subr.mxu0 0.0
    %3374 = vmatpush1.msra.mxu0 %v3342
    %3375 = vmatprep.subr.mxu0 0.0
    %3376 = vmatpush1.msra.mxu0 0.0
    %3377 = vmatprep.subr.mxu0 0.0
    %3378 = vmatpush1.msra.mxu0 0.0
    %3379 = vmatprep.subr.mxu0 0.0
    %3380 = vmatpush1.msra.mxu0 0.0
    %3381 = vmatprep.subr.mxu0 0.0
    %3382 = vmatpush1.msra.mxu0 0.0
    %3383 = vmatprep.subr.mxu0 0.0
    %3384 = vmatpush1.msra.mxu0 0.0
    %3385 = vmatprep.subr.mxu0 0.0
    %3386 = vmatpush1.msra.mxu0 0.0
    %3387 = vmatprep.subr.mxu0 0.0
    %3388 = vmatpush1.msra.mxu0 0.0
    %3389 = vmatprep.subr.mxu0 0.0
    %3390 = vmatpush1.msra.mxu0 0.0
    %3391 = vmatprep.subr.mxu0 0.0
    %3392 = vmatpush1.msra.mxu0 0.0
    %3393 = vmatprep.subr.mxu0 0.0
    %3394 = vmatpush1.msra.mxu0 0.0
    %3395 = vmatprep.subr.mxu0 0.0
    %3396 = vmatpush1.msra.mxu0 0.0
    %3397 = vmatprep.subr.mxu0 0.0
    %3398 = vmatpush1.msra.mxu0 0.0
    %3399 = vmatprep.subr.mxu0 0.0
    %3400 = vmatpush1.msra.mxu0 0.0
    %3401 = vmatprep.subr.mxu0 0.0
    %3402 = vmatpush1.msra.mxu0 0.0
    %3403 = vmatprep.subr.mxu0 0.0
    %3404 = vmatpush1.msra.mxu0 0.0
    %3405 = vmatprep.subr.mxu0 0.0
    %3406 = vmatpush1.msra.mxu0 0.0
    %3407 = vmatprep.mubr.f32.mxu0 0.0
    %3408 = vmatmul.mubr.f32.gmra.mrb[0].mxu0 %v3310
    %v3409 = vpop.f32.mrb[0].mxu0
    %v3410 = vadd.f32 0.0, %v3409
    %v3411 = vpop.f32.mrb[0].mxu0
    %3412 = vdwg.mxu0
    %3413 = vmatprep.subr.mxu0 0.0
    %3414 = vmatpush1.msra.mxu0 %v3311
    %3415 = vmatprep.subr.mxu0 0.0
    %3416 = vmatpush1.msra.mxu0 %v3312
    %3417 = vmatprep.subr.mxu0 0.0
    %3418 = vmatpush1.msra.mxu0 %v3313
    %3419 = vmatprep.subr.mxu0 0.0
    %3420 = vmatpush1.msra.mxu0 %v3314
    %3421 = vmatprep.subr.mxu0 0.0
    %3422 = vmatpush1.msra.mxu0 %v3315
    %3423 = vmatprep.subr.mxu0 0.0
    %3424 = vmatpush1.msra.mxu0 %v3316
    %3425 = vmatprep.subr.mxu0 0.0
    %3426 = vmatpush1.msra.mxu0 %v3317
    %3427 = vmatprep.subr.mxu0 0.0
    %3428 = vmatpush1.msra.mxu0 %v3318
    %3429 = vmatprep.subr.mxu0 0.0
    %3430 = vmatpush1.msra.mxu0 %v3319
    %3431 = vmatprep.subr.mxu0 0.0
    %3432 = vmatpush1.msra.mxu0 %v3320
    %3433 = vmatprep.subr.mxu0 0.0
    %3434 = vmatpush1.msra.mxu0 %v3321
    %3435 = vmatprep.subr.mxu0 0.0
    %3436 = vmatpush1.msra.mxu0 %v3322
    %3437 = vmatprep.subr.mxu0 0.0
    %3438 = vmatpush1.msra.mxu0 %v3323
    %3439 = vmatprep.subr.mxu0 0.0
    %3440 = vmatpush1.msra.mxu0 %v3324
    %3441 = vmatprep.subr.mxu0 0.0
    %3442 = vmatpush1.msra.mxu0 %v3325
    %3443 = vmatprep.subr.mxu0 0.0
    %3444 = vmatpush1.msra.mxu0 %v3326
    %3445 = vmatprep.subr.mxu0 0.0
    %3446 = vmatpush1.msra.mxu0 0.0
    %3447 = vmatprep.subr.mxu0 0.0
    %3448 = vmatpush1.msra.mxu0 0.0
    %3449 = vmatprep.subr.mxu0 0.0
    %3450 = vmatpush1.msra.mxu0 0.0
    %3451 = vmatprep.subr.mxu0 0.0
    %3452 = vmatpush1.msra.mxu0 0.0
    %3453 = vmatprep.subr.mxu0 0.0
    %3454 = vmatpush1.msra.mxu0 0.0
    %3455 = vmatprep.subr.mxu0 0.0
    %3456 = vmatpush1.msra.mxu0 0.0
    %3457 = vmatprep.subr.mxu0 0.0
    %3458 = vmatpush1.msra.mxu0 0.0
    %3459 = vmatprep.subr.mxu0 0.0
    %3460 = vmatpush1.msra.mxu0 0.0
    %3461 = vmatprep.subr.mxu0 0.0
    %3462 = vmatpush1.msra.mxu0 0.0
    %3463 = vmatprep.subr.mxu0 0.0
    %3464 = vmatpush1.msra.mxu0 0.0
    %3465 = vmatprep.subr.mxu0 0.0
    %3466 = vmatpush1.msra.mxu0 0.0
    %3467 = vmatprep.subr.mxu0 0.0
    %3468 = vmatpush1.msra.mxu0 0.0
    %3469 = vmatprep.subr.mxu0 0.0
    %3470 = vmatpush1.msra.mxu0 0.0
    %3471 = vmatprep.subr.mxu0 0.0
    %3472 = vmatpush1.msra.mxu0 0.0
    %3473 = vmatprep.subr.mxu0 0.0
    %3474 = vmatpush1.msra.mxu0 0.0
    %3475 = vmatprep.subr.mxu0 0.0
    %3476 = vmatpush1.msra.mxu0 0.0
    %3477 = vmatprep.mubr.f32.mxu0 0.0
    %3478 = vmatmul.mubr.f32.gmra.mrb[0].mxu0 %v3309
    %v3479 = vpop.f32.mrb[0].mxu0
    %v3480 = vadd.f32 %v3410, %v3479
    %v3481 = vpop.f32.mrb[0].mxu0
    %3482 = vdwg.mxu0
    %v3483 = vld [vmem:[%s7] sm:$0xff]
    %v3484 = vadd.f32 %v3480, %v3483
    %3485 = vst [vmem:[#allocation10] sm:$0xff] %v3484
    // Predicated region
    $region50: #{tpu_custom_call.1} parent=1 // pred_check
      _
    $region51: #{tpu_custom_call.1} parent=1 // pred_check_branch
      %3487 = sbr.rel (0) target = $region53
    $region52: #{tpu_custom_call.1} parent=1 // pred_region
      %s3489 = ssub.s32 128, 128
      %3490 = vsyncadd [#allocation4], %s3489
      %s3492 = sshll.u32 [#allocation10], 4
      %s3493 = int_to_ptr.vmem [resolvable:$true] %s3492
      %3495 = dma.vmem_to_hbm [thread:$0]  %s3493, 128, %s8, [#allocation4]
    $region53: #{tpu_custom_call.1} parent=1 // pred_fallthru
      _
    // Predicated region
    $region54: #{tpu_custom_call.1} parent=1 // pred_check
      _
    $region55: #{tpu_custom_call.1} parent=1 // pred_check_branch
      %3497 = sbr.rel (0) target = $region57
    $region56: #{tpu_custom_call.1} parent=1 // pred_region
      %3498 = dma.done [#allocation4], 128
    $region57: #{tpu_custom_call.1} parent=1 // pred_fallthru
      _
    %3499 = vsyncpa [#allocation3], 1
    %3500 = vsyncpa [#allocation6], 1
    %3501 = vsyncpa [#allocation9], 1
    %3502 = vsyncpa [#allocation4], 1

</llo_original>
